<compile_context>
chip_gen: v6e
topology: v6e:2x2x1
jax: 0.10.0
libtpu: 0.0.40
codegen_flags: <defaults>
</compile_context>

<pallas_src>
import functools

import jax
import jax.numpy as jnp
from jax import lax
from jax.experimental import pallas as pl
from jax.experimental.pallas import tpu as pltpu


# ----------------------------------------------------------------------------
# Pallas kernel: one grid step == one block of `nb` batch elements, all heads.
# ----------------------------------------------------------------------------
def _cga_kernel(x_ref, wqkv_ref, bqkv_ref, wdw_ref, bdw_ref, abm_ref,
                wproj_ref, bproj_ref, out_ref, *, num_heads, key_dim, ks):
    kd = key_dim
    pad = ks // 2

    feat = x_ref[0]                               # (ch, nb*L)  cascade state
    out_acc = None
    for h in range(num_heads):                    # unrolled cascade over heads
        if h > 0:
            feat = feat + x_ref[h]

        # --- qkv: 1x1 Conv1d + folded BN == channel matmul (lane-dense RHS) --
        qkv = jnp.dot(wqkv_ref[h], feat,
                      preferred_element_type=jnp.float32) + bqkv_ref[h]
        q = qkv[:kd]                              # (kd, nb*L)
        k = qkv[kd:2 * kd]                        # (kd, nb*L)
        v = qkv[2 * kd:]                          # (d,  nb*L)

        # --- depthwise Conv1d(ks, pad, groups=kd) + folded BN ----------------
        # Taps via XLU lane-rolls; the segment-edge masks AND the attention
        # scale are pre-folded into wdw/bdw by the wrapper -> pure roll + FMA.
        nbl = q.shape[1]
        w_dw_h = wdw_ref[h]                       # (ks, kd, nb*L)
        q_dw = jnp.broadcast_to(bdw_ref[h], q.shape)
        for t in range(ks):
            delta = t - pad
            tap = q if delta == 0 else pltpu.roll(q, shift=(-delta) % nbl, axis=1)
            q_dw = q_dw + tap * w_dw_h[t]

        # --- attention: scores kept transposed, s[key, query] ----------------
        # Contract axis 0 of both operands so the MXU consumes the transposed
        # operand directly (no explicit k.T relayout).  Bias + block-diagonal
        # segment mask arrive as one precomputed resident tile.  Normalization
        # is deferred to the small (d, nb*L) head output.
        s = lax.dot_general(k, q_dw, (((0,), (0,)), ((), ())),
                            preferred_element_type=jnp.float32)      # (nbl, nbl)
        s = s + abm_ref[h]
        s_max = jnp.max(s, axis=0, keepdims=True)                    # (1, nbl)
        p = jnp.exp(s - s_max)
        denom = jnp.sum(p, axis=0, keepdims=True)                    # (1, nbl)
        head = jnp.dot(v, p, preferred_element_type=jnp.float32)     # (d, nbl)
        head = head * (1.0 / denom)               # exact reciprocal, tiny vector

        feat = head                               # cascade into next head

        # --- ReLU + per-head slice of the output projection (accumulated) ----
        contrib = jnp.dot(wproj_ref[h], jnp.maximum(head, 0.0),
                          preferred_element_type=jnp.float32)        # (dim, nbl)
        out_acc = contrib if out_acc is None else out_acc + contrib

    out_ref[...] = out_acc + bproj_ref[...]       # bias fused into the store


# ----------------------------------------------------------------------------
# Wrapper
# ----------------------------------------------------------------------------
def cascaded_group_attention_1d(x, params, *, num_heads, key_dim, attn_ratio, ks,
                                nb=None):
    B, L, C = x.shape
    d = int(attn_ratio * key_dim)
    ch = C // num_heads
    assert ch * num_heads == C
    assert ch == d, "cascade residual requires dim // num_heads == attn_ratio * key_dim"
    resolution = params["ab"].shape[1]
    assert L == resolution, "sequence length must equal the bias-table resolution"
    dim = C
    scale = float(key_dim) ** -0.5
    pad = ks // 2

    # --- lane packing: nb batch elements along lanes so nb*L hits 128 ----------
    # Per-generation tunable: pass nb explicitly (pack the whole batch on
    # single-TC v5e/v6e; keep >=2 grid blocks on v7x so both TCs get work).
    if nb is None:
        nb = max(1, min(B, 128 // L)) if L < 128 else 1
    B_pad = -(-B // nb) * nb          # pad batch (lane-dense) instead of dropping nb
    if B_pad != B:
        x = jnp.pad(x, ((0, B_pad - B), (0, 0), (0, 0)))
    nB = B_pad // nb
    nbl = nb * L

    # (B_pad, L, C) -> (nB, nh, ch, nb*L): channel-major, batch segments on lanes
    x_t = jnp.transpose(x, (0, 2, 1)).reshape(nB, nb, num_heads, ch, L)
    x_blk = jnp.transpose(x_t, (0, 2, 3, 1, 4)).reshape(nB, num_heads, ch, nbl)

    # --- precomputed resident tiles (constant index_map -> fetched once) -------
    # per-key attention bias + block-diagonal segment mask fused into one tile
    ab_tiled = jnp.tile(params["ab"], (1, nb))                        # (nh, nbl)
    seg = jnp.arange(nbl) // L
    seg_mask = jnp.where(seg[:, None] == seg[None, :], 0.0, -1e30)    # (nbl, nbl)
    ab_mask = (ab_tiled[:, :, None] + seg_mask[None]).astype(jnp.float32)

    # depthwise taps: segment-edge masks and the attention scale folded in
    lane_pos = jnp.arange(nbl) % L
    taps = []
    for t in range(ks):
        delta = t - pad
        valid = ((lane_pos + delta >= 0) & (lane_pos + delta < L)).astype(jnp.float32)
        taps.append(params["w_dw"][:, :, t, None] * valid[None, None, :])
    w_dw_eff = (jnp.stack(taps, axis=1) * scale).astype(jnp.float32)  # (nh, ks, kd, nbl)
    b_dw_s = (params["b_dw"] * scale).astype(jnp.float32)             # (nh, kd, 1)

    # output projection pre-split per head for incremental accumulation
    w_proj_h = params["w_proj"].reshape(dim, num_heads, d).transpose(1, 0, 2)

    kernel = functools.partial(_cga_kernel, num_heads=num_heads,
                               key_dim=key_dim, ks=ks)

    def resident(arr):
        zeros = (0,) * arr.ndim
        return pl.BlockSpec(arr.shape, lambda g: zeros)

    out = pl.pallas_call(
        kernel,
        out_shape=jax.ShapeDtypeStruct((nB, dim, nbl), jnp.float32),
        grid_spec=pltpu.PrefetchScalarGridSpec(
            num_scalar_prefetch=0,
            grid=(nB,),
            in_specs=[
                pl.BlockSpec((pl.Squeezed(), num_heads, ch, nbl),
                             lambda g: (g, 0, 0, 0)),
                resident(params["w_qkv"]),
                resident(params["b_qkv"]),
                resident(w_dw_eff),
                resident(b_dw_s),
                resident(ab_mask),
                resident(w_proj_h),
                resident(params["b_proj"]),
            ],
            out_specs=pl.BlockSpec((pl.Squeezed(), dim, nbl),
                                   lambda g: (g, 0, 0)),
        ),
        compiler_params=pltpu.CompilerParams(
            dimension_semantics=("parallel",)),
    )(x_blk, params["w_qkv"], params["b_qkv"], w_dw_eff, b_dw_s,
      ab_mask, w_proj_h, params["b_proj"])

    # (nB, dim, nb*L) -> (B, L, dim)   (layout plumbing; could be pushed to the
    # neighboring layers by keeping the channel-major output)
    out = out.reshape(nB, dim, nb, L).transpose(0, 2, 3, 1).reshape(B_pad, L, dim)
    return out[:B]


# ----------------------------------------------------------------------------
# Deterministic parameter construction (Conv1d + eval-mode BN, folded)
# ----------------------------------------------------------------------------
def _fold_conv_bn(key, out_c, in_c, ks):
    k1, k2, k3, k4, k5 = jax.random.split(key, 5)
    w = 0.1 * jax.random.normal(k1, (out_c, in_c, ks), jnp.float32)
    gamma = 1.0 + 0.1 * jax.random.normal(k2, (out_c,), jnp.float32)
    beta = 0.1 * jax.random.normal(k3, (out_c,), jnp.float32)
    mu = 0.1 * jax.random.normal(k4, (out_c,), jnp.float32)
    var = 0.5 + jax.random.uniform(k5, (out_c,), jnp.float32)
    s = gamma / jnp.sqrt(var + 1e-5)
    return w * s[:, None, None], beta - mu * s


def init_params(key, *, dim, num_heads, key_dim, attn_ratio, resolution, ks):
    # NOTE: torch init uses bn_weight_init=0 for proj; random deterministic
    # values are used here so the kernel exercises non-trivial math.
    d = int(attn_ratio * key_dim)
    ch = dim // num_heads
    out_qkv = 2 * key_dim + d
    keys = jax.random.split(key, 2 * num_heads + 2)

    w_qkv, b_qkv, w_dw, b_dw = [], [], [], []
    for h in range(num_heads):
        w, b = _fold_conv_bn(keys[h], out_qkv, ch, 1)
        w_qkv.append(w[:, :, 0]); b_qkv.append(b[:, None])
        wd, bd = _fold_conv_bn(keys[num_heads + h], key_dim, 1, ks)   # depthwise
        w_dw.append(wd[:, 0, :]); b_dw.append(bd[:, None])

    wp, bp = _fold_conv_bn(keys[2 * num_heads], dim, d * num_heads, 1)
    w_proj = wp[:, :, 0]                                   # (dim, nh*d)
    b_proj = bp[:, None]                                   # (dim, 1)
    ab = 0.1 * jax.random.normal(keys[2 * num_heads + 1],
                                 (num_heads, resolution), jnp.float32)
    return dict(w_qkv=jnp.stack(w_qkv), b_qkv=jnp.stack(b_qkv),
                w_dw=jnp.stack(w_dw), b_dw=jnp.stack(b_dw),
                w_proj=w_proj, b_proj=b_proj, ab=ab)


# ----------------------------------------------------------------------------
# Pure-JAX reference (mirrors the torch forward with folded Conv1d_BN)
# ----------------------------------------------------------------------------
def reference(x, params, *, num_heads, key_dim, attn_ratio, ks):
    B, L, C = x.shape
    d = int(attn_ratio * key_dim)
    ch = C // num_heads
    scale = float(key_dim) ** -0.5
    pad = ks // 2

    feats_in = jnp.transpose(x, (0, 2, 1)).reshape(B, num_heads, ch, L)
    feat = feats_in[:, 0]
    outs = []
    for h in range(num_heads):
        if h > 0:
            feat = feat + feats_in[:, h]
        qkv = jnp.einsum('oc,bcl->bol', params['w_qkv'][h], feat) + params['b_qkv'][h][None]
        q, k, v = qkv[:, :key_dim], qkv[:, key_dim:2 * key_dim], qkv[:, 2 * key_dim:]
        qp = jnp.pad(q, ((0, 0), (0, 0), (pad, pad)))
        qd = jnp.zeros_like(q)
        for t in range(ks):
            qd = qd + params['w_dw'][h][None, :, t:t + 1] * qp[:, :, t:t + L]
        q = qd + params['b_dw'][h][None]
        attn = jnp.einsum('bcl,bcm->blm', q, k) * scale + params['ab'][h][None, None, :]
        attn = jax.nn.softmax(attn, axis=-1)
        feat = jnp.einsum('bcl,bml->bcm', v, attn)           # v @ attn^T
        outs.append(feat)
    cat = jnp.concatenate(outs, axis=1)
    out = jnp.einsum('oc,bcl->bol', params['w_proj'],
                     jnp.maximum(cat, 0.0)) + params['b_proj'][None]
    return jnp.transpose(out, (0, 2, 1))


# ----------------------------------------------------------------------------
if __name__ == "__main__":
    # Config A: module-default resolution (L=128) -> nb=1, fully lane-dense,
    #           no segment masking at all.
    # Config B: L=64, B=3 -> nb=2 lane packing + batch padding path exercised.
    configs = [
        dict(B=2, dim=32, num_heads=4, key_dim=2, attn_ratio=4, resolution=128, ks=5),
        dict(B=3, dim=32, num_heads=4, key_dim=2, attn_ratio=4, resolution=64, ks=5),
    ]
    root = jax.random.PRNGKey(0)
    for i, cfg in enumerate(configs):
        kx, kp = jax.random.split(jax.random.fold_in(root, i))
        L = cfg["resolution"]
        x = jax.random.normal(kx, (cfg["B"], L, cfg["dim"]), jnp.float32)
        params = init_params(kp, dim=cfg["dim"], num_heads=cfg["num_heads"],
                             key_dim=cfg["key_dim"], attn_ratio=cfg["attn_ratio"],
                             resolution=cfg["resolution"], ks=cfg["ks"])

        out = cascaded_group_attention_1d(x, params, num_heads=cfg["num_heads"],
                                          key_dim=cfg["key_dim"],
                                          attn_ratio=cfg["attn_ratio"], ks=cfg["ks"])
        out = jax.block_until_ready(out)

        ref = reference(x, params, num_heads=cfg["num_heads"], key_dim=cfg["key_dim"],
                        attn_ratio=cfg["attn_ratio"], ks=cfg["ks"])
        ref = jax.block_until_ready(ref)

        assert out.shape == (cfg["B"], L, cfg["dim"]), out.shape
        err = float(jnp.max(jnp.abs(out - ref)))
        # all-f32 math with exact reciprocal -> tight tolerance
        assert err < 1e-3, f"config {i}: max abs error {err}"

    print("KERNEL_OK")
</pallas_src>

<mosaic_0001>
module attributes {stable_mosaic.version = 11 : i64} {
  func.func @_cga_kernel(%arg0: i32, %arg1: memref<1x4x8x128xf32, #tpu.memory_space<vmem>>, %arg2: memref<4x12x8xf32, #tpu.memory_space<vmem>>, %arg3: memref<4x12x1xf32, #tpu.memory_space<vmem>>, %arg4: memref<4x5x2x128xf32, #tpu.memory_space<vmem>>, %arg5: memref<4x2x1xf32, #tpu.memory_space<vmem>>, %arg6: memref<4x128x128xf32, #tpu.memory_space<vmem>>, %arg7: memref<4x32x8xf32, #tpu.memory_space<vmem>>, %arg8: memref<32x1xf32, #tpu.memory_space<vmem>>, %arg9: memref<1x32x128xf32, #tpu.memory_space<vmem>>) attributes {dimension_semantics = [#tpu.dimension_semantics<parallel>], iteration_bounds = array<i64: 2>, scalar_prefetch = 0 : i64, scratch_operands = 0 : i64, tpu.core_type = #tpu.core_type<tc>, window_params = [{transform_indices = @transform_0, window_bounds = array<i64: 1, 4, 8, 128>}, {pipeline_mode = #tpu.pipeline_mode<synchronous>, transform_indices = @transform_1, window_bounds = array<i64: 4, 12, 8>}, {pipeline_mode = #tpu.pipeline_mode<synchronous>, transform_indices = @transform_2, window_bounds = array<i64: 4, 12, 1>}, {pipeline_mode = #tpu.pipeline_mode<synchronous>, transform_indices = @transform_3, window_bounds = array<i64: 4, 5, 2, 128>}, {pipeline_mode = #tpu.pipeline_mode<synchronous>, transform_indices = @transform_4, window_bounds = array<i64: 4, 2, 1>}, {pipeline_mode = #tpu.pipeline_mode<synchronous>, transform_indices = @transform_5, window_bounds = array<i64: 4, 128, 128>}, {pipeline_mode = #tpu.pipeline_mode<synchronous>, transform_indices = @transform_6, window_bounds = array<i64: 4, 32, 8>}, {pipeline_mode = #tpu.pipeline_mode<synchronous>, transform_indices = @transform_7, window_bounds = array<i64: 32, 1>}, {transform_indices = @transform_8, window_bounds = array<i64: 1, 32, 128>}]} {
    %c0 = arith.constant 0 : index
    %c0_0 = arith.constant 0 : index
    %c0_1 = arith.constant 0 : index
    %c0_2 = arith.constant 0 : index
    %0 = vector.load %arg1[%c0, %c0_0, %c0_1, %c0_2] : memref<1x4x8x128xf32, #tpu.memory_space<vmem>>, vector<1x1x8x128xf32>
    %1 = vector.shape_cast %0 : vector<1x1x8x128xf32> to vector<8x128xf32>
    %c0_3 = arith.constant 0 : index
    %c0_4 = arith.constant 0 : index
    %c0_5 = arith.constant 0 : index
    %2 = vector.load %arg2[%c0_3, %c0_4, %c0_5] : memref<4x12x8xf32, #tpu.memory_space<vmem>>, vector<1x12x8xf32>
    %3 = vector.shape_cast %2 : vector<1x12x8xf32> to vector<12x8xf32>
    %cst = arith.constant dense<0.000000e+00> : vector<12x128xf32>
    %4 = tpu.matmul %3, %1, %cst {dimension_numbers = #tpu.dot_dimension_numbers<[1], [0], [0], [1], [0, 0, 1, 1], [], []>} : vector<12x8xf32>, vector<8x128xf32>, vector<12x128xf32> -> vector<12x128xf32>
    %c0_6 = arith.constant 0 : index
    %c0_7 = arith.constant 0 : index
    %c0_8 = arith.constant 0 : index
    %5 = vector.load %arg3[%c0_6, %c0_7, %c0_8] : memref<4x12x1xf32, #tpu.memory_space<vmem>>, vector<1x12x1xf32>
    %6 = vector.shape_cast %5 : vector<1x12x1xf32> to vector<12x1xf32>
    %7 = vector.broadcast %6 : vector<12x1xf32> to vector<12x128xf32>
    %8 = arith.addf %4, %7 : vector<12x128xf32>
    %9 = vector.extract_strided_slice %8 {offsets = [0, 0], sizes = [2, 128], strides = [1, 1]} : vector<12x128xf32> to vector<2x128xf32>
    %10 = vector.extract_strided_slice %8 {offsets = [2, 0], sizes = [2, 128], strides = [1, 1]} : vector<12x128xf32> to vector<2x128xf32>
    %11 = vector.extract_strided_slice %8 {offsets = [4, 0], sizes = [8, 128], strides = [1, 1]} : vector<12x128xf32> to vector<8x128xf32>
    %c0_9 = arith.constant 0 : index
    %c0_10 = arith.constant 0 : index
    %c0_11 = arith.constant 0 : index
    %c0_12 = arith.constant 0 : index
    %12 = vector.load %arg4[%c0_9, %c0_10, %c0_11, %c0_12] : memref<4x5x2x128xf32, #tpu.memory_space<vmem>>, vector<1x5x2x128xf32>
    %13 = vector.shape_cast %12 : vector<1x5x2x128xf32> to vector<5x2x128xf32>
    %c0_13 = arith.constant 0 : index
    %c0_14 = arith.constant 0 : index
    %c0_15 = arith.constant 0 : index
    %14 = vector.load %arg5[%c0_13, %c0_14, %c0_15] : memref<4x2x1xf32, #tpu.memory_space<vmem>>, vector<1x2x1xf32>
    %15 = vector.shape_cast %14 : vector<1x2x1xf32> to vector<2x1xf32>
    %16 = vector.shape_cast %15 : vector<2x1xf32> to vector<2x1xf32>
    %17 = vector.broadcast %16 : vector<2x1xf32> to vector<2x128xf32>
    %c2_i32 = arith.constant 2 : i32
    %18 = tpu.dynamic_rotate %9 by %c2_i32 dim 1 : vector<2x128xf32>, i32 -> vector<2x128xf32>
    %19 = vector.extract_strided_slice %13 {offsets = [0, 0, 0], sizes = [1, 2, 128], strides = [1, 1, 1]} : vector<5x2x128xf32> to vector<1x2x128xf32>
    %20 = vector.shape_cast %19 : vector<1x2x128xf32> to vector<2x128xf32>
    %21 = arith.mulf %18, %20 : vector<2x128xf32>
    %22 = arith.addf %17, %21 : vector<2x128xf32>
    %c1_i32 = arith.constant 1 : i32
    %23 = tpu.dynamic_rotate %9 by %c1_i32 dim 1 : vector<2x128xf32>, i32 -> vector<2x128xf32>
    %24 = vector.extract_strided_slice %13 {offsets = [1, 0, 0], sizes = [1, 2, 128], strides = [1, 1, 1]} : vector<5x2x128xf32> to vector<1x2x128xf32>
    %25 = vector.shape_cast %24 : vector<1x2x128xf32> to vector<2x128xf32>
    %26 = arith.mulf %23, %25 : vector<2x128xf32>
    %27 = arith.addf %22, %26 : vector<2x128xf32>
    %28 = vector.extract_strided_slice %13 {offsets = [2, 0, 0], sizes = [1, 2, 128], strides = [1, 1, 1]} : vector<5x2x128xf32> to vector<1x2x128xf32>
    %29 = vector.shape_cast %28 : vector<1x2x128xf32> to vector<2x128xf32>
    %30 = arith.mulf %9, %29 : vector<2x128xf32>
    %31 = arith.addf %27, %30 : vector<2x128xf32>
    %c127_i32 = arith.constant 127 : i32
    %32 = tpu.dynamic_rotate %9 by %c127_i32 dim 1 : vector<2x128xf32>, i32 -> vector<2x128xf32>
    %33 = vector.extract_strided_slice %13 {offsets = [3, 0, 0], sizes = [1, 2, 128], strides = [1, 1, 1]} : vector<5x2x128xf32> to vector<1x2x128xf32>
    %34 = vector.shape_cast %33 : vector<1x2x128xf32> to vector<2x128xf32>
    %35 = arith.mulf %32, %34 : vector<2x128xf32>
    %36 = arith.addf %31, %35 : vector<2x128xf32>
    %c126_i32 = arith.constant 126 : i32
    %37 = tpu.dynamic_rotate %9 by %c126_i32 dim 1 : vector<2x128xf32>, i32 -> vector<2x128xf32>
    %38 = vector.extract_strided_slice %13 {offsets = [4, 0, 0], sizes = [1, 2, 128], strides = [1, 1, 1]} : vector<5x2x128xf32> to vector<1x2x128xf32>
    %39 = vector.shape_cast %38 : vector<1x2x128xf32> to vector<2x128xf32>
    %40 = arith.mulf %37, %39 : vector<2x128xf32>
    %41 = arith.addf %36, %40 : vector<2x128xf32>
    %cst_16 = arith.constant dense<0.000000e+00> : vector<128x128xf32>
    %42 = tpu.matmul %10, %41, %cst_16 {dimension_numbers = #tpu.dot_dimension_numbers<[0], [0], [1], [1], [0, 1, 1, 1], [], []>} : vector<2x128xf32>, vector<2x128xf32>, vector<128x128xf32> -> vector<128x128xf32>
    %c0_17 = arith.constant 0 : index
    %c0_18 = arith.constant 0 : index
    %c0_19 = arith.constant 0 : index
    %43 = vector.load %arg6[%c0_17, %c0_18, %c0_19] : memref<4x128x128xf32, #tpu.memory_space<vmem>>, vector<1x128x128xf32>
    %44 = vector.shape_cast %43 : vector<1x128x128xf32> to vector<128x128xf32>
    %45 = arith.addf %42, %44 : vector<128x128xf32>
    %cst_20 = arith.constant dense<0xFF800000> : vector<128xf32>
    %46 = vector.multi_reduction <maximumf>, %45, %cst_20 [0] : vector<128x128xf32> to vector<128xf32>
    %47 = vector.shape_cast %46 : vector<128xf32> to vector<1x128xf32>
    %48 = vector.broadcast %47 : vector<1x128xf32> to vector<128x128xf32>
    %49 = arith.subf %45, %48 : vector<128x128xf32>
    %50 = math.exp %49 : vector<128x128xf32>
    %cst_21 = arith.constant dense<0.000000e+00> : vector<128xf32>
    %51 = vector.multi_reduction <add>, %50, %cst_21 [0] : vector<128x128xf32> to vector<128xf32>
    %52 = vector.shape_cast %51 : vector<128xf32> to vector<1x128xf32>
    %cst_22 = arith.constant dense<0.000000e+00> : vector<8x128xf32>
    %53 = tpu.matmul %11, %50, %cst_22 {dimension_numbers = #tpu.dot_dimension_numbers<[1], [0], [0], [1], [0, 0, 1, 1], [], []>} : vector<8x128xf32>, vector<128x128xf32>, vector<8x128xf32> -> vector<8x128xf32>
    %cst_23 = arith.constant 1.000000e+00 : f32
    %54 = vector.broadcast %cst_23 : f32 to vector<1x128xf32>
    %55 = arith.divf %54, %52 : vector<1x128xf32>
    %56 = vector.broadcast %55 : vector<1x128xf32> to vector<8x128xf32>
    %57 = arith.mulf %53, %56 : vector<8x128xf32>
    %c0_24 = arith.constant 0 : index
    %c0_25 = arith.constant 0 : index
    %c0_26 = arith.constant 0 : index
    %58 = vector.load %arg7[%c0_24, %c0_25, %c0_26] : memref<4x32x8xf32, #tpu.memory_space<vmem>>, vector<1x32x8xf32>
    %59 = vector.shape_cast %58 : vector<1x32x8xf32> to vector<32x8xf32>
    %cst_27 = arith.constant 0.000000e+00 : f32
    %60 = vector.broadcast %cst_27 : f32 to vector<8x128xf32>
    %61 = arith.maximumf %57, %60 : vector<8x128xf32>
    %cst_28 = arith.constant dense<0.000000e+00> : vector<32x128xf32>
    %62 = tpu.matmul %59, %61, %cst_28 {dimension_numbers = #tpu.dot_dimension_numbers<[1], [0], [0], [1], [0, 0, 1, 1], [], []>} : vector<32x8xf32>, vector<8x128xf32>, vector<32x128xf32> -> vector<32x128xf32>
    %c0_29 = arith.constant 0 : index
    %c1 = arith.constant 1 : index
    %c0_30 = arith.constant 0 : index
    %c0_31 = arith.constant 0 : index
    %63 = vector.load %arg1[%c0_29, %c1, %c0_30, %c0_31] : memref<1x4x8x128xf32, #tpu.memory_space<vmem>>, vector<1x1x8x128xf32>
    %64 = vector.shape_cast %63 : vector<1x1x8x128xf32> to vector<8x128xf32>
    %65 = arith.addf %57, %64 : vector<8x128xf32>
    %c1_32 = arith.constant 1 : index
    %c0_33 = arith.constant 0 : index
    %c0_34 = arith.constant 0 : index
    %66 = vector.load %arg2[%c1_32, %c0_33, %c0_34] : memref<4x12x8xf32, #tpu.memory_space<vmem>>, vector<1x12x8xf32>
    %67 = vector.shape_cast %66 : vector<1x12x8xf32> to vector<12x8xf32>
    %cst_35 = arith.constant dense<0.000000e+00> : vector<12x128xf32>
    %68 = tpu.matmul %67, %65, %cst_35 {dimension_numbers = #tpu.dot_dimension_numbers<[1], [0], [0], [1], [0, 0, 1, 1], [], []>} : vector<12x8xf32>, vector<8x128xf32>, vector<12x128xf32> -> vector<12x128xf32>
    %c1_36 = arith.constant 1 : index
    %c0_37 = arith.constant 0 : index
    %c0_38 = arith.constant 0 : index
    %69 = vector.load %arg3[%c1_36, %c0_37, %c0_38] : memref<4x12x1xf32, #tpu.memory_space<vmem>>, vector<1x12x1xf32>
    %70 = vector.shape_cast %69 : vector<1x12x1xf32> to vector<12x1xf32>
    %71 = vector.broadcast %70 : vector<12x1xf32> to vector<12x128xf32>
    %72 = arith.addf %68, %71 : vector<12x128xf32>
    %73 = vector.extract_strided_slice %72 {offsets = [0, 0], sizes = [2, 128], strides = [1, 1]} : vector<12x128xf32> to vector<2x128xf32>
    %74 = vector.extract_strided_slice %72 {offsets = [2, 0], sizes = [2, 128], strides = [1, 1]} : vector<12x128xf32> to vector<2x128xf32>
    %75 = vector.extract_strided_slice %72 {offsets = [4, 0], sizes = [8, 128], strides = [1, 1]} : vector<12x128xf32> to vector<8x128xf32>
    %c1_39 = arith.constant 1 : index
    %c0_40 = arith.constant 0 : index
    %c0_41 = arith.constant 0 : index
    %c0_42 = arith.constant 0 : index
    %76 = vector.load %arg4[%c1_39, %c0_40, %c0_41, %c0_42] : memref<4x5x2x128xf32, #tpu.memory_space<vmem>>, vector<1x5x2x128xf32>
    %77 = vector.shape_cast %76 : vector<1x5x2x128xf32> to vector<5x2x128xf32>
    %c1_43 = arith.constant 1 : index
    %c0_44 = arith.constant 0 : index
    %c0_45 = arith.constant 0 : index
    %78 = vector.load %arg5[%c1_43, %c0_44, %c0_45] : memref<4x2x1xf32, #tpu.memory_space<vmem>>, vector<1x2x1xf32>
    %79 = vector.shape_cast %78 : vector<1x2x1xf32> to vector<2x1xf32>
    %80 = vector.shape_cast %79 : vector<2x1xf32> to vector<2x1xf32>
    %81 = vector.broadcast %80 : vector<2x1xf32> to vector<2x128xf32>
    %c2_i32_46 = arith.constant 2 : i32
    %82 = tpu.dynamic_rotate %73 by %c2_i32_46 dim 1 : vector<2x128xf32>, i32 -> vector<2x128xf32>
    %83 = vector.extract_strided_slice %77 {offsets = [0, 0, 0], sizes = [1, 2, 128], strides = [1, 1, 1]} : vector<5x2x128xf32> to vector<1x2x128xf32>
    %84 = vector.shape_cast %83 : vector<1x2x128xf32> to vector<2x128xf32>
    %85 = arith.mulf %82, %84 : vector<2x128xf32>
    %86 = arith.addf %81, %85 : vector<2x128xf32>
    %c1_i32_47 = arith.constant 1 : i32
    %87 = tpu.dynamic_rotate %73 by %c1_i32_47 dim 1 : vector<2x128xf32>, i32 -> vector<2x128xf32>
    %88 = vector.extract_strided_slice %77 {offsets = [1, 0, 0], sizes = [1, 2, 128], strides = [1, 1, 1]} : vector<5x2x128xf32> to vector<1x2x128xf32>
    %89 = vector.shape_cast %88 : vector<1x2x128xf32> to vector<2x128xf32>
    %90 = arith.mulf %87, %89 : vector<2x128xf32>
    %91 = arith.addf %86, %90 : vector<2x128xf32>
    %92 = vector.extract_strided_slice %77 {offsets = [2, 0, 0], sizes = [1, 2, 128], strides = [1, 1, 1]} : vector<5x2x128xf32> to vector<1x2x128xf32>
    %93 = vector.shape_cast %92 : vector<1x2x128xf32> to vector<2x128xf32>
    %94 = arith.mulf %73, %93 : vector<2x128xf32>
    %95 = arith.addf %91, %94 : vector<2x128xf32>
    %c127_i32_48 = arith.constant 127 : i32
    %96 = tpu.dynamic_rotate %73 by %c127_i32_48 dim 1 : vector<2x128xf32>, i32 -> vector<2x128xf32>
    %97 = vector.extract_strided_slice %77 {offsets = [3, 0, 0], sizes = [1, 2, 128], strides = [1, 1, 1]} : vector<5x2x128xf32> to vector<1x2x128xf32>
    %98 = vector.shape_cast %97 : vector<1x2x128xf32> to vector<2x128xf32>
    %99 = arith.mulf %96, %98 : vector<2x128xf32>
    %100 = arith.addf %95, %99 : vector<2x128xf32>
    %c126_i32_49 = arith.constant 126 : i32
    %101 = tpu.dynamic_rotate %73 by %c126_i32_49 dim 1 : vector<2x128xf32>, i32 -> vector<2x128xf32>
    %102 = vector.extract_strided_slice %77 {offsets = [4, 0, 0], sizes = [1, 2, 128], strides = [1, 1, 1]} : vector<5x2x128xf32> to vector<1x2x128xf32>
    %103 = vector.shape_cast %102 : vector<1x2x128xf32> to vector<2x128xf32>
    %104 = arith.mulf %101, %103 : vector<2x128xf32>
    %105 = arith.addf %100, %104 : vector<2x128xf32>
    %cst_50 = arith.constant dense<0.000000e+00> : vector<128x128xf32>
    %106 = tpu.matmul %74, %105, %cst_50 {dimension_numbers = #tpu.dot_dimension_numbers<[0], [0], [1], [1], [0, 1, 1, 1], [], []>} : vector<2x128xf32>, vector<2x128xf32>, vector<128x128xf32> -> vector<128x128xf32>
    %c1_51 = arith.constant 1 : index
    %c0_52 = arith.constant 0 : index
    %c0_53 = arith.constant 0 : index
    %107 = vector.load %arg6[%c1_51, %c0_52, %c0_53] : memref<4x128x128xf32, #tpu.memory_space<vmem>>, vector<1x128x128xf32>
    %108 = vector.shape_cast %107 : vector<1x128x128xf32> to vector<128x128xf32>
    %109 = arith.addf %106, %108 : vector<128x128xf32>
    %cst_54 = arith.constant dense<0xFF800000> : vector<128xf32>
    %110 = vector.multi_reduction <maximumf>, %109, %cst_54 [0] : vector<128x128xf32> to vector<128xf32>
    %111 = vector.shape_cast %110 : vector<128xf32> to vector<1x128xf32>
    %112 = vector.broadcast %111 : vector<1x128xf32> to vector<128x128xf32>
    %113 = arith.subf %109, %112 : vector<128x128xf32>
    %114 = math.exp %113 : vector<128x128xf32>
    %cst_55 = arith.constant dense<0.000000e+00> : vector<128xf32>
    %115 = vector.multi_reduction <add>, %114, %cst_55 [0] : vector<128x128xf32> to vector<128xf32>
    %116 = vector.shape_cast %115 : vector<128xf32> to vector<1x128xf32>
    %cst_56 = arith.constant dense<0.000000e+00> : vector<8x128xf32>
    %117 = tpu.matmul %75, %114, %cst_56 {dimension_numbers = #tpu.dot_dimension_numbers<[1], [0], [0], [1], [0, 0, 1, 1], [], []>} : vector<8x128xf32>, vector<128x128xf32>, vector<8x128xf32> -> vector<8x128xf32>
    %cst_57 = arith.constant 1.000000e+00 : f32
    %118 = vector.broadcast %cst_57 : f32 to vector<1x128xf32>
    %119 = arith.divf %118, %116 : vector<1x128xf32>
    %120 = vector.broadcast %119 : vector<1x128xf32> to vector<8x128xf32>
    %121 = arith.mulf %117, %120 : vector<8x128xf32>
    %c1_58 = arith.constant 1 : index
    %c0_59 = arith.constant 0 : index
    %c0_60 = arith.constant 0 : index
    %122 = vector.load %arg7[%c1_58, %c0_59, %c0_60] : memref<4x32x8xf32, #tpu.memory_space<vmem>>, vector<1x32x8xf32>
    %123 = vector.shape_cast %122 : vector<1x32x8xf32> to vector<32x8xf32>
    %cst_61 = arith.constant 0.000000e+00 : f32
    %124 = vector.broadcast %cst_61 : f32 to vector<8x128xf32>
    %125 = arith.maximumf %121, %124 : vector<8x128xf32>
    %cst_62 = arith.constant dense<0.000000e+00> : vector<32x128xf32>
    %126 = tpu.matmul %123, %125, %cst_62 {dimension_numbers = #tpu.dot_dimension_numbers<[1], [0], [0], [1], [0, 0, 1, 1], [], []>} : vector<32x8xf32>, vector<8x128xf32>, vector<32x128xf32> -> vector<32x128xf32>
    %127 = arith.addf %62, %126 : vector<32x128xf32>
    %c0_63 = arith.constant 0 : index
    %c2 = arith.constant 2 : index
    %c0_64 = arith.constant 0 : index
    %c0_65 = arith.constant 0 : index
    %128 = vector.load %arg1[%c0_63, %c2, %c0_64, %c0_65] : memref<1x4x8x128xf32, #tpu.memory_space<vmem>>, vector<1x1x8x128xf32>
    %129 = vector.shape_cast %128 : vector<1x1x8x128xf32> to vector<8x128xf32>
    %130 = arith.addf %121, %129 : vector<8x128xf32>
    %c2_66 = arith.constant 2 : index
    %c0_67 = arith.constant 0 : index
    %c0_68 = arith.constant 0 : index
    %131 = vector.load %arg2[%c2_66, %c0_67, %c0_68] : memref<4x12x8xf32, #tpu.memory_space<vmem>>, vector<1x12x8xf32>
    %132 = vector.shape_cast %131 : vector<1x12x8xf32> to vector<12x8xf32>
    %cst_69 = arith.constant dense<0.000000e+00> : vector<12x128xf32>
    %133 = tpu.matmul %132, %130, %cst_69 {dimension_numbers = #tpu.dot_dimension_numbers<[1], [0], [0], [1], [0, 0, 1, 1], [], []>} : vector<12x8xf32>, vector<8x128xf32>, vector<12x128xf32> -> vector<12x128xf32>
    %c2_70 = arith.constant 2 : index
    %c0_71 = arith.constant 0 : index
    %c0_72 = arith.constant 0 : index
    %134 = vector.load %arg3[%c2_70, %c0_71, %c0_72] : memref<4x12x1xf32, #tpu.memory_space<vmem>>, vector<1x12x1xf32>
    %135 = vector.shape_cast %134 : vector<1x12x1xf32> to vector<12x1xf32>
    %136 = vector.broadcast %135 : vector<12x1xf32> to vector<12x128xf32>
    %137 = arith.addf %133, %136 : vector<12x128xf32>
    %138 = vector.extract_strided_slice %137 {offsets = [0, 0], sizes = [2, 128], strides = [1, 1]} : vector<12x128xf32> to vector<2x128xf32>
    %139 = vector.extract_strided_slice %137 {offsets = [2, 0], sizes = [2, 128], strides = [1, 1]} : vector<12x128xf32> to vector<2x128xf32>
    %140 = vector.extract_strided_slice %137 {offsets = [4, 0], sizes = [8, 128], strides = [1, 1]} : vector<12x128xf32> to vector<8x128xf32>
    %c2_73 = arith.constant 2 : index
    %c0_74 = arith.constant 0 : index
    %c0_75 = arith.constant 0 : index
    %c0_76 = arith.constant 0 : index
    %141 = vector.load %arg4[%c2_73, %c0_74, %c0_75, %c0_76] : memref<4x5x2x128xf32, #tpu.memory_space<vmem>>, vector<1x5x2x128xf32>
    %142 = vector.shape_cast %141 : vector<1x5x2x128xf32> to vector<5x2x128xf32>
    %c2_77 = arith.constant 2 : index
    %c0_78 = arith.constant 0 : index
    %c0_79 = arith.constant 0 : index
    %143 = vector.load %arg5[%c2_77, %c0_78, %c0_79] : memref<4x2x1xf32, #tpu.memory_space<vmem>>, vector<1x2x1xf32>
    %144 = vector.shape_cast %143 : vector<1x2x1xf32> to vector<2x1xf32>
    %145 = vector.shape_cast %144 : vector<2x1xf32> to vector<2x1xf32>
    %146 = vector.broadcast %145 : vector<2x1xf32> to vector<2x128xf32>
    %c2_i32_80 = arith.constant 2 : i32
    %147 = tpu.dynamic_rotate %138 by %c2_i32_80 dim 1 : vector<2x128xf32>, i32 -> vector<2x128xf32>
    %148 = vector.extract_strided_slice %142 {offsets = [0, 0, 0], sizes = [1, 2, 128], strides = [1, 1, 1]} : vector<5x2x128xf32> to vector<1x2x128xf32>
    %149 = vector.shape_cast %148 : vector<1x2x128xf32> to vector<2x128xf32>
    %150 = arith.mulf %147, %149 : vector<2x128xf32>
    %151 = arith.addf %146, %150 : vector<2x128xf32>
    %c1_i32_81 = arith.constant 1 : i32
    %152 = tpu.dynamic_rotate %138 by %c1_i32_81 dim 1 : vector<2x128xf32>, i32 -> vector<2x128xf32>
    %153 = vector.extract_strided_slice %142 {offsets = [1, 0, 0], sizes = [1, 2, 128], strides = [1, 1, 1]} : vector<5x2x128xf32> to vector<1x2x128xf32>
    %154 = vector.shape_cast %153 : vector<1x2x128xf32> to vector<2x128xf32>
    %155 = arith.mulf %152, %154 : vector<2x128xf32>
    %156 = arith.addf %151, %155 : vector<2x128xf32>
    %157 = vector.extract_strided_slice %142 {offsets = [2, 0, 0], sizes = [1, 2, 128], strides = [1, 1, 1]} : vector<5x2x128xf32> to vector<1x2x128xf32>
    %158 = vector.shape_cast %157 : vector<1x2x128xf32> to vector<2x128xf32>
    %159 = arith.mulf %138, %158 : vector<2x128xf32>
    %160 = arith.addf %156, %159 : vector<2x128xf32>
    %c127_i32_82 = arith.constant 127 : i32
    %161 = tpu.dynamic_rotate %138 by %c127_i32_82 dim 1 : vector<2x128xf32>, i32 -> vector<2x128xf32>
    %162 = vector.extract_strided_slice %142 {offsets = [3, 0, 0], sizes = [1, 2, 128], strides = [1, 1, 1]} : vector<5x2x128xf32> to vector<1x2x128xf32>
    %163 = vector.shape_cast %162 : vector<1x2x128xf32> to vector<2x128xf32>
    %164 = arith.mulf %161, %163 : vector<2x128xf32>
    %165 = arith.addf %160, %164 : vector<2x128xf32>
    %c126_i32_83 = arith.constant 126 : i32
    %166 = tpu.dynamic_rotate %138 by %c126_i32_83 dim 1 : vector<2x128xf32>, i32 -> vector<2x128xf32>
    %167 = vector.extract_strided_slice %142 {offsets = [4, 0, 0], sizes = [1, 2, 128], strides = [1, 1, 1]} : vector<5x2x128xf32> to vector<1x2x128xf32>
    %168 = vector.shape_cast %167 : vector<1x2x128xf32> to vector<2x128xf32>
    %169 = arith.mulf %166, %168 : vector<2x128xf32>
    %170 = arith.addf %165, %169 : vector<2x128xf32>
    %cst_84 = arith.constant dense<0.000000e+00> : vector<128x128xf32>
    %171 = tpu.matmul %139, %170, %cst_84 {dimension_numbers = #tpu.dot_dimension_numbers<[0], [0], [1], [1], [0, 1, 1, 1], [], []>} : vector<2x128xf32>, vector<2x128xf32>, vector<128x128xf32> -> vector<128x128xf32>
    %c2_85 = arith.constant 2 : index
    %c0_86 = arith.constant 0 : index
    %c0_87 = arith.constant 0 : index
    %172 = vector.load %arg6[%c2_85, %c0_86, %c0_87] : memref<4x128x128xf32, #tpu.memory_space<vmem>>, vector<1x128x128xf32>
    %173 = vector.shape_cast %172 : vector<1x128x128xf32> to vector<128x128xf32>
    %174 = arith.addf %171, %173 : vector<128x128xf32>
    %cst_88 = arith.constant dense<0xFF800000> : vector<128xf32>
    %175 = vector.multi_reduction <maximumf>, %174, %cst_88 [0] : vector<128x128xf32> to vector<128xf32>
    %176 = vector.shape_cast %175 : vector<128xf32> to vector<1x128xf32>
    %177 = vector.broadcast %176 : vector<1x128xf32> to vector<128x128xf32>
    %178 = arith.subf %174, %177 : vector<128x128xf32>
    %179 = math.exp %178 : vector<128x128xf32>
    %cst_89 = arith.constant dense<0.000000e+00> : vector<128xf32>
    %180 = vector.multi_reduction <add>, %179, %cst_89 [0] : vector<128x128xf32> to vector<128xf32>
    %181 = vector.shape_cast %180 : vector<128xf32> to vector<1x128xf32>
    %cst_90 = arith.constant dense<0.000000e+00> : vector<8x128xf32>
    %182 = tpu.matmul %140, %179, %cst_90 {dimension_numbers = #tpu.dot_dimension_numbers<[1], [0], [0], [1], [0, 0, 1, 1], [], []>} : vector<8x128xf32>, vector<128x128xf32>, vector<8x128xf32> -> vector<8x128xf32>
    %cst_91 = arith.constant 1.000000e+00 : f32
    %183 = vector.broadcast %cst_91 : f32 to vector<1x128xf32>
    %184 = arith.divf %183, %181 : vector<1x128xf32>
    %185 = vector.broadcast %184 : vector<1x128xf32> to vector<8x128xf32>
    %186 = arith.mulf %182, %185 : vector<8x128xf32>
    %c2_92 = arith.constant 2 : index
    %c0_93 = arith.constant 0 : index
    %c0_94 = arith.constant 0 : index
    %187 = vector.load %arg7[%c2_92, %c0_93, %c0_94] : memref<4x32x8xf32, #tpu.memory_space<vmem>>, vector<1x32x8xf32>
    %188 = vector.shape_cast %187 : vector<1x32x8xf32> to vector<32x8xf32>
    %cst_95 = arith.constant 0.000000e+00 : f32
    %189 = vector.broadcast %cst_95 : f32 to vector<8x128xf32>
    %190 = arith.maximumf %186, %189 : vector<8x128xf32>
    %cst_96 = arith.constant dense<0.000000e+00> : vector<32x128xf32>
    %191 = tpu.matmul %188, %190, %cst_96 {dimension_numbers = #tpu.dot_dimension_numbers<[1], [0], [0], [1], [0, 0, 1, 1], [], []>} : vector<32x8xf32>, vector<8x128xf32>, vector<32x128xf32> -> vector<32x128xf32>
    %192 = arith.addf %127, %191 : vector<32x128xf32>
    %c0_97 = arith.constant 0 : index
    %c3 = arith.constant 3 : index
    %c0_98 = arith.constant 0 : index
    %c0_99 = arith.constant 0 : index
    %193 = vector.load %arg1[%c0_97, %c3, %c0_98, %c0_99] : memref<1x4x8x128xf32, #tpu.memory_space<vmem>>, vector<1x1x8x128xf32>
    %194 = vector.shape_cast %193 : vector<1x1x8x128xf32> to vector<8x128xf32>
    %195 = arith.addf %186, %194 : vector<8x128xf32>
    %c3_100 = arith.constant 3 : index
    %c0_101 = arith.constant 0 : index
    %c0_102 = arith.constant 0 : index
    %196 = vector.load %arg2[%c3_100, %c0_101, %c0_102] : memref<4x12x8xf32, #tpu.memory_space<vmem>>, vector<1x12x8xf32>
    %197 = vector.shape_cast %196 : vector<1x12x8xf32> to vector<12x8xf32>
    %cst_103 = arith.constant dense<0.000000e+00> : vector<12x128xf32>
    %198 = tpu.matmul %197, %195, %cst_103 {dimension_numbers = #tpu.dot_dimension_numbers<[1], [0], [0], [1], [0, 0, 1, 1], [], []>} : vector<12x8xf32>, vector<8x128xf32>, vector<12x128xf32> -> vector<12x128xf32>
    %c3_104 = arith.constant 3 : index
    %c0_105 = arith.constant 0 : index
    %c0_106 = arith.constant 0 : index
    %199 = vector.load %arg3[%c3_104, %c0_105, %c0_106] : memref<4x12x1xf32, #tpu.memory_space<vmem>>, vector<1x12x1xf32>
    %200 = vector.shape_cast %199 : vector<1x12x1xf32> to vector<12x1xf32>
    %201 = vector.broadcast %200 : vector<12x1xf32> to vector<12x128xf32>
    %202 = arith.addf %198, %201 : vector<12x128xf32>
    %203 = vector.extract_strided_slice %202 {offsets = [0, 0], sizes = [2, 128], strides = [1, 1]} : vector<12x128xf32> to vector<2x128xf32>
    %204 = vector.extract_strided_slice %202 {offsets = [2, 0], sizes = [2, 128], strides = [1, 1]} : vector<12x128xf32> to vector<2x128xf32>
    %205 = vector.extract_strided_slice %202 {offsets = [4, 0], sizes = [8, 128], strides = [1, 1]} : vector<12x128xf32> to vector<8x128xf32>
    %c3_107 = arith.constant 3 : index
    %c0_108 = arith.constant 0 : index
    %c0_109 = arith.constant 0 : index
    %c0_110 = arith.constant 0 : index
    %206 = vector.load %arg4[%c3_107, %c0_108, %c0_109, %c0_110] : memref<4x5x2x128xf32, #tpu.memory_space<vmem>>, vector<1x5x2x128xf32>
    %207 = vector.shape_cast %206 : vector<1x5x2x128xf32> to vector<5x2x128xf32>
    %c3_111 = arith.constant 3 : index
    %c0_112 = arith.constant 0 : index
    %c0_113 = arith.constant 0 : index
    %208 = vector.load %arg5[%c3_111, %c0_112, %c0_113] : memref<4x2x1xf32, #tpu.memory_space<vmem>>, vector<1x2x1xf32>
    %209 = vector.shape_cast %208 : vector<1x2x1xf32> to vector<2x1xf32>
    %210 = vector.shape_cast %209 : vector<2x1xf32> to vector<2x1xf32>
    %211 = vector.broadcast %210 : vector<2x1xf32> to vector<2x128xf32>
    %c2_i32_114 = arith.constant 2 : i32
    %212 = tpu.dynamic_rotate %203 by %c2_i32_114 dim 1 : vector<2x128xf32>, i32 -> vector<2x128xf32>
    %213 = vector.extract_strided_slice %207 {offsets = [0, 0, 0], sizes = [1, 2, 128], strides = [1, 1, 1]} : vector<5x2x128xf32> to vector<1x2x128xf32>
    %214 = vector.shape_cast %213 : vector<1x2x128xf32> to vector<2x128xf32>
    %215 = arith.mulf %212, %214 : vector<2x128xf32>
    %216 = arith.addf %211, %215 : vector<2x128xf32>
    %c1_i32_115 = arith.constant 1 : i32
    %217 = tpu.dynamic_rotate %203 by %c1_i32_115 dim 1 : vector<2x128xf32>, i32 -> vector<2x128xf32>
    %218 = vector.extract_strided_slice %207 {offsets = [1, 0, 0], sizes = [1, 2, 128], strides = [1, 1, 1]} : vector<5x2x128xf32> to vector<1x2x128xf32>
    %219 = vector.shape_cast %218 : vector<1x2x128xf32> to vector<2x128xf32>
    %220 = arith.mulf %217, %219 : vector<2x128xf32>
    %221 = arith.addf %216, %220 : vector<2x128xf32>
    %222 = vector.extract_strided_slice %207 {offsets = [2, 0, 0], sizes = [1, 2, 128], strides = [1, 1, 1]} : vector<5x2x128xf32> to vector<1x2x128xf32>
    %223 = vector.shape_cast %222 : vector<1x2x128xf32> to vector<2x128xf32>
    %224 = arith.mulf %203, %223 : vector<2x128xf32>
    %225 = arith.addf %221, %224 : vector<2x128xf32>
    %c127_i32_116 = arith.constant 127 : i32
    %226 = tpu.dynamic_rotate %203 by %c127_i32_116 dim 1 : vector<2x128xf32>, i32 -> vector<2x128xf32>
    %227 = vector.extract_strided_slice %207 {offsets = [3, 0, 0], sizes = [1, 2, 128], strides = [1, 1, 1]} : vector<5x2x128xf32> to vector<1x2x128xf32>
    %228 = vector.shape_cast %227 : vector<1x2x128xf32> to vector<2x128xf32>
    %229 = arith.mulf %226, %228 : vector<2x128xf32>
    %230 = arith.addf %225, %229 : vector<2x128xf32>
    %c126_i32_117 = arith.constant 126 : i32
    %231 = tpu.dynamic_rotate %203 by %c126_i32_117 dim 1 : vector<2x128xf32>, i32 -> vector<2x128xf32>
    %232 = vector.extract_strided_slice %207 {offsets = [4, 0, 0], sizes = [1, 2, 128], strides = [1, 1, 1]} : vector<5x2x128xf32> to vector<1x2x128xf32>
    %233 = vector.shape_cast %232 : vector<1x2x128xf32> to vector<2x128xf32>
    %234 = arith.mulf %231, %233 : vector<2x128xf32>
    %235 = arith.addf %230, %234 : vector<2x128xf32>
    %cst_118 = arith.constant dense<0.000000e+00> : vector<128x128xf32>
    %236 = tpu.matmul %204, %235, %cst_118 {dimension_numbers = #tpu.dot_dimension_numbers<[0], [0], [1], [1], [0, 1, 1, 1], [], []>} : vector<2x128xf32>, vector<2x128xf32>, vector<128x128xf32> -> vector<128x128xf32>
    %c3_119 = arith.constant 3 : index
    %c0_120 = arith.constant 0 : index
    %c0_121 = arith.constant 0 : index
    %237 = vector.load %arg6[%c3_119, %c0_120, %c0_121] : memref<4x128x128xf32, #tpu.memory_space<vmem>>, vector<1x128x128xf32>
    %238 = vector.shape_cast %237 : vector<1x128x128xf32> to vector<128x128xf32>
    %239 = arith.addf %236, %238 : vector<128x128xf32>
    %cst_122 = arith.constant dense<0xFF800000> : vector<128xf32>
    %240 = vector.multi_reduction <maximumf>, %239, %cst_122 [0] : vector<128x128xf32> to vector<128xf32>
    %241 = vector.shape_cast %240 : vector<128xf32> to vector<1x128xf32>
    %242 = vector.broadcast %241 : vector<1x128xf32> to vector<128x128xf32>
    %243 = arith.subf %239, %242 : vector<128x128xf32>
    %244 = math.exp %243 : vector<128x128xf32>
    %cst_123 = arith.constant dense<0.000000e+00> : vector<128xf32>
    %245 = vector.multi_reduction <add>, %244, %cst_123 [0] : vector<128x128xf32> to vector<128xf32>
    %246 = vector.shape_cast %245 : vector<128xf32> to vector<1x128xf32>
    %cst_124 = arith.constant dense<0.000000e+00> : vector<8x128xf32>
    %247 = tpu.matmul %205, %244, %cst_124 {dimension_numbers = #tpu.dot_dimension_numbers<[1], [0], [0], [1], [0, 0, 1, 1], [], []>} : vector<8x128xf32>, vector<128x128xf32>, vector<8x128xf32> -> vector<8x128xf32>
    %cst_125 = arith.constant 1.000000e+00 : f32
    %248 = vector.broadcast %cst_125 : f32 to vector<1x128xf32>
    %249 = arith.divf %248, %246 : vector<1x128xf32>
    %250 = vector.broadcast %249 : vector<1x128xf32> to vector<8x128xf32>
    %251 = arith.mulf %247, %250 : vector<8x128xf32>
    %c3_126 = arith.constant 3 : index
    %c0_127 = arith.constant 0 : index
    %c0_128 = arith.constant 0 : index
    %252 = vector.load %arg7[%c3_126, %c0_127, %c0_128] : memref<4x32x8xf32, #tpu.memory_space<vmem>>, vector<1x32x8xf32>
    %253 = vector.shape_cast %252 : vector<1x32x8xf32> to vector<32x8xf32>
    %cst_129 = arith.constant 0.000000e+00 : f32
    %254 = vector.broadcast %cst_129 : f32 to vector<8x128xf32>
    %255 = arith.maximumf %251, %254 : vector<8x128xf32>
    %cst_130 = arith.constant dense<0.000000e+00> : vector<32x128xf32>
    %256 = tpu.matmul %253, %255, %cst_130 {dimension_numbers = #tpu.dot_dimension_numbers<[1], [0], [0], [1], [0, 0, 1, 1], [], []>} : vector<32x8xf32>, vector<8x128xf32>, vector<32x128xf32> -> vector<32x128xf32>
    %257 = arith.addf %192, %256 : vector<32x128xf32>
    %c0_131 = arith.constant 0 : index
    %c0_132 = arith.constant 0 : index
    %258 = vector.load %arg8[%c0_131, %c0_132] : memref<32x1xf32, #tpu.memory_space<vmem>>, vector<32x1xf32>
    %259 = vector.broadcast %258 : vector<32x1xf32> to vector<32x128xf32>
    %260 = arith.addf %257, %259 : vector<32x128xf32>
    %c0_133 = arith.constant 0 : index
    %c0_134 = arith.constant 0 : index
    %c0_135 = arith.constant 0 : index
    %261 = vector.load %arg9[%c0_133, %c0_134, %c0_135] : memref<1x32x128xf32, #tpu.memory_space<vmem>>, vector<1x32x128xf32>
    %262 = vector.shape_cast %261 : vector<1x32x128xf32> to vector<32x128xf32>
    %263 = vector.shape_cast %260 : vector<32x128xf32> to vector<1x32x128xf32>
    tpu.vector_store %arg9[%c0_133, %c0_134, %c0_135], %263 {strides = array<i32>} : memref<1x32x128xf32, #tpu.memory_space<vmem>>, vector<1x32x128xf32>,
    return
  }
  func.func @transform_0(%arg0: i32) -> (i32, i32, i32, i32) {
    %c0_i32 = arith.constant 0 : i32
    %c0_i32_0 = arith.constant 0 : i32
    %c0_i32_1 = arith.constant 0 : i32
    %c0_i32_2 = arith.constant 0 : i32
    return %arg0, %c0_i32, %c0_i32_0, %c0_i32_1 : i32, i32, i32, i32
  }
  func.func @transform_1(%arg0: i32) -> (i32, i32, i32) {
    %c0_i32 = arith.constant 0 : i32
    %c0_i32_0 = arith.constant 0 : i32
    %c0_i32_1 = arith.constant 0 : i32
    %c0_i32_2 = arith.constant 0 : i32
    return %c0_i32, %c0_i32_0, %c0_i32_1 : i32, i32, i32
  }
  func.func @transform_2(%arg0: i32) -> (i32, i32, i32) {
    %c0_i32 = arith.constant 0 : i32
    %c0_i32_0 = arith.constant 0 : i32
    %c0_i32_1 = arith.constant 0 : i32
    %c0_i32_2 = arith.constant 0 : i32
    return %c0_i32, %c0_i32_0, %c0_i32_1 : i32, i32, i32
  }
  func.func @transform_3(%arg0: i32) -> (i32, i32, i32, i32) {
    %c0_i32 = arith.constant 0 : i32
    %c0_i32_0 = arith.constant 0 : i32
    %c0_i32_1 = arith.constant 0 : i32
    %c0_i32_2 = arith.constant 0 : i32
    %c0_i32_3 = arith.constant 0 : i32
    return %c0_i32, %c0_i32_0, %c0_i32_1, %c0_i32_2 : i32, i32, i32, i32
  }
  func.func @transform_4(%arg0: i32) -> (i32, i32, i32) {
    %c0_i32 = arith.constant 0 : i32
    %c0_i32_0 = arith.constant 0 : i32
    %c0_i32_1 = arith.constant 0 : i32
    %c0_i32_2 = arith.constant 0 : i32
    return %c0_i32, %c0_i32_0, %c0_i32_1 : i32, i32, i32
  }
  func.func @transform_5(%arg0: i32) -> (i32, i32, i32) {
    %c0_i32 = arith.constant 0 : i32
    %c0_i32_0 = arith.constant 0 : i32
    %c0_i32_1 = arith.constant 0 : i32
    %c0_i32_2 = arith.constant 0 : i32
    return %c0_i32, %c0_i32_0, %c0_i32_1 : i32, i32, i32
  }
  func.func @transform_6(%arg0: i32) -> (i32, i32, i32) {
    %c0_i32 = arith.constant 0 : i32
    %c0_i32_0 = arith.constant 0 : i32
    %c0_i32_1 = arith.constant 0 : i32
    %c0_i32_2 = arith.constant 0 : i32
    return %c0_i32, %c0_i32_0, %c0_i32_1 : i32, i32, i32
  }
  func.func @transform_7(%arg0: i32) -> (i32, i32) {
    %c0_i32 = arith.constant 0 : i32
    %c0_i32_0 = arith.constant 0 : i32
    %c0_i32_1 = arith.constant 0 : i32
    return %c0_i32, %c0_i32_0 : i32, i32
  }
  func.func @transform_8(%arg0: i32) -> (i32, i32, i32) {
    %c0_i32 = arith.constant 0 : i32
    %c0_i32_0 = arith.constant 0 : i32
    %c0_i32_1 = arith.constant 0 : i32
    return %arg0, %c0_i32, %c0_i32_0 : i32, i32, i32
  }
}

</mosaic_0001>

<llo_original>
// kernel: tpu_custom_call.1
$region0: #{tpu_custom_call.1}
  #allocation0 [shape = 'u32[]', space=smem, size = 0x4, offset = 0x4, fixed_abs, tag = 'smem constant byte address 0x4 - core index']
  #allocation1 [shape = 'u32[144,128]{1,0:T(1,128)}', space=vmem, size = 0x12000, scoped, tag = 'internal scratch']
  %s0 = inlined_call_operand.vmem [shape: f32[2,4,8,128], index: 0, kind: input, shape index: {}]
  %s1 = inlined_call_operand.vmem [shape: f32[4,12,8], index: 1, kind: input, shape index: {}]
  %s2 = inlined_call_operand.vmem [shape: f32[4,12,1], index: 2, kind: input, shape index: {}]
  %s3 = inlined_call_operand.vmem [shape: f32[4,5,2,128], index: 3, kind: input, shape index: {}]
  %s4 = inlined_call_operand.vmem [shape: f32[4,2,1], index: 4, kind: input, shape index: {}]
  %s5 = inlined_call_operand.hbm [shape: f32[4,128,128], index: 5, kind: input, shape index: {}]
  %s6 = inlined_call_operand.vmem [shape: f32[4,32,8], index: 6, kind: input, shape index: {}]
  %s7 = inlined_call_operand.vmem [shape: f32[32,1], index: 7, kind: input, shape index: {}]
  %s8 = inlined_call_operand.hbm [shape: f32[2,32,128], index: 8, kind: output, shape index: {}]
  %s9 = sld [smem:[#allocation0]]
  $region69: #{tpu_custom_call.1} parent=0
    _
  %s11 = ssub.s32 1, %s9
  %s12 = scalar_select 0, %s11, %s9
  $region1: #{tpu_custom_call.1} parent=0
    #allocation2 [shape = 'u8[262144]{0}', space=vmem, size = 0x40000, scoped, tag = 'input window, operand 5, single buffered']
    #allocation3 [shape = 's32[2]{0}', space=sflag, size = 0x8, scoped, tag = 'scoped memory for tpu_custom_call.1']
    #allocation4 [shape = 's32[2]{0}', space=sflag, size = 0x8, scoped, tag = 'scoped memory for tpu_custom_call.1']
    #allocation5 [shape = 'u8[32768]{0}', space=vmem, size = 0x8000, scoped, tag = 'output window, operand 0']
    %13 = vsyncpa [#allocation3], 0
    %14 = vsyncpa [#allocation4], 0
    %s15 = scalar_lea.sflag [#allocation4], 1
    %16 = vsyncpa %s15, 0
    loop: start=0, step=1, limit=4
    $region2: #{tpu_custom_call.1} parent=1 // loop_pre_header
      _
    $region3: #{tpu_custom_call.1} parent=1 // loop_header
      %s18 = sphi 0, %s22
      %p19 = scmp.ge.s32.totalorder %s18, 4
      %s28 = sphi 0, %s30
      %s31 = sphi 0, %s28
      %s32 = sphi 0, %s31
      %s48 = sphi 0, %s32
      %s52 = sphi 0, %s52
      %s54 = sphi 0, %s52
      %s55 = sphi 0, %s54
      %s69 = sphi 0, %s55
      %s73 = sphi 0, %s73
      %s75 = sphi 0, %s73
      %s76 = sphi 0, %s75
      %s90 = sphi 0, %s76
      %s94 = sphi 0, %s94
      %s96 = sphi 0, %s94
      %s97 = sphi 0, %s96
      %s111 = sphi 0, %s97
      %s115 = sphi 0, %s115
      %s117 = sphi 0, %s115
      %s118 = sphi 0, %s117
      %s132 = sphi 0, %s118
      %s136 = sphi 0, %s136
      %s138 = sphi 0, %s136
      %s139 = sphi 0, %s138
      %s153 = sphi 0, %s139
      %s157 = sphi 0, %s157
      %s159 = sphi 0, %s157
      %s160 = sphi 0, %s159
      %s174 = sphi 0, %s160
      %s178 = sphi 0, %s178
      %s180 = sphi 0, %s178
      %s181 = sphi 0, %s180
      %s195 = sphi 0, %s181
      %s201 = sphi 0, %s203
      %s204 = sphi 0, %s201
      %s205 = sphi 0, %s204
      %s221 = sphi 0, %s205
    $region4: #{tpu_custom_call.1} parent=1 // loop_header_branch
      %21 = sbr.rel (%p19) target = $region8
    $region5: #{tpu_custom_call.1} parent=1 // loop_body
      %s23 = ssub.s32 %s18, 1
      %s24 = ssub.s32 %s18, 2
      %s25 = sadd.s32 %s18, 1
      %s26 = ssub.s32 %s18, %s25
      %p27 = scmp.eq.s32.totalorder %s26, 0
      %s29 = sadd.s32 %s28, 1
      %s30 = scalar_select %p27, %s28, %s29
      %p33 = pneg %p27
      %p34 = scmp.eq.s32.totalorder %s18, 1
      %p35 = por %p33, %p34
      %p36 = scmp.ne.s32.totalorder %s28, %s31
      %p37 = scmp.eq.s32.totalorder %s18, 0
      %p38 = por %p36, %p37
      %p39 = scmp.ne.s32.totalorder %s28, %s31
      %p40 = scmp.eq.s32.totalorder %s23, 1
      %p41 = por %p39, %p40
      %p42 = scmp.ne.s32.totalorder %s31, %s32
      %p43 = scmp.eq.s32.totalorder %s23, 0
      %p44 = por %p42, %p43
      %p45 = scmp.ne.s32.totalorder %s31, %s32
      %p46 = scmp.eq.s32.totalorder %s24, 1
      %p47 = por %p45, %p46
      %p49 = scmp.ne.s32.totalorder %s32, %s48
      %p50 = scmp.eq.s32.totalorder %s24, 0
      %p51 = por %p49, %p50
      %s53 = sadd.s32 %s52, 1
      %p56 = scmp.eq.s32.totalorder %s18, 1
      %p57 = scmp.ne.s32.totalorder %s52, %s54
      %p58 = scmp.eq.s32.totalorder %s18, 0
      %p59 = por %p57, %p58
      %p60 = scmp.ne.s32.totalorder %s52, %s54
      %p61 = scmp.eq.s32.totalorder %s23, 1
      %p62 = por %p60, %p61
      %p63 = scmp.ne.s32.totalorder %s54, %s55
      %p64 = scmp.eq.s32.totalorder %s23, 0
      %p65 = por %p63, %p64
      %p66 = scmp.ne.s32.totalorder %s54, %s55
      %p67 = scmp.eq.s32.totalorder %s24, 1
      %p68 = por %p66, %p67
      %p70 = scmp.ne.s32.totalorder %s55, %s69
      %p71 = scmp.eq.s32.totalorder %s24, 0
      %p72 = por %p70, %p71
      %s74 = sadd.s32 %s73, 1
      %p77 = scmp.eq.s32.totalorder %s18, 1
      %p78 = scmp.ne.s32.totalorder %s73, %s75
      %p79 = scmp.eq.s32.totalorder %s18, 0
      %p80 = por %p78, %p79
      %p81 = scmp.ne.s32.totalorder %s73, %s75
      %p82 = scmp.eq.s32.totalorder %s23, 1
      %p83 = por %p81, %p82
      %p84 = scmp.ne.s32.totalorder %s75, %s76
      %p85 = scmp.eq.s32.totalorder %s23, 0
      %p86 = por %p84, %p85
      %p87 = scmp.ne.s32.totalorder %s75, %s76
      %p88 = scmp.eq.s32.totalorder %s24, 1
      %p89 = por %p87, %p88
      %p91 = scmp.ne.s32.totalorder %s76, %s90
      %p92 = scmp.eq.s32.totalorder %s24, 0
      %p93 = por %p91, %p92
      %s95 = sadd.s32 %s94, 1
      %p98 = scmp.eq.s32.totalorder %s18, 1
      %p99 = scmp.ne.s32.totalorder %s94, %s96
      %p100 = scmp.eq.s32.totalorder %s18, 0
      %p101 = por %p99, %p100
      %p102 = scmp.ne.s32.totalorder %s94, %s96
      %p103 = scmp.eq.s32.totalorder %s23, 1
      %p104 = por %p102, %p103
      %p105 = scmp.ne.s32.totalorder %s96, %s97
      %p106 = scmp.eq.s32.totalorder %s23, 0
      %p107 = por %p105, %p106
      %p108 = scmp.ne.s32.totalorder %s96, %s97
      %p109 = scmp.eq.s32.totalorder %s24, 1
      %p110 = por %p108, %p109
      %p112 = scmp.ne.s32.totalorder %s97, %s111
      %p113 = scmp.eq.s32.totalorder %s24, 0
      %p114 = por %p112, %p113
      %s116 = sadd.s32 %s115, 1
      %p119 = scmp.eq.s32.totalorder %s18, 1
      %p120 = scmp.ne.s32.totalorder %s115, %s117
      %p121 = scmp.eq.s32.totalorder %s18, 0
      %p122 = por %p120, %p121
      %p123 = scmp.ne.s32.totalorder %s115, %s117
      %p124 = scmp.eq.s32.totalorder %s23, 1
      %p125 = por %p123, %p124
      %p126 = scmp.ne.s32.totalorder %s117, %s118
      %p127 = scmp.eq.s32.totalorder %s23, 0
      %p128 = por %p126, %p127
      %p129 = scmp.ne.s32.totalorder %s117, %s118
      %p130 = scmp.eq.s32.totalorder %s24, 1
      %p131 = por %p129, %p130
      %p133 = scmp.ne.s32.totalorder %s118, %s132
      %p134 = scmp.eq.s32.totalorder %s24, 0
      %p135 = por %p133, %p134
      %s137 = sadd.s32 %s136, 1
      %p140 = scmp.eq.s32.totalorder %s18, 1
      %p141 = scmp.ne.s32.totalorder %s136, %s138
      %p142 = scmp.eq.s32.totalorder %s18, 0
      %p143 = por %p141, %p142
      %p144 = scmp.ne.s32.totalorder %s136, %s138
      %p145 = scmp.eq.s32.totalorder %s23, 1
      %p146 = por %p144, %p145
      %p147 = scmp.ne.s32.totalorder %s138, %s139
      %p148 = scmp.eq.s32.totalorder %s23, 0
      %p149 = por %p147, %p148
      %p150 = scmp.ne.s32.totalorder %s138, %s139
      %p151 = scmp.eq.s32.totalorder %s24, 1
      %p152 = por %p150, %p151
      %p154 = scmp.ne.s32.totalorder %s139, %s153
      %p155 = scmp.eq.s32.totalorder %s24, 0
      %p156 = por %p154, %p155
      %s158 = sadd.s32 %s157, 1
      %p161 = scmp.eq.s32.totalorder %s18, 1
      %p162 = scmp.ne.s32.totalorder %s157, %s159
      %p163 = scmp.eq.s32.totalorder %s18, 0
      %p164 = por %p162, %p163
      %p165 = scmp.ne.s32.totalorder %s157, %s159
      %p166 = scmp.eq.s32.totalorder %s23, 1
      %p167 = por %p165, %p166
      %p168 = scmp.ne.s32.totalorder %s159, %s160
      %p169 = scmp.eq.s32.totalorder %s23, 0
      %p170 = por %p168, %p169
      %p171 = scmp.ne.s32.totalorder %s159, %s160
      %p172 = scmp.eq.s32.totalorder %s24, 1
      %p173 = por %p171, %p172
      %p175 = scmp.ne.s32.totalorder %s160, %s174
      %p176 = scmp.eq.s32.totalorder %s24, 0
      %p177 = por %p175, %p176
      %s179 = sadd.s32 %s178, 1
      %p182 = scmp.eq.s32.totalorder %s18, 1
      %p183 = scmp.ne.s32.totalorder %s178, %s180
      %p184 = scmp.eq.s32.totalorder %s18, 0
      %p185 = por %p183, %p184
      %p186 = scmp.ne.s32.totalorder %s178, %s180
      %p187 = scmp.eq.s32.totalorder %s23, 1
      %p188 = por %p186, %p187
      %p189 = scmp.ne.s32.totalorder %s180, %s181
      %p190 = scmp.eq.s32.totalorder %s23, 0
      %p191 = por %p189, %p190
      %p192 = scmp.ne.s32.totalorder %s180, %s181
      %p193 = scmp.eq.s32.totalorder %s24, 1
      %p194 = por %p192, %p193
      %p196 = scmp.ne.s32.totalorder %s181, %s195
      %p197 = scmp.eq.s32.totalorder %s24, 0
      %p198 = por %p196, %p197
      %s199 = ssub.s32 %s18, %s25
      %p200 = scmp.eq.s32.totalorder %s199, 0
      %s202 = sadd.s32 %s201, 1
      %s203 = scalar_select %p200, %s201, %s202
      %p206 = pneg %p200
      %p207 = scmp.eq.s32.totalorder %s18, 1
      %p208 = por %p206, %p207
      %p209 = scmp.ne.s32.totalorder %s201, %s204
      %p210 = scmp.eq.s32.totalorder %s18, 0
      %p211 = por %p209, %p210
      %p212 = scmp.ne.s32.totalorder %s201, %s204
      %p213 = scmp.eq.s32.totalorder %s23, 1
      %p214 = por %p212, %p213
      %p215 = scmp.ne.s32.totalorder %s204, %s205
      %p216 = scmp.eq.s32.totalorder %s23, 0
      %p217 = por %p215, %p216
      %p218 = scmp.ne.s32.totalorder %s204, %s205
      %p219 = scmp.eq.s32.totalorder %s24, 1
      %p220 = por %p218, %p219
      %p222 = scmp.ne.s32.totalorder %s205, %s221
      %p223 = scmp.eq.s32.totalorder %s24, 0
      %p224 = por %p222, %p223
      %p225 = scmp.le.s32.totalorder 1, %s18
      %p226 = scmp.lt.s32.totalorder %s18, 3
      %p227 = pnand %p225, %p226
      %p228 = pneg %p227
      // Predicated region
      $region9: #{tpu_custom_call.1} parent=5 // pred_check
        _
      $region10: #{tpu_custom_call.1} parent=5 // pred_check_branch
        %230 = sbr.rel (%p227) target = $region12
      $region11: #{tpu_custom_call.1} parent=5 // pred_region
        %s231 = ssub.s32 %s18, 1
        // Predicated region
        $region13: #{tpu_custom_call.1} parent=11 // pred_check
          %p232 = pneg %p65
        $region14: #{tpu_custom_call.1} parent=11 // pred_check_branch
          %234 = sbr.rel (%p232) target = $region16
        $region15: #{tpu_custom_call.1} parent=11 // pred_region
          _
        $region16: #{tpu_custom_call.1} parent=11 // pred_fallthru
          _
        // Predicated region
        $region17: #{tpu_custom_call.1} parent=11 // pred_check
          %p235 = pneg %p86
        $region18: #{tpu_custom_call.1} parent=11 // pred_check_branch
          %237 = sbr.rel (%p235) target = $region20
        $region19: #{tpu_custom_call.1} parent=11 // pred_region
          _
        $region20: #{tpu_custom_call.1} parent=11 // pred_fallthru
          _
        // Predicated region
        $region21: #{tpu_custom_call.1} parent=11 // pred_check
          %p238 = pneg %p107
        $region22: #{tpu_custom_call.1} parent=11 // pred_check_branch
          %240 = sbr.rel (%p238) target = $region24
        $region23: #{tpu_custom_call.1} parent=11 // pred_region
          _
        $region24: #{tpu_custom_call.1} parent=11 // pred_fallthru
          _
        // Predicated region
        $region25: #{tpu_custom_call.1} parent=11 // pred_check
          %p241 = pneg %p128
        $region26: #{tpu_custom_call.1} parent=11 // pred_check_branch
          %243 = sbr.rel (%p241) target = $region28
        $region27: #{tpu_custom_call.1} parent=11 // pred_region
          _
        $region28: #{tpu_custom_call.1} parent=11 // pred_fallthru
          _
        // Predicated region
        $region29: #{tpu_custom_call.1} parent=11 // pred_check
          %p244 = pneg %p149
        $region30: #{tpu_custom_call.1} parent=11 // pred_check_branch
          %246 = sbr.rel (%p244) target = $region32
        $region31: #{tpu_custom_call.1} parent=11 // pred_region
          %s248 = ssub.s32 8192, 8192
          %249 = vsyncadd [#allocation3], %s248
          %s250 = sshll.u32 [#allocation2], 4
          %s251 = int_to_ptr.vmem [resolvable:$true] %s250
          %256 = dma.hbm_to_vmem [thread:$0]  %s5, 8192, %s251, [#allocation3], 128, 128, 8
        $region32: #{tpu_custom_call.1} parent=11 // pred_fallthru
          _
        // Predicated region
        $region33: #{tpu_custom_call.1} parent=11 // pred_check
          %p257 = pneg %p170
        $region34: #{tpu_custom_call.1} parent=11 // pred_check_branch
          %259 = sbr.rel (%p257) target = $region36
        $region35: #{tpu_custom_call.1} parent=11 // pred_region
          _
        $region36: #{tpu_custom_call.1} parent=11 // pred_fallthru
          _
        // Predicated region
        $region37: #{tpu_custom_call.1} parent=11 // pred_check
          %p260 = pneg %p191
        $region38: #{tpu_custom_call.1} parent=11 // pred_check_branch
          %262 = sbr.rel (%p260) target = $region40
        $region39: #{tpu_custom_call.1} parent=11 // pred_region
          _
        $region40: #{tpu_custom_call.1} parent=11 // pred_fallthru
          _
      $region12: #{tpu_custom_call.1} parent=5 // pred_fallthru
        _
      %p263 = scmp.lt.s32.totalorder %s18, 2
      // Predicated region
      $region41: #{tpu_custom_call.1} parent=5 // pred_check
        %p264 = pneg %p263
      $region42: #{tpu_custom_call.1} parent=5 // pred_check_branch
        %266 = sbr.rel (%p264) target = $region44
      $region43: #{tpu_custom_call.1} parent=5 // pred_region
        // Predicated region
        $region45: #{tpu_custom_call.1} parent=43 // pred_check
          %p267 = pneg %p38
        $region46: #{tpu_custom_call.1} parent=43 // pred_check_branch
          %269 = sbr.rel (%p267) target = $region48
        $region47: #{tpu_custom_call.1} parent=43 // pred_region
          %p270 = scmp.lt.s32.totalorder %s18, 1
          %s271 = scalar_select %p270, %s18, 1
          %s272 = smul.addr %s271, 4
          %s273 = smul.addr %s272, 8
          %s274 = scalar_lea.vmem %s0, %s273
        $region48: #{tpu_custom_call.1} parent=43 // pred_fallthru
          _
      $region44: #{tpu_custom_call.1} parent=5 // pred_fallthru
        _
      %p275 = scmp.le.s32.totalorder 1, %s18
      %p276 = scmp.lt.s32.totalorder %s18, 3
      %p277 = pnand %p275, %p276
      %p278 = pneg %p277
      // Predicated region
      $region49: #{tpu_custom_call.1} parent=5 // pred_check
        _
      $region50: #{tpu_custom_call.1} parent=5 // pred_check_branch
        %280 = sbr.rel (%p277) target = $region52
      $region51: #{tpu_custom_call.1} parent=5 // pred_region
        %s281 = ssub.s32 %s18, 1
        // Predicated region
        $region53: #{tpu_custom_call.1} parent=51 // pred_check
          %p282 = pneg %p149
        $region54: #{tpu_custom_call.1} parent=51 // pred_check_branch
          %284 = sbr.rel (%p282) target = $region56
        $region55: #{tpu_custom_call.1} parent=51 // pred_region
          %285 = dma.done [#allocation3], 8192
        $region56: #{tpu_custom_call.1} parent=51 // pred_fallthru
          _
        %p286 = scmp.lt.s32.totalorder %s23, 1
        %s287 = scalar_select %p286, %s23, 1
        %s288 = smul.addr %s287, 4
        %s289 = smul.addr %s288, 8
        %s290 = scalar_lea.vmem %s0, %s289
        %p291 = pneg %p44
        %p292 = pneg %p41
        %p293 = pneg %p65
        %p294 = pneg %p62
        %p295 = pneg %p86
        %p296 = pneg %p83
        %p297 = pneg %p107
        %p298 = pneg %p104
        %p299 = pneg %p128
        %p300 = pneg %p125
        %p301 = pneg %p149
        %p302 = pneg %p146
        %p303 = pneg %p170
        %p304 = pneg %p167
        %p305 = pneg %p191
        %p306 = pneg %p188
        %p307 = pneg %p217
        %p308 = pneg %p214
        %s309 = sand.u32 %s204, 1
        %s310 = scalar_lea.sflag [#allocation4], %s309
        %s311 = sand.u32 %s204, 1
        %s312 = smul.addr %s311, 32
        %s313 = scalar_lea.vmem [#allocation5], %s312
        %p314 = scmp.lt.s32.totalorder %s23, 1
        %s315 = scalar_select %p314, %s23, 1
        %s316 = smul.addr %s315, 4
        %s317 = smul.addr %s316, 8
        %s318 = scalar_lea.vmem %s0, %s317
        %v319 = vld [vmem:[%s318] sm:$0xff]
        %v320 = vld [vmem:[%s1] sm:$0xff]
        %v321 = vld [vmem:[%s1 + $0x8] sm:$0xf]
        %v322 = vld [vmem:[%s2] sm:$0xff]
        %v323 = vld [vmem:[%s2 + $0x8] sm:$0xf]
        %325 = vset.pattern.permute.xlu0 0
        %326 = vperm.xlu0 %325, %v322
        %v327 = vpop.permute.xlu0 %326
        %330 = vset.pattern.permute.xlu0 0
        %331 = vperm.xlu0 %330, %v323
        %v332 = vpop.permute.xlu0 %331
        %vm334 = vcmask 64512
        %v336 = vsel %vm334, %v320, 0
        %v339 = vsel %vm334, %v321, 0
        %341 = vmatprep.subr.mxu0 0.0
        %342 = vmatpush1.msra.mxu0 0.0
        %343 = vmatprep.subr.mxu0 0.0
        %344 = vmatpush1.msra.mxu0 0.0
        %345 = vmatprep.subr.mxu0 0.0
        %346 = vmatpush1.msra.mxu0 0.0
        %347 = vmatprep.subr.mxu0 0.0
        %348 = vmatpush1.msra.mxu0 0.0
        %349 = vmatprep.subr.mxu0 0.0
        %350 = vmatpush1.msra.mxu0 0.0
        %351 = vmatprep.subr.mxu0 0.0
        %352 = vmatpush1.msra.mxu0 0.0
        %353 = vmatprep.subr.mxu0 0.0
        %354 = vmatpush1.msra.mxu0 0.0
        %355 = vmatprep.subr.mxu0 0.0
        %356 = vmatpush1.msra.mxu0 0.0
        %357 = vmatprep.subr.mxu0 0.0
        %358 = vmatpush1.msra.mxu0 0.0
        %359 = vmatprep.subr.mxu0 0.0
        %360 = vmatpush1.msra.mxu0 0.0
        %361 = vmatprep.subr.mxu0 0.0
        %362 = vmatpush1.msra.mxu0 0.0
        %363 = vmatprep.subr.mxu0 0.0
        %364 = vmatpush1.msra.mxu0 0.0
        %365 = vmatprep.subr.mxu0 0.0
        %366 = vmatpush1.msra.mxu0 0.0
        %367 = vmatprep.subr.mxu0 0.0
        %368 = vmatpush1.msra.mxu0 0.0
        %369 = vmatprep.subr.mxu0 0.0
        %370 = vmatpush1.msra.mxu0 0.0
        %371 = vmatprep.subr.mxu0 0.0
        %372 = vmatpush1.msra.mxu0 %v319
        %373 = vmatprep.subr.mxu0 0.0
        %374 = vmatpush2.msra.mxu0 0.0
        %375 = vmatprep.subr.mxu0 0.0
        %376 = vmatpush2.msra.mxu0 0.0
        %377 = vmatprep.subr.mxu0 0.0
        %378 = vmatpush2.msra.mxu0 0.0
        %379 = vmatprep.subr.mxu0 0.0
        %380 = vmatpush2.msra.mxu0 0.0
        %381 = vmatprep.subr.mxu0 0.0
        %382 = vmatpush2.msra.mxu0 0.0
        %383 = vmatprep.subr.mxu0 0.0
        %384 = vmatpush2.msra.mxu0 0.0
        %385 = vmatprep.subr.mxu0 0.0
        %386 = vmatpush2.msra.mxu0 0.0
        %387 = vmatprep.subr.mxu0 0.0
        %388 = vmatpush2.msra.mxu0 0.0
        %389 = vmatprep.subr.mxu0 0.0
        %390 = vmatpush2.msra.mxu0 0.0
        %391 = vmatprep.subr.mxu0 0.0
        %392 = vmatpush2.msra.mxu0 0.0
        %393 = vmatprep.subr.mxu0 0.0
        %394 = vmatpush2.msra.mxu0 0.0
        %395 = vmatprep.subr.mxu0 0.0
        %396 = vmatpush2.msra.mxu0 0.0
        %397 = vmatprep.subr.mxu0 0.0
        %398 = vmatpush2.msra.mxu0 0.0
        %399 = vmatprep.subr.mxu0 0.0
        %400 = vmatpush2.msra.mxu0 0.0
        %401 = vmatprep.subr.mxu0 0.0
        %402 = vmatpush2.msra.mxu0 0.0
        %403 = vmatprep.subr.mxu0 0.0
        %404 = vmatpush2.msra.mxu0 0.0
        %405 = vmatprep.mubr.f32.mxu0 0.0
        %406 = vmatmul.mubr.f32.gmra.mxu0 %v336
        %v407 = vpop.f32.mrf.mxu0
        %v408 = vadd.f32 %v327, %v407
        %v409 = vpop.f32.mrf.mxu0
        %410 = vmatprep.mubr.f32.mxu0 0.0
        %411 = vmatmul.mubr.f32.gmra.mxu0 %v339
        %v412 = vpop.f32.mrf.mxu0
        %v413 = vadd.f32 %v332, %v412
        %v414 = vpop.f32.mrf.mxu0
        %415 = vdwg.mxu0
        %v416 = vld [vmem:[%s3] sm:$0x3]
        %v417 = vld [vmem:[%s3 + $0x2] sm:$0x3]
        %v418 = vld [vmem:[%s3 + $0x4] sm:$0x3]
        %v419 = vld [vmem:[%s3 + $0x6] sm:$0x3]
        %v420 = vld [vmem:[%s3 + $0x8] sm:$0x3]
        %v421 = vld [vmem:[%s4] sm:$0x3]
        %423 = vset.pattern.permute.xlu0 0
        %424 = vperm.xlu0 %423, %v421
        %v425 = vpop.permute.xlu0 %424
        %427 = vrot.lane.b32.xlu0 %v408, 2
        %v428 = vpop.permute.xlu0 %427
        %v429 = vmul.f32 %v428, %v416
        %v430 = vadd.f32 %v425, %v429
        %431 = vrot.lane.b32.xlu0 %v408, 1
        %v432 = vpop.permute.xlu0 %431
        %v433 = vmul.f32 %v432, %v417
        %v434 = vadd.f32 %v430, %v433
        %v435 = vmul.f32 %v408, %v418
        %v436 = vadd.f32 %v434, %v435
        %437 = vrot.lane.b32.xlu0 %v408, 127
        %v438 = vpop.permute.xlu0 %437
        %v439 = vmul.f32 %v438, %v419
        %v440 = vadd.f32 %v436, %v439
        %441 = vrot.lane.b32.xlu0 %v408, 126
        %v442 = vpop.permute.xlu0 %441
        %v443 = vmul.f32 %v442, %v420
        %v444 = vadd.f32 %v440, %v443
        %v445 = vld [vmem:[#allocation2] sm:$0xff]
        %v446 = vld [vmem:[#allocation2 + $0x8] sm:$0xff]
        %v447 = vld [vmem:[#allocation2 + $0x10] sm:$0xff]
        %v448 = vld [vmem:[#allocation2 + $0x18] sm:$0xff]
        %v449 = vld [vmem:[#allocation2 + $0x20] sm:$0xff]
        %v450 = vld [vmem:[#allocation2 + $0x28] sm:$0xff]
        %v451 = vld [vmem:[#allocation2 + $0x30] sm:$0xff]
        %v452 = vld [vmem:[#allocation2 + $0x38] sm:$0xff]
        %v453 = vld [vmem:[#allocation2 + $0x40] sm:$0xff]
        %v454 = vld [vmem:[#allocation2 + $0x48] sm:$0xff]
        %v455 = vld [vmem:[#allocation2 + $0x50] sm:$0xff]
        %v456 = vld [vmem:[#allocation2 + $0x58] sm:$0xff]
        %v457 = vld [vmem:[#allocation2 + $0x60] sm:$0xff]
        %v458 = vld [vmem:[#allocation2 + $0x68] sm:$0xff]
        %v459 = vld [vmem:[#allocation2 + $0x70] sm:$0xff]
        %v460 = vld [vmem:[#allocation2 + $0x78] sm:$0xff]
        %v462 = vrot.slane %v408, 2
        %464 = vxpose.xlu0.b32.start [1/16] %v462, 128
        %465 = vxpose.xlu0.b32.cont [2/16] 0.0, 128
        %466 = vxpose.xlu0.b32.cont [3/16] 0.0, 128
        %467 = vxpose.xlu0.b32.cont [4/16] 0.0, 128
        %468 = vxpose.xlu0.b32.cont [5/16] 0.0, 128
        %469 = vxpose.xlu0.b32.cont [6/16] 0.0, 128
        %470 = vxpose.xlu0.b32.cont [7/16] 0.0, 128
        %471 = vxpose.xlu0.b32.cont [8/16] 0.0, 128
        %472 = vxpose.xlu0.b32.cont [9/16] 0.0, 128
        %473 = vxpose.xlu0.b32.cont [10/16] 0.0, 128
        %474 = vxpose.xlu0.b32.cont [11/16] 0.0, 128
        %475 = vxpose.xlu0.b32.cont [12/16] 0.0, 128
        %476 = vxpose.xlu0.b32.cont [13/16] 0.0, 128
        %477 = vxpose.xlu0.b32.cont [14/16] 0.0, 128
        %478 = vxpose.xlu0.b32.cont [15/16] 0.0, 128
        %479 = vxpose.xlu0.b32.end [16/16] 0.0, 128
        %v480 = vpop.trf.xlu0
        %v481 = vpop.trf.xlu0
        %v482 = vpop.trf.xlu0
        %v483 = vpop.trf.xlu0
        %v484 = vpop.trf.xlu0
        %v485 = vpop.trf.xlu0
        %v486 = vpop.trf.xlu0
        %v487 = vpop.trf.xlu0
        %v488 = vpop.trf.xlu0
        %v489 = vpop.trf.xlu0
        %v490 = vpop.trf.xlu0
        %v491 = vpop.trf.xlu0
        %v492 = vpop.trf.xlu0
        %v493 = vpop.trf.xlu0
        %v494 = vpop.trf.xlu0
        %v495 = vpop.trf.xlu0
        %vm496 = vcmask 15360
        %v498 = vsel %vm496, %v480, 0
        %v501 = vsel %vm496, %v481, 0
        %v504 = vsel %vm496, %v482, 0
        %v507 = vsel %vm496, %v483, 0
        %v510 = vsel %vm496, %v484, 0
        %v513 = vsel %vm496, %v485, 0
        %v516 = vsel %vm496, %v486, 0
        %v519 = vsel %vm496, %v487, 0
        %v522 = vsel %vm496, %v488, 0
        %v525 = vsel %vm496, %v489, 0
        %v528 = vsel %vm496, %v490, 0
        %v531 = vsel %vm496, %v491, 0
        %v534 = vsel %vm496, %v492, 0
        %v537 = vsel %vm496, %v493, 0
        %v540 = vsel %vm496, %v494, 0
        %v543 = vsel %vm496, %v495, 0
        %vm545 = vcmask 1041408
        %v547 = vsel %vm545, %v444, 0
        %549 = vmatprep.subr.mxu0 0.0
        %550 = vmatpush1.msra.mxu0 0.0
        %551 = vmatprep.subr.mxu0 0.0
        %552 = vmatpush1.msra.mxu0 0.0
        %553 = vmatprep.subr.mxu0 0.0
        %554 = vmatpush1.msra.mxu0 0.0
        %555 = vmatprep.subr.mxu0 0.0
        %556 = vmatpush1.msra.mxu0 0.0
        %557 = vmatprep.subr.mxu0 0.0
        %558 = vmatpush1.msra.mxu0 0.0
        %559 = vmatprep.subr.mxu0 0.0
        %560 = vmatpush1.msra.mxu0 0.0
        %561 = vmatprep.subr.mxu0 0.0
        %562 = vmatpush1.msra.mxu0 0.0
        %563 = vmatprep.subr.mxu0 0.0
        %564 = vmatpush1.msra.mxu0 0.0
        %565 = vmatprep.subr.mxu0 0.0
        %566 = vmatpush1.msra.mxu0 0.0
        %567 = vmatprep.subr.mxu0 0.0
        %568 = vmatpush1.msra.mxu0 0.0
        %569 = vmatprep.subr.mxu0 0.0
        %570 = vmatpush1.msra.mxu0 0.0
        %571 = vmatprep.subr.mxu0 0.0
        %572 = vmatpush1.msra.mxu0 0.0
        %573 = vmatprep.subr.mxu0 0.0
        %574 = vmatpush1.msra.mxu0 0.0
        %575 = vmatprep.subr.mxu0 0.0
        %576 = vmatpush1.msra.mxu0 0.0
        %577 = vmatprep.subr.mxu0 0.0
        %578 = vmatpush1.msra.mxu0 0.0
        %579 = vmatprep.subr.mxu0 0.0
        %580 = vmatpush1.msra.mxu0 %v547
        %581 = vmatprep.subr.mxu0 0.0
        %582 = vmatpush2.msra.mxu0 0.0
        %583 = vmatprep.subr.mxu0 0.0
        %584 = vmatpush2.msra.mxu0 0.0
        %585 = vmatprep.subr.mxu0 0.0
        %586 = vmatpush2.msra.mxu0 0.0
        %587 = vmatprep.subr.mxu0 0.0
        %588 = vmatpush2.msra.mxu0 0.0
        %589 = vmatprep.subr.mxu0 0.0
        %590 = vmatpush2.msra.mxu0 0.0
        %591 = vmatprep.subr.mxu0 0.0
        %592 = vmatpush2.msra.mxu0 0.0
        %593 = vmatprep.subr.mxu0 0.0
        %594 = vmatpush2.msra.mxu0 0.0
        %595 = vmatprep.subr.mxu0 0.0
        %596 = vmatpush2.msra.mxu0 0.0
        %597 = vmatprep.subr.mxu0 0.0
        %598 = vmatpush2.msra.mxu0 0.0
        %599 = vmatprep.subr.mxu0 0.0
        %600 = vmatpush2.msra.mxu0 0.0
        %601 = vmatprep.subr.mxu0 0.0
        %602 = vmatpush2.msra.mxu0 0.0
        %603 = vmatprep.subr.mxu0 0.0
        %604 = vmatpush2.msra.mxu0 0.0
        %605 = vmatprep.subr.mxu0 0.0
        %606 = vmatpush2.msra.mxu0 0.0
        %607 = vmatprep.subr.mxu0 0.0
        %608 = vmatpush2.msra.mxu0 0.0
        %609 = vmatprep.subr.mxu0 0.0
        %610 = vmatpush2.msra.mxu0 0.0
        %611 = vmatprep.subr.mxu0 0.0
        %612 = vmatpush2.msra.mxu0 0.0
        %613 = vmatprep.mubr.f32.mxu0 0.0
        %614 = vmatmul.mubr.f32.gmra.mxu0 %v498
        %v615 = vpop.f32.mrf.mxu0
        %v616 = vadd.f32 %v445, %v615
        %v617 = vpop.f32.mrf.mxu0
        %618 = vmatprep.mubr.f32.mxu0 0.0
        %619 = vmatmul.mubr.f32.gmra.mxu0 %v501
        %v620 = vpop.f32.mrf.mxu0
        %v621 = vadd.f32 %v446, %v620
        %v622 = vpop.f32.mrf.mxu0
        %623 = vmatprep.mubr.f32.mxu0 0.0
        %624 = vmatmul.mubr.f32.gmra.mxu0 %v504
        %v625 = vpop.f32.mrf.mxu0
        %v626 = vadd.f32 %v447, %v625
        %v627 = vpop.f32.mrf.mxu0
        %628 = vmatprep.mubr.f32.mxu0 0.0
        %629 = vmatmul.mubr.f32.gmra.mxu0 %v507
        %v630 = vpop.f32.mrf.mxu0
        %v631 = vadd.f32 %v448, %v630
        %v632 = vpop.f32.mrf.mxu0
        %633 = vmatprep.mubr.f32.mxu0 0.0
        %634 = vmatmul.mubr.f32.gmra.mxu0 %v510
        %v635 = vpop.f32.mrf.mxu0
        %v636 = vadd.f32 %v449, %v635
        %v637 = vpop.f32.mrf.mxu0
        %638 = vmatprep.mubr.f32.mxu0 0.0
        %639 = vmatmul.mubr.f32.gmra.mxu0 %v513
        %v640 = vpop.f32.mrf.mxu0
        %v641 = vadd.f32 %v450, %v640
        %v642 = vpop.f32.mrf.mxu0
        %643 = vmatprep.mubr.f32.mxu0 0.0
        %644 = vmatmul.mubr.f32.gmra.mxu0 %v516
        %v645 = vpop.f32.mrf.mxu0
        %v646 = vadd.f32 %v451, %v645
        %v647 = vpop.f32.mrf.mxu0
        %648 = vmatprep.mubr.f32.mxu0 0.0
        %649 = vmatmul.mubr.f32.gmra.mxu0 %v519
        %v650 = vpop.f32.mrf.mxu0
        %v651 = vadd.f32 %v452, %v650
        %v652 = vpop.f32.mrf.mxu0
        %653 = vmatprep.mubr.f32.mxu0 0.0
        %654 = vmatmul.mubr.f32.gmra.mxu0 %v522
        %v655 = vpop.f32.mrf.mxu0
        %v656 = vadd.f32 %v453, %v655
        %v657 = vpop.f32.mrf.mxu0
        %658 = vmatprep.mubr.f32.mxu0 0.0
        %659 = vmatmul.mubr.f32.gmra.mxu0 %v525
        %v660 = vpop.f32.mrf.mxu0
        %v661 = vadd.f32 %v454, %v660
        %v662 = vpop.f32.mrf.mxu0
        %663 = vmatprep.mubr.f32.mxu0 0.0
        %664 = vmatmul.mubr.f32.gmra.mxu0 %v528
        %v665 = vpop.f32.mrf.mxu0
        %v666 = vadd.f32 %v455, %v665
        %v667 = vpop.f32.mrf.mxu0
        %668 = vmatprep.mubr.f32.mxu0 0.0
        %669 = vmatmul.mubr.f32.gmra.mxu0 %v531
        %v670 = vpop.f32.mrf.mxu0
        %v671 = vadd.f32 %v456, %v670
        %v672 = vpop.f32.mrf.mxu0
        %673 = vmatprep.mubr.f32.mxu0 0.0
        %674 = vmatmul.mubr.f32.gmra.mxu0 %v534
        %v675 = vpop.f32.mrf.mxu0
        %v676 = vadd.f32 %v457, %v675
        %v677 = vpop.f32.mrf.mxu0
        %678 = vmatprep.mubr.f32.mxu0 0.0
        %679 = vmatmul.mubr.f32.gmra.mxu0 %v537
        %v680 = vpop.f32.mrf.mxu0
        %v681 = vadd.f32 %v458, %v680
        %v682 = vpop.f32.mrf.mxu0
        %683 = vmatprep.mubr.f32.mxu0 0.0
        %684 = vmatmul.mubr.f32.gmra.mxu0 %v540
        %v685 = vpop.f32.mrf.mxu0
        %v686 = vadd.f32 %v459, %v685
        %v687 = vpop.f32.mrf.mxu0
        %688 = vmatprep.mubr.f32.mxu0 0.0
        %689 = vmatmul.mubr.f32.gmra.mxu0 %v543
        %v690 = vpop.f32.mrf.mxu0
        %v691 = vadd.f32 %v460, %v690
        %v692 = vpop.f32.mrf.mxu0
        %693 = vdwg.mxu0
        %v694 = vmax.f32 %v616, %v636
        %v695 = vmax.f32 %v621, %v641
        %v696 = vmax.f32 %v626, %v646
        %v697 = vmax.f32 %v631, %v651
        %v698 = vmax.f32 %v694, %v656
        %v699 = vmax.f32 %v695, %v661
        %v700 = vmax.f32 %v696, %v666
        %v701 = vmax.f32 %v697, %v671
        %v702 = vmax.f32 %v698, %v676
        %v703 = vmax.f32 %v699, %v681
        %v704 = vmax.f32 %v700, %v686
        %v705 = vmax.f32 %v701, %v691
        %v706 = vmax.f32 %v702, %v703
        %v707 = vmax.f32 %v704, %v705
        %v708 = vmax.f32 %v706, %v707
        %v709 = vrot.slane %v708, 4
        %v710 = vmax.f32 %v708, %v709
        %v711 = vrot.slane %v710, 2
        %v712 = vmax.f32 %v710, %v711
        %v713 = vrot.slane %v712, 1
        %v714 = vmax.f32 %v712, %v713
        %v715 = vsub.f32 %v616, %v714
        %v716 = vsub.f32 %v621, %v714
        %v717 = vsub.f32 %v626, %v714
        %v718 = vsub.f32 %v631, %v714
        %v719 = vsub.f32 %v636, %v714
        %v720 = vsub.f32 %v641, %v714
        %v721 = vsub.f32 %v646, %v714
        %v722 = vsub.f32 %v651, %v714
        %v723 = vsub.f32 %v656, %v714
        %v724 = vsub.f32 %v661, %v714
        %v725 = vsub.f32 %v666, %v714
        %v726 = vsub.f32 %v671, %v714
        %v727 = vsub.f32 %v676, %v714
        %v728 = vsub.f32 %v681, %v714
        %v729 = vsub.f32 %v686, %v714
        %v730 = vsub.f32 %v691, %v714
        %v731 = vmul.f32 %v715, 1.442695
        %v732 = vpow.pop %v731
        %v733 = vmul.f32 %v716, 1.442695
        %v734 = vpow.pop %v733
        %v735 = vmul.f32 %v717, 1.442695
        %v736 = vpow.pop %v735
        %v737 = vmul.f32 %v718, 1.442695
        %v738 = vpow.pop %v737
        %v739 = vmul.f32 %v719, 1.442695
        %v740 = vpow.pop %v739
        %v741 = vmul.f32 %v720, 1.442695
        %v742 = vpow.pop %v741
        %v743 = vmul.f32 %v721, 1.442695
        %v744 = vpow.pop %v743
        %v745 = vmul.f32 %v722, 1.442695
        %v746 = vpow.pop %v745
        %v747 = vmul.f32 %v723, 1.442695
        %v748 = vpow.pop %v747
        %v749 = vmul.f32 %v724, 1.442695
        %v750 = vpow.pop %v749
        %v751 = vmul.f32 %v725, 1.442695
        %v752 = vpow.pop %v751
        %v753 = vmul.f32 %v726, 1.442695
        %v754 = vpow.pop %v753
        %v755 = vmul.f32 %v727, 1.442695
        %v756 = vpow.pop %v755
        %v757 = vmul.f32 %v728, 1.442695
        %v758 = vpow.pop %v757
        %v759 = vmul.f32 %v729, 1.442695
        %v760 = vpow.pop %v759
        %v761 = vmul.f32 %v730, 1.442695
        %v762 = vpow.pop %v761
        %v763 = vadd.f32 %v732, %v734
        %v764 = vadd.f32 %v763, %v736
        %v765 = vadd.f32 %v764, %v738
        %v766 = vadd.f32 %v765, %v740
        %v767 = vadd.f32 %v766, %v742
        %v768 = vadd.f32 %v767, %v744
        %v769 = vadd.f32 %v768, %v746
        %v770 = vadd.f32 %v769, %v748
        %v771 = vadd.f32 %v770, %v750
        %v772 = vadd.f32 %v771, %v752
        %v773 = vadd.f32 %v772, %v754
        %v774 = vadd.f32 %v773, %v756
        %v775 = vadd.f32 %v774, %v758
        %v776 = vadd.f32 %v775, %v760
        %v777 = vadd.f32 %v776, %v762
        %v778 = vrot.slane %v777, 4
        %v779 = vadd.f32 %v777, %v778
        %v780 = vrot.slane %v779, 2
        %v781 = vadd.f32 %v779, %v780
        %v782 = vrot.slane %v781, 1
        %v783 = vadd.f32 %v781, %v782
        %vm785 = vcmask 1043456
        %v786 = vrot.slane %v408, 4
        %v787 = vrot.slane %v413, 4
        %v788 = vsel %vm785, %v786, %v787
        %790 = vmatprep.subr.mxu0 0.0
        %791 = vmatpush1.msra.mxu0 %v762
        %792 = vmatprep.subr.mxu0 0.0
        %793 = vmatpush1.msra.mxu0 %v760
        %794 = vmatprep.subr.mxu0 0.0
        %795 = vmatpush1.msra.mxu0 %v758
        %796 = vmatprep.subr.mxu0 0.0
        %797 = vmatpush1.msra.mxu0 %v756
        %798 = vmatprep.subr.mxu0 0.0
        %799 = vmatpush1.msra.mxu0 %v754
        %800 = vmatprep.subr.mxu0 0.0
        %801 = vmatpush1.msra.mxu0 %v752
        %802 = vmatprep.subr.mxu0 0.0
        %803 = vmatpush1.msra.mxu0 %v750
        %804 = vmatprep.subr.mxu0 0.0
        %805 = vmatpush1.msra.mxu0 %v748
        %806 = vmatprep.subr.mxu0 0.0
        %807 = vmatpush1.msra.mxu0 %v746
        %808 = vmatprep.subr.mxu0 0.0
        %809 = vmatpush1.msra.mxu0 %v744
        %810 = vmatprep.subr.mxu0 0.0
        %811 = vmatpush1.msra.mxu0 %v742
        %812 = vmatprep.subr.mxu0 0.0
        %813 = vmatpush1.msra.mxu0 %v740
        %814 = vmatprep.subr.mxu0 0.0
        %815 = vmatpush1.msra.mxu0 %v738
        %816 = vmatprep.subr.mxu0 0.0
        %817 = vmatpush1.msra.mxu0 %v736
        %818 = vmatprep.subr.mxu0 0.0
        %819 = vmatpush1.msra.mxu0 %v734
        %820 = vmatprep.subr.mxu0 0.0
        %821 = vmatpush1.msra.mxu0 %v732
        %822 = vmatprep.subr.mxu0 0.0
        %823 = vmatpush2.msra.mxu0 0.0
        %824 = vmatprep.subr.mxu0 0.0
        %825 = vmatpush2.msra.mxu0 0.0
        %826 = vmatprep.subr.mxu0 0.0
        %827 = vmatpush2.msra.mxu0 0.0
        %828 = vmatprep.subr.mxu0 0.0
        %829 = vmatpush2.msra.mxu0 0.0
        %830 = vmatprep.subr.mxu0 0.0
        %831 = vmatpush2.msra.mxu0 0.0
        %832 = vmatprep.subr.mxu0 0.0
        %833 = vmatpush2.msra.mxu0 0.0
        %834 = vmatprep.subr.mxu0 0.0
        %835 = vmatpush2.msra.mxu0 0.0
        %836 = vmatprep.subr.mxu0 0.0
        %837 = vmatpush2.msra.mxu0 0.0
        %838 = vmatprep.subr.mxu0 0.0
        %839 = vmatpush2.msra.mxu0 0.0
        %840 = vmatprep.subr.mxu0 0.0
        %841 = vmatpush2.msra.mxu0 0.0
        %842 = vmatprep.subr.mxu0 0.0
        %843 = vmatpush2.msra.mxu0 0.0
        %844 = vmatprep.subr.mxu0 0.0
        %845 = vmatpush2.msra.mxu0 0.0
        %846 = vmatprep.subr.mxu0 0.0
        %847 = vmatpush2.msra.mxu0 0.0
        %848 = vmatprep.subr.mxu0 0.0
        %849 = vmatpush2.msra.mxu0 0.0
        %850 = vmatprep.subr.mxu0 0.0
        %851 = vmatpush2.msra.mxu0 0.0
        %852 = vmatprep.subr.mxu0 0.0
        %853 = vmatpush2.msra.mxu0 0.0
        %854 = vmatprep.mubr.f32.mxu0 0.0
        %855 = vmatmul.mubr.f32.gmra.mxu0 %v788
        %v856 = vpop.f32.mrf.mxu0
        %v857 = vadd.f32 0.0, %v856
        %v858 = vpop.f32.mrf.mxu0
        %859 = vdwg.mxu0
        %v860 = vrcp.pop %v783
        %v861 = vmul.f32 1.0, %v860
        %v862 = vmul.f32 %v857, %v861
        %v863 = vld [vmem:[%s6] sm:$0xff]
        %v864 = vld [vmem:[%s6 + $0x8] sm:$0xff]
        %v865 = vld [vmem:[%s6 + $0x10] sm:$0xff]
        %v866 = vld [vmem:[%s6 + $0x18] sm:$0xff]
        %v867 = vmax.f32 %v862, 0.0
        %s868 = scalar_lea.vmem %s318, 8
        %v869 = vld [vmem:[%s868] sm:$0xff]
        %v870 = vadd.f32 %v862, %v869
        %s871 = scalar_lea.vmem %s1, 16
        %v872 = vld [vmem:[%s871] sm:$0xff]
        %v873 = vld [vmem:[%s871 + $0x8] sm:$0xf]
        %s874 = scalar_lea.vmem %s2, 16
        %v875 = vld [vmem:[%s874] sm:$0xff]
        %v876 = vld [vmem:[%s874 + $0x8] sm:$0xf]
        %878 = vset.pattern.permute.xlu0 0
        %879 = vperm.xlu0 %878, %v875
        %v880 = vpop.permute.xlu0 %879
        %883 = vset.pattern.permute.xlu0 0
        %884 = vperm.xlu0 %883, %v876
        %v885 = vpop.permute.xlu0 %884
        %v888 = vsel %vm334, %v872, 0
        %v891 = vsel %vm334, %v873, 0
        %893 = vmatprep.subr.mxu0 0.0
        %894 = vmatpush1.msra.mxu0 0.0
        %895 = vmatprep.subr.mxu0 0.0
        %896 = vmatpush1.msra.mxu0 0.0
        %897 = vmatprep.subr.mxu0 0.0
        %898 = vmatpush1.msra.mxu0 0.0
        %899 = vmatprep.subr.mxu0 0.0
        %900 = vmatpush1.msra.mxu0 0.0
        %901 = vmatprep.subr.mxu0 0.0
        %902 = vmatpush1.msra.mxu0 0.0
        %903 = vmatprep.subr.mxu0 0.0
        %904 = vmatpush1.msra.mxu0 0.0
        %905 = vmatprep.subr.mxu0 0.0
        %906 = vmatpush1.msra.mxu0 0.0
        %907 = vmatprep.subr.mxu0 0.0
        %908 = vmatpush1.msra.mxu0 0.0
        %909 = vmatprep.subr.mxu0 0.0
        %910 = vmatpush1.msra.mxu0 0.0
        %911 = vmatprep.subr.mxu0 0.0
        %912 = vmatpush1.msra.mxu0 0.0
        %913 = vmatprep.subr.mxu0 0.0
        %914 = vmatpush1.msra.mxu0 0.0
        %915 = vmatprep.subr.mxu0 0.0
        %916 = vmatpush1.msra.mxu0 0.0
        %917 = vmatprep.subr.mxu0 0.0
        %918 = vmatpush1.msra.mxu0 0.0
        %919 = vmatprep.subr.mxu0 0.0
        %920 = vmatpush1.msra.mxu0 0.0
        %921 = vmatprep.subr.mxu0 0.0
        %922 = vmatpush1.msra.mxu0 0.0
        %923 = vmatprep.subr.mxu0 0.0
        %924 = vmatpush1.msra.mxu0 %v870
        %925 = vmatprep.subr.mxu0 0.0
        %926 = vmatpush2.msra.mxu0 0.0
        %927 = vmatprep.subr.mxu0 0.0
        %928 = vmatpush2.msra.mxu0 0.0
        %929 = vmatprep.subr.mxu0 0.0
        %930 = vmatpush2.msra.mxu0 0.0
        %931 = vmatprep.subr.mxu0 0.0
        %932 = vmatpush2.msra.mxu0 0.0
        %933 = vmatprep.subr.mxu0 0.0
        %934 = vmatpush2.msra.mxu0 0.0
        %935 = vmatprep.subr.mxu0 0.0
        %936 = vmatpush2.msra.mxu0 0.0
        %937 = vmatprep.subr.mxu0 0.0
        %938 = vmatpush2.msra.mxu0 0.0
        %939 = vmatprep.subr.mxu0 0.0
        %940 = vmatpush2.msra.mxu0 0.0
        %941 = vmatprep.subr.mxu0 0.0
        %942 = vmatpush2.msra.mxu0 0.0
        %943 = vmatprep.subr.mxu0 0.0
        %944 = vmatpush2.msra.mxu0 0.0
        %945 = vmatprep.subr.mxu0 0.0
        %946 = vmatpush2.msra.mxu0 0.0
        %947 = vmatprep.subr.mxu0 0.0
        %948 = vmatpush2.msra.mxu0 0.0
        %949 = vmatprep.subr.mxu0 0.0
        %950 = vmatpush2.msra.mxu0 0.0
        %951 = vmatprep.subr.mxu0 0.0
        %952 = vmatpush2.msra.mxu0 0.0
        %953 = vmatprep.subr.mxu0 0.0
        %954 = vmatpush2.msra.mxu0 0.0
        %955 = vmatprep.subr.mxu0 0.0
        %956 = vmatpush2.msra.mxu0 0.0
        %957 = vmatprep.mubr.f32.mxu0 0.0
        %958 = vmatmul.mubr.f32.gmra.mxu0 %v888
        %v959 = vpop.f32.mrf.mxu0
        %v960 = vadd.f32 %v880, %v959
        %v961 = vpop.f32.mrf.mxu0
        %962 = vmatprep.mubr.f32.mxu0 0.0
        %963 = vmatmul.mubr.f32.gmra.mxu0 %v891
        %v964 = vpop.f32.mrf.mxu0
        %v965 = vadd.f32 %v885, %v964
        %v966 = vpop.f32.mrf.mxu0
        %967 = vdwg.mxu0
        %s968 = scalar_lea.vmem %s3, 10
        %v969 = vld [vmem:[%s968] sm:$0x3]
        %v970 = vld [vmem:[%s968 + $0x2] sm:$0x3]
        %v971 = vld [vmem:[%s968 + $0x4] sm:$0x3]
        %v972 = vld [vmem:[%s968 + $0x6] sm:$0x3]
        %v973 = vld [vmem:[%s968 + $0x8] sm:$0x3]
        %s974 = scalar_lea.vmem %s4, 2
        %v975 = vld [vmem:[%s974] sm:$0x3]
        %977 = vset.pattern.permute.xlu0 0
        %978 = vperm.xlu0 %977, %v975
        %v979 = vpop.permute.xlu0 %978
        %981 = vrot.lane.b32.xlu0 %v960, 2
        %v982 = vpop.permute.xlu0 %981
        %v983 = vmul.f32 %v982, %v969
        %v984 = vadd.f32 %v979, %v983
        %985 = vrot.lane.b32.xlu0 %v960, 1
        %v986 = vpop.permute.xlu0 %985
        %v987 = vmul.f32 %v986, %v970
        %v988 = vadd.f32 %v984, %v987
        %v989 = vmul.f32 %v960, %v971
        %v990 = vadd.f32 %v988, %v989
        %991 = vrot.lane.b32.xlu0 %v960, 127
        %v992 = vpop.permute.xlu0 %991
        %v993 = vmul.f32 %v992, %v972
        %v994 = vadd.f32 %v990, %v993
        %995 = vrot.lane.b32.xlu0 %v960, 126
        %v996 = vpop.permute.xlu0 %995
        %v997 = vmul.f32 %v996, %v973
        %v998 = vadd.f32 %v994, %v997
        %s999 = scalar_lea.vmem [#allocation2], 128
        %v1000 = vld [vmem:[%s999] sm:$0xff]
        %v1001 = vld [vmem:[%s999 + $0x8] sm:$0xff]
        %v1002 = vld [vmem:[%s999 + $0x10] sm:$0xff]
        %v1003 = vld [vmem:[%s999 + $0x18] sm:$0xff]
        %v1004 = vld [vmem:[%s999 + $0x20] sm:$0xff]
        %v1005 = vld [vmem:[%s999 + $0x28] sm:$0xff]
        %v1006 = vld [vmem:[%s999 + $0x30] sm:$0xff]
        %v1007 = vld [vmem:[%s999 + $0x38] sm:$0xff]
        %v1008 = vld [vmem:[%s999 + $0x40] sm:$0xff]
        %v1009 = vld [vmem:[%s999 + $0x48] sm:$0xff]
        %v1010 = vld [vmem:[%s999 + $0x50] sm:$0xff]
        %v1011 = vld [vmem:[%s999 + $0x58] sm:$0xff]
        %v1012 = vld [vmem:[%s999 + $0x60] sm:$0xff]
        %v1013 = vld [vmem:[%s999 + $0x68] sm:$0xff]
        %v1014 = vld [vmem:[%s999 + $0x70] sm:$0xff]
        %v1015 = vld [vmem:[%s999 + $0x78] sm:$0xff]
        %v1017 = vrot.slane %v960, 2
        %1019 = vxpose.xlu0.b32.start [1/16] %v1017, 128
        %1020 = vxpose.xlu0.b32.cont [2/16] 0.0, 128
        %1021 = vxpose.xlu0.b32.cont [3/16] 0.0, 128
        %1022 = vxpose.xlu0.b32.cont [4/16] 0.0, 128
        %1023 = vxpose.xlu0.b32.cont [5/16] 0.0, 128
        %1024 = vxpose.xlu0.b32.cont [6/16] 0.0, 128
        %1025 = vxpose.xlu0.b32.cont [7/16] 0.0, 128
        %1026 = vxpose.xlu0.b32.cont [8/16] 0.0, 128
        %1027 = vxpose.xlu0.b32.cont [9/16] 0.0, 128
        %1028 = vxpose.xlu0.b32.cont [10/16] 0.0, 128
        %1029 = vxpose.xlu0.b32.cont [11/16] 0.0, 128
        %1030 = vxpose.xlu0.b32.cont [12/16] 0.0, 128
        %1031 = vxpose.xlu0.b32.cont [13/16] 0.0, 128
        %1032 = vxpose.xlu0.b32.cont [14/16] 0.0, 128
        %1033 = vxpose.xlu0.b32.cont [15/16] 0.0, 128
        %1034 = vxpose.xlu0.b32.end [16/16] 0.0, 128
        %v1035 = vpop.trf.xlu0
        %v1036 = vpop.trf.xlu0
        %v1037 = vpop.trf.xlu0
        %v1038 = vpop.trf.xlu0
        %v1039 = vpop.trf.xlu0
        %v1040 = vpop.trf.xlu0
        %v1041 = vpop.trf.xlu0
        %v1042 = vpop.trf.xlu0
        %v1043 = vpop.trf.xlu0
        %v1044 = vpop.trf.xlu0
        %v1045 = vpop.trf.xlu0
        %v1046 = vpop.trf.xlu0
        %v1047 = vpop.trf.xlu0
        %v1048 = vpop.trf.xlu0
        %v1049 = vpop.trf.xlu0
        %v1050 = vpop.trf.xlu0
        %v1052 = vsel %vm496, %v1035, 0
        %v1055 = vsel %vm496, %v1036, 0
        %v1058 = vsel %vm496, %v1037, 0
        %v1061 = vsel %vm496, %v1038, 0
        %v1064 = vsel %vm496, %v1039, 0
        %v1067 = vsel %vm496, %v1040, 0
        %v1070 = vsel %vm496, %v1041, 0
        %v1073 = vsel %vm496, %v1042, 0
        %v1076 = vsel %vm496, %v1043, 0
        %v1079 = vsel %vm496, %v1044, 0
        %v1082 = vsel %vm496, %v1045, 0
        %v1085 = vsel %vm496, %v1046, 0
        %v1088 = vsel %vm496, %v1047, 0
        %v1091 = vsel %vm496, %v1048, 0
        %v1094 = vsel %vm496, %v1049, 0
        %v1097 = vsel %vm496, %v1050, 0
        %v1100 = vsel %vm545, %v998, 0
        %1102 = vmatprep.subr.mxu0 0.0
        %1103 = vmatpush1.msra.mxu0 0.0
        %1104 = vmatprep.subr.mxu0 0.0
        %1105 = vmatpush1.msra.mxu0 0.0
        %1106 = vmatprep.subr.mxu0 0.0
        %1107 = vmatpush1.msra.mxu0 0.0
        %1108 = vmatprep.subr.mxu0 0.0
        %1109 = vmatpush1.msra.mxu0 0.0
        %1110 = vmatprep.subr.mxu0 0.0
        %1111 = vmatpush1.msra.mxu0 0.0
        %1112 = vmatprep.subr.mxu0 0.0
        %1113 = vmatpush1.msra.mxu0 0.0
        %1114 = vmatprep.subr.mxu0 0.0
        %1115 = vmatpush1.msra.mxu0 0.0
        %1116 = vmatprep.subr.mxu0 0.0
        %1117 = vmatpush1.msra.mxu0 0.0
        %1118 = vmatprep.subr.mxu0 0.0
        %1119 = vmatpush1.msra.mxu0 0.0
        %1120 = vmatprep.subr.mxu0 0.0
        %1121 = vmatpush1.msra.mxu0 0.0
        %1122 = vmatprep.subr.mxu0 0.0
        %1123 = vmatpush1.msra.mxu0 0.0
        %1124 = vmatprep.subr.mxu0 0.0
        %1125 = vmatpush1.msra.mxu0 0.0
        %1126 = vmatprep.subr.mxu0 0.0
        %1127 = vmatpush1.msra.mxu0 0.0
        %1128 = vmatprep.subr.mxu0 0.0
        %1129 = vmatpush1.msra.mxu0 0.0
        %1130 = vmatprep.subr.mxu0 0.0
        %1131 = vmatpush1.msra.mxu0 0.0
        %1132 = vmatprep.subr.mxu0 0.0
        %1133 = vmatpush1.msra.mxu0 %v1100
        %1134 = vmatprep.subr.mxu0 0.0
        %1135 = vmatpush2.msra.mxu0 0.0
        %1136 = vmatprep.subr.mxu0 0.0
        %1137 = vmatpush2.msra.mxu0 0.0
        %1138 = vmatprep.subr.mxu0 0.0
        %1139 = vmatpush2.msra.mxu0 0.0
        %1140 = vmatprep.subr.mxu0 0.0
        %1141 = vmatpush2.msra.mxu0 0.0
        %1142 = vmatprep.subr.mxu0 0.0
        %1143 = vmatpush2.msra.mxu0 0.0
        %1144 = vmatprep.subr.mxu0 0.0
        %1145 = vmatpush2.msra.mxu0 0.0
        %1146 = vmatprep.subr.mxu0 0.0
        %1147 = vmatpush2.msra.mxu0 0.0
        %1148 = vmatprep.subr.mxu0 0.0
        %1149 = vmatpush2.msra.mxu0 0.0
        %1150 = vmatprep.subr.mxu0 0.0
        %1151 = vmatpush2.msra.mxu0 0.0
        %1152 = vmatprep.subr.mxu0 0.0
        %1153 = vmatpush2.msra.mxu0 0.0
        %1154 = vmatprep.subr.mxu0 0.0
        %1155 = vmatpush2.msra.mxu0 0.0
        %1156 = vmatprep.subr.mxu0 0.0
        %1157 = vmatpush2.msra.mxu0 0.0
        %1158 = vmatprep.subr.mxu0 0.0
        %1159 = vmatpush2.msra.mxu0 0.0
        %1160 = vmatprep.subr.mxu0 0.0
        %1161 = vmatpush2.msra.mxu0 0.0
        %1162 = vmatprep.subr.mxu0 0.0
        %1163 = vmatpush2.msra.mxu0 0.0
        %1164 = vmatprep.subr.mxu0 0.0
        %1165 = vmatpush2.msra.mxu0 0.0
        %1166 = vmatprep.mubr.f32.mxu0 0.0
        %1167 = vmatmul.mubr.f32.gmra.mxu0 %v1052
        %v1168 = vpop.f32.mrf.mxu0
        %v1169 = vadd.f32 %v1000, %v1168
        %v1170 = vpop.f32.mrf.mxu0
        %1171 = vmatprep.mubr.f32.mxu0 0.0
        %1172 = vmatmul.mubr.f32.gmra.mxu0 %v1055
        %v1173 = vpop.f32.mrf.mxu0
        %v1174 = vadd.f32 %v1001, %v1173
        %v1175 = vpop.f32.mrf.mxu0
        %1176 = vmatprep.mubr.f32.mxu0 0.0
        %1177 = vmatmul.mubr.f32.gmra.mxu0 %v1058
        %v1178 = vpop.f32.mrf.mxu0
        %v1179 = vadd.f32 %v1002, %v1178
        %v1180 = vpop.f32.mrf.mxu0
        %1181 = vmatprep.mubr.f32.mxu0 0.0
        %1182 = vmatmul.mubr.f32.gmra.mxu0 %v1061
        %v1183 = vpop.f32.mrf.mxu0
        %v1184 = vadd.f32 %v1003, %v1183
        %v1185 = vpop.f32.mrf.mxu0
        %1186 = vmatprep.mubr.f32.mxu0 0.0
        %1187 = vmatmul.mubr.f32.gmra.mxu0 %v1064
        %v1188 = vpop.f32.mrf.mxu0
        %v1189 = vadd.f32 %v1004, %v1188
        %v1190 = vpop.f32.mrf.mxu0
        %1191 = vmatprep.mubr.f32.mxu0 0.0
        %1192 = vmatmul.mubr.f32.gmra.mxu0 %v1067
        %v1193 = vpop.f32.mrf.mxu0
        %v1194 = vadd.f32 %v1005, %v1193
        %v1195 = vpop.f32.mrf.mxu0
        %1196 = vmatprep.mubr.f32.mxu0 0.0
        %1197 = vmatmul.mubr.f32.gmra.mxu0 %v1070
        %v1198 = vpop.f32.mrf.mxu0
        %v1199 = vadd.f32 %v1006, %v1198
        %v1200 = vpop.f32.mrf.mxu0
        %1201 = vmatprep.mubr.f32.mxu0 0.0
        %1202 = vmatmul.mubr.f32.gmra.mxu0 %v1073
        %v1203 = vpop.f32.mrf.mxu0
        %v1204 = vadd.f32 %v1007, %v1203
        %v1205 = vpop.f32.mrf.mxu0
        %1206 = vmatprep.mubr.f32.mxu0 0.0
        %1207 = vmatmul.mubr.f32.gmra.mxu0 %v1076
        %v1208 = vpop.f32.mrf.mxu0
        %v1209 = vadd.f32 %v1008, %v1208
        %v1210 = vpop.f32.mrf.mxu0
        %1211 = vmatprep.mubr.f32.mxu0 0.0
        %1212 = vmatmul.mubr.f32.gmra.mxu0 %v1079
        %v1213 = vpop.f32.mrf.mxu0
        %v1214 = vadd.f32 %v1009, %v1213
        %v1215 = vpop.f32.mrf.mxu0
        %1216 = vmatprep.mubr.f32.mxu0 0.0
        %1217 = vmatmul.mubr.f32.gmra.mxu0 %v1082
        %v1218 = vpop.f32.mrf.mxu0
        %v1219 = vadd.f32 %v1010, %v1218
        %v1220 = vpop.f32.mrf.mxu0
        %1221 = vmatprep.mubr.f32.mxu0 0.0
        %1222 = vmatmul.mubr.f32.gmra.mxu0 %v1085
        %v1223 = vpop.f32.mrf.mxu0
        %v1224 = vadd.f32 %v1011, %v1223
        %v1225 = vpop.f32.mrf.mxu0
        %1226 = vmatprep.mubr.f32.mxu0 0.0
        %1227 = vmatmul.mubr.f32.gmra.mxu0 %v1088
        %v1228 = vpop.f32.mrf.mxu0
        %v1229 = vadd.f32 %v1012, %v1228
        %v1230 = vpop.f32.mrf.mxu0
        %1231 = vmatprep.mubr.f32.mxu0 0.0
        %1232 = vmatmul.mubr.f32.gmra.mxu0 %v1091
        %v1233 = vpop.f32.mrf.mxu0
        %v1234 = vadd.f32 %v1013, %v1233
        %v1235 = vpop.f32.mrf.mxu0
        %1236 = vmatprep.mubr.f32.mxu0 0.0
        %1237 = vmatmul.mubr.f32.gmra.mxu0 %v1094
        %v1238 = vpop.f32.mrf.mxu0
        %v1239 = vadd.f32 %v1014, %v1238
        %v1240 = vpop.f32.mrf.mxu0
        %1241 = vmatprep.mubr.f32.mxu0 0.0
        %1242 = vmatmul.mubr.f32.gmra.mxu0 %v1097
        %v1243 = vpop.f32.mrf.mxu0
        %v1244 = vadd.f32 %v1015, %v1243
        %v1245 = vpop.f32.mrf.mxu0
        %1246 = vdwg.mxu0
        %v1247 = vmax.f32 %v1169, %v1189
        %v1248 = vmax.f32 %v1174, %v1194
        %v1249 = vmax.f32 %v1179, %v1199
        %v1250 = vmax.f32 %v1184, %v1204
        %v1251 = vmax.f32 %v1247, %v1209
        %v1252 = vmax.f32 %v1248, %v1214
        %v1253 = vmax.f32 %v1249, %v1219
        %v1254 = vmax.f32 %v1250, %v1224
        %v1255 = vmax.f32 %v1251, %v1229
        %v1256 = vmax.f32 %v1252, %v1234
        %v1257 = vmax.f32 %v1253, %v1239
        %v1258 = vmax.f32 %v1254, %v1244
        %v1259 = vmax.f32 %v1255, %v1256
        %v1260 = vmax.f32 %v1257, %v1258
        %v1261 = vmax.f32 %v1259, %v1260
        %v1262 = vrot.slane %v1261, 4
        %v1263 = vmax.f32 %v1261, %v1262
        %v1264 = vrot.slane %v1263, 2
        %v1265 = vmax.f32 %v1263, %v1264
        %v1266 = vrot.slane %v1265, 1
        %v1267 = vmax.f32 %v1265, %v1266
        %v1268 = vsub.f32 %v1169, %v1267
        %v1269 = vsub.f32 %v1174, %v1267
        %v1270 = vsub.f32 %v1179, %v1267
        %v1271 = vsub.f32 %v1184, %v1267
        %v1272 = vsub.f32 %v1189, %v1267
        %v1273 = vsub.f32 %v1194, %v1267
        %v1274 = vsub.f32 %v1199, %v1267
        %v1275 = vsub.f32 %v1204, %v1267
        %v1276 = vsub.f32 %v1209, %v1267
        %v1277 = vsub.f32 %v1214, %v1267
        %v1278 = vsub.f32 %v1219, %v1267
        %v1279 = vsub.f32 %v1224, %v1267
        %v1280 = vsub.f32 %v1229, %v1267
        %v1281 = vsub.f32 %v1234, %v1267
        %v1282 = vsub.f32 %v1239, %v1267
        %v1283 = vsub.f32 %v1244, %v1267
        %v1284 = vmul.f32 %v1268, 1.442695
        %v1285 = vpow.pop %v1284
        %v1286 = vmul.f32 %v1269, 1.442695
        %v1287 = vpow.pop %v1286
        %v1288 = vmul.f32 %v1270, 1.442695
        %v1289 = vpow.pop %v1288
        %v1290 = vmul.f32 %v1271, 1.442695
        %v1291 = vpow.pop %v1290
        %v1292 = vmul.f32 %v1272, 1.442695
        %v1293 = vpow.pop %v1292
        %v1294 = vmul.f32 %v1273, 1.442695
        %v1295 = vpow.pop %v1294
        %v1296 = vmul.f32 %v1274, 1.442695
        %v1297 = vpow.pop %v1296
        %v1298 = vmul.f32 %v1275, 1.442695
        %v1299 = vpow.pop %v1298
        %v1300 = vmul.f32 %v1276, 1.442695
        %v1301 = vpow.pop %v1300
        %v1302 = vmul.f32 %v1277, 1.442695
        %v1303 = vpow.pop %v1302
        %v1304 = vmul.f32 %v1278, 1.442695
        %v1305 = vpow.pop %v1304
        %v1306 = vmul.f32 %v1279, 1.442695
        %v1307 = vpow.pop %v1306
        %v1308 = vmul.f32 %v1280, 1.442695
        %v1309 = vpow.pop %v1308
        %v1310 = vmul.f32 %v1281, 1.442695
        %v1311 = vpow.pop %v1310
        %v1312 = vmul.f32 %v1282, 1.442695
        %v1313 = vpow.pop %v1312
        %v1314 = vmul.f32 %v1283, 1.442695
        %v1315 = vpow.pop %v1314
        %v1316 = vadd.f32 %v1285, %v1287
        %v1317 = vadd.f32 %v1316, %v1289
        %v1318 = vadd.f32 %v1317, %v1291
        %v1319 = vadd.f32 %v1318, %v1293
        %v1320 = vadd.f32 %v1319, %v1295
        %v1321 = vadd.f32 %v1320, %v1297
        %v1322 = vadd.f32 %v1321, %v1299
        %v1323 = vadd.f32 %v1322, %v1301
        %v1324 = vadd.f32 %v1323, %v1303
        %v1325 = vadd.f32 %v1324, %v1305
        %v1326 = vadd.f32 %v1325, %v1307
        %v1327 = vadd.f32 %v1326, %v1309
        %v1328 = vadd.f32 %v1327, %v1311
        %v1329 = vadd.f32 %v1328, %v1313
        %v1330 = vadd.f32 %v1329, %v1315
        %v1331 = vrot.slane %v1330, 4
        %v1332 = vadd.f32 %v1330, %v1331
        %v1333 = vrot.slane %v1332, 2
        %v1334 = vadd.f32 %v1332, %v1333
        %v1335 = vrot.slane %v1334, 1
        %v1336 = vadd.f32 %v1334, %v1335
        %v1338 = vrot.slane %v960, 4
        %v1339 = vrot.slane %v965, 4
        %v1340 = vsel %vm785, %v1338, %v1339
        %1342 = vmatprep.subr.mxu0 0.0
        %1343 = vmatpush1.msra.mxu0 %v1315
        %1344 = vmatprep.subr.mxu0 0.0
        %1345 = vmatpush1.msra.mxu0 %v1313
        %1346 = vmatprep.subr.mxu0 0.0
        %1347 = vmatpush1.msra.mxu0 %v1311
        %1348 = vmatprep.subr.mxu0 0.0
        %1349 = vmatpush1.msra.mxu0 %v1309
        %1350 = vmatprep.subr.mxu0 0.0
        %1351 = vmatpush1.msra.mxu0 %v1307
        %1352 = vmatprep.subr.mxu0 0.0
        %1353 = vmatpush1.msra.mxu0 %v1305
        %1354 = vmatprep.subr.mxu0 0.0
        %1355 = vmatpush1.msra.mxu0 %v1303
        %1356 = vmatprep.subr.mxu0 0.0
        %1357 = vmatpush1.msra.mxu0 %v1301
        %1358 = vmatprep.subr.mxu0 0.0
        %1359 = vmatpush1.msra.mxu0 %v1299
        %1360 = vmatprep.subr.mxu0 0.0
        %1361 = vmatpush1.msra.mxu0 %v1297
        %1362 = vmatprep.subr.mxu0 0.0
        %1363 = vmatpush1.msra.mxu0 %v1295
        %1364 = vmatprep.subr.mxu0 0.0
        %1365 = vmatpush1.msra.mxu0 %v1293
        %1366 = vmatprep.subr.mxu0 0.0
        %1367 = vmatpush1.msra.mxu0 %v1291
        %1368 = vmatprep.subr.mxu0 0.0
        %1369 = vmatpush1.msra.mxu0 %v1289
        %1370 = vmatprep.subr.mxu0 0.0
        %1371 = vmatpush1.msra.mxu0 %v1287
        %1372 = vmatprep.subr.mxu0 0.0
        %1373 = vmatpush1.msra.mxu0 %v1285
        %1374 = vmatprep.subr.mxu0 0.0
        %1375 = vmatpush2.msra.mxu0 0.0
        %1376 = vmatprep.subr.mxu0 0.0
        %1377 = vmatpush2.msra.mxu0 0.0
        %1378 = vmatprep.subr.mxu0 0.0
        %1379 = vmatpush2.msra.mxu0 0.0
        %1380 = vmatprep.subr.mxu0 0.0
        %1381 = vmatpush2.msra.mxu0 0.0
        %1382 = vmatprep.subr.mxu0 0.0
        %1383 = vmatpush2.msra.mxu0 0.0
        %1384 = vmatprep.subr.mxu0 0.0
        %1385 = vmatpush2.msra.mxu0 0.0
        %1386 = vmatprep.subr.mxu0 0.0
        %1387 = vmatpush2.msra.mxu0 0.0
        %1388 = vmatprep.subr.mxu0 0.0
        %1389 = vmatpush2.msra.mxu0 0.0
        %1390 = vmatprep.subr.mxu0 0.0
        %1391 = vmatpush2.msra.mxu0 0.0
        %1392 = vmatprep.subr.mxu0 0.0
        %1393 = vmatpush2.msra.mxu0 0.0
        %1394 = vmatprep.subr.mxu0 0.0
        %1395 = vmatpush2.msra.mxu0 0.0
        %1396 = vmatprep.subr.mxu0 0.0
        %1397 = vmatpush2.msra.mxu0 0.0
        %1398 = vmatprep.subr.mxu0 0.0
        %1399 = vmatpush2.msra.mxu0 0.0
        %1400 = vmatprep.subr.mxu0 0.0
        %1401 = vmatpush2.msra.mxu0 0.0
        %1402 = vmatprep.subr.mxu0 0.0
        %1403 = vmatpush2.msra.mxu0 0.0
        %1404 = vmatprep.subr.mxu0 0.0
        %1405 = vmatpush2.msra.mxu0 0.0
        %1406 = vmatprep.mubr.f32.mxu0 0.0
        %1407 = vmatmul.mubr.f32.gmra.mxu0 %v1340
        %v1408 = vpop.f32.mrf.mxu0
        %v1409 = vadd.f32 0.0, %v1408
        %v1410 = vpop.f32.mrf.mxu0
        %1411 = vdwg.mxu0
        %v1412 = vrcp.pop %v1336
        %v1413 = vmul.f32 1.0, %v1412
        %v1414 = vmul.f32 %v1409, %v1413
        %s1415 = scalar_lea.vmem %s6, 32
        %v1416 = vld [vmem:[%s1415] sm:$0xff]
        %v1417 = vld [vmem:[%s1415 + $0x8] sm:$0xff]
        %v1418 = vld [vmem:[%s1415 + $0x10] sm:$0xff]
        %v1419 = vld [vmem:[%s1415 + $0x18] sm:$0xff]
        %v1420 = vmax.f32 %v1414, 0.0
        %v1422 = vsel %vm334, %v1416, 0
        %v1425 = vsel %vm334, %v1417, 0
        %v1428 = vsel %vm334, %v1418, 0
        %v1431 = vsel %vm334, %v1419, 0
        %1433 = vmatprep.subr.mxu0 0.0
        %1434 = vmatpush1.msra.mxu0 0.0
        %1435 = vmatprep.subr.mxu0 0.0
        %1436 = vmatpush1.msra.mxu0 0.0
        %1437 = vmatprep.subr.mxu0 0.0
        %1438 = vmatpush1.msra.mxu0 0.0
        %1439 = vmatprep.subr.mxu0 0.0
        %1440 = vmatpush1.msra.mxu0 0.0
        %1441 = vmatprep.subr.mxu0 0.0
        %1442 = vmatpush1.msra.mxu0 0.0
        %1443 = vmatprep.subr.mxu0 0.0
        %1444 = vmatpush1.msra.mxu0 0.0
        %1445 = vmatprep.subr.mxu0 0.0
        %1446 = vmatpush1.msra.mxu0 0.0
        %1447 = vmatprep.subr.mxu0 0.0
        %1448 = vmatpush1.msra.mxu0 0.0
        %1449 = vmatprep.subr.mxu0 0.0
        %1450 = vmatpush1.msra.mxu0 0.0
        %1451 = vmatprep.subr.mxu0 0.0
        %1452 = vmatpush1.msra.mxu0 0.0
        %1453 = vmatprep.subr.mxu0 0.0
        %1454 = vmatpush1.msra.mxu0 0.0
        %1455 = vmatprep.subr.mxu0 0.0
        %1456 = vmatpush1.msra.mxu0 0.0
        %1457 = vmatprep.subr.mxu0 0.0
        %1458 = vmatpush1.msra.mxu0 0.0
        %1459 = vmatprep.subr.mxu0 0.0
        %1460 = vmatpush1.msra.mxu0 0.0
        %1461 = vmatprep.subr.mxu0 0.0
        %1462 = vmatpush1.msra.mxu0 0.0
        %1463 = vmatprep.subr.mxu0 0.0
        %1464 = vmatpush1.msra.mxu0 %v1420
        %1465 = vmatprep.subr.mxu0 0.0
        %1466 = vmatpush2.msra.mxu0 0.0
        %1467 = vmatprep.subr.mxu0 0.0
        %1468 = vmatpush2.msra.mxu0 0.0
        %1469 = vmatprep.subr.mxu0 0.0
        %1470 = vmatpush2.msra.mxu0 0.0
        %1471 = vmatprep.subr.mxu0 0.0
        %1472 = vmatpush2.msra.mxu0 0.0
        %1473 = vmatprep.subr.mxu0 0.0
        %1474 = vmatpush2.msra.mxu0 0.0
        %1475 = vmatprep.subr.mxu0 0.0
        %1476 = vmatpush2.msra.mxu0 0.0
        %1477 = vmatprep.subr.mxu0 0.0
        %1478 = vmatpush2.msra.mxu0 0.0
        %1479 = vmatprep.subr.mxu0 0.0
        %1480 = vmatpush2.msra.mxu0 0.0
        %1481 = vmatprep.subr.mxu0 0.0
        %1482 = vmatpush2.msra.mxu0 0.0
        %1483 = vmatprep.subr.mxu0 0.0
        %1484 = vmatpush2.msra.mxu0 0.0
        %1485 = vmatprep.subr.mxu0 0.0
        %1486 = vmatpush2.msra.mxu0 0.0
        %1487 = vmatprep.subr.mxu0 0.0
        %1488 = vmatpush2.msra.mxu0 0.0
        %1489 = vmatprep.subr.mxu0 0.0
        %1490 = vmatpush2.msra.mxu0 0.0
        %1491 = vmatprep.subr.mxu0 0.0
        %1492 = vmatpush2.msra.mxu0 0.0
        %1493 = vmatprep.subr.mxu0 0.0
        %1494 = vmatpush2.msra.mxu0 0.0
        %1495 = vmatprep.subr.mxu0 0.0
        %1496 = vmatpush2.msra.mxu0 0.0
        %1497 = vmatprep.mubr.f32.mxu0 0.0
        %1498 = vmatmul.mubr.f32.gmra.mxu0 %v1422
        %v1499 = vpop.f32.mrf.mxu0
        %v1500 = vadd.f32 0.0, %v1499
        %v1501 = vpop.f32.mrf.mxu0
        %1502 = vmatprep.mubr.f32.mxu0 0.0
        %1503 = vmatmul.mubr.f32.gmra.mxu0 %v1425
        %v1504 = vpop.f32.mrf.mxu0
        %v1505 = vadd.f32 0.0, %v1504
        %v1506 = vpop.f32.mrf.mxu0
        %1507 = vmatprep.mubr.f32.mxu0 0.0
        %1508 = vmatmul.mubr.f32.gmra.mxu0 %v1428
        %v1509 = vpop.f32.mrf.mxu0
        %v1510 = vadd.f32 0.0, %v1509
        %v1511 = vpop.f32.mrf.mxu0
        %1512 = vmatprep.mubr.f32.mxu0 0.0
        %1513 = vmatmul.mubr.f32.gmra.mxu0 %v1431
        %v1514 = vpop.f32.mrf.mxu0
        %v1515 = vadd.f32 0.0, %v1514
        %v1516 = vpop.f32.mrf.mxu0
        %1517 = vdwg.mxu0
        %v1519 = vsel %vm334, %v863, 0
        %v1522 = vsel %vm334, %v864, 0
        %v1525 = vsel %vm334, %v865, 0
        %v1528 = vsel %vm334, %v866, 0
        %1530 = vmatprep.subr.mxu0 0.0
        %1531 = vmatpush1.msra.mxu0 0.0
        %1532 = vmatprep.subr.mxu0 0.0
        %1533 = vmatpush1.msra.mxu0 0.0
        %1534 = vmatprep.subr.mxu0 0.0
        %1535 = vmatpush1.msra.mxu0 0.0
        %1536 = vmatprep.subr.mxu0 0.0
        %1537 = vmatpush1.msra.mxu0 0.0
        %1538 = vmatprep.subr.mxu0 0.0
        %1539 = vmatpush1.msra.mxu0 0.0
        %1540 = vmatprep.subr.mxu0 0.0
        %1541 = vmatpush1.msra.mxu0 0.0
        %1542 = vmatprep.subr.mxu0 0.0
        %1543 = vmatpush1.msra.mxu0 0.0
        %1544 = vmatprep.subr.mxu0 0.0
        %1545 = vmatpush1.msra.mxu0 0.0
        %1546 = vmatprep.subr.mxu0 0.0
        %1547 = vmatpush1.msra.mxu0 0.0
        %1548 = vmatprep.subr.mxu0 0.0
        %1549 = vmatpush1.msra.mxu0 0.0
        %1550 = vmatprep.subr.mxu0 0.0
        %1551 = vmatpush1.msra.mxu0 0.0
        %1552 = vmatprep.subr.mxu0 0.0
        %1553 = vmatpush1.msra.mxu0 0.0
        %1554 = vmatprep.subr.mxu0 0.0
        %1555 = vmatpush1.msra.mxu0 0.0
        %1556 = vmatprep.subr.mxu0 0.0
        %1557 = vmatpush1.msra.mxu0 0.0
        %1558 = vmatprep.subr.mxu0 0.0
        %1559 = vmatpush1.msra.mxu0 0.0
        %1560 = vmatprep.subr.mxu0 0.0
        %1561 = vmatpush1.msra.mxu0 %v867
        %1562 = vmatprep.subr.mxu0 0.0
        %1563 = vmatpush2.msra.mxu0 0.0
        %1564 = vmatprep.subr.mxu0 0.0
        %1565 = vmatpush2.msra.mxu0 0.0
        %1566 = vmatprep.subr.mxu0 0.0
        %1567 = vmatpush2.msra.mxu0 0.0
        %1568 = vmatprep.subr.mxu0 0.0
        %1569 = vmatpush2.msra.mxu0 0.0
        %1570 = vmatprep.subr.mxu0 0.0
        %1571 = vmatpush2.msra.mxu0 0.0
        %1572 = vmatprep.subr.mxu0 0.0
        %1573 = vmatpush2.msra.mxu0 0.0
        %1574 = vmatprep.subr.mxu0 0.0
        %1575 = vmatpush2.msra.mxu0 0.0
        %1576 = vmatprep.subr.mxu0 0.0
        %1577 = vmatpush2.msra.mxu0 0.0
        %1578 = vmatprep.subr.mxu0 0.0
        %1579 = vmatpush2.msra.mxu0 0.0
        %1580 = vmatprep.subr.mxu0 0.0
        %1581 = vmatpush2.msra.mxu0 0.0
        %1582 = vmatprep.subr.mxu0 0.0
        %1583 = vmatpush2.msra.mxu0 0.0
        %1584 = vmatprep.subr.mxu0 0.0
        %1585 = vmatpush2.msra.mxu0 0.0
        %1586 = vmatprep.subr.mxu0 0.0
        %1587 = vmatpush2.msra.mxu0 0.0
        %1588 = vmatprep.subr.mxu0 0.0
        %1589 = vmatpush2.msra.mxu0 0.0
        %1590 = vmatprep.subr.mxu0 0.0
        %1591 = vmatpush2.msra.mxu0 0.0
        %1592 = vmatprep.subr.mxu0 0.0
        %1593 = vmatpush2.msra.mxu0 0.0
        %1594 = vmatprep.mubr.f32.mxu0 0.0
        %1595 = vmatmul.mubr.f32.gmra.mxu0 %v1519
        %v1596 = vpop.f32.mrf.mxu0
        %v1597 = vadd.f32 %v1500, %v1596
        %v1598 = vpop.f32.mrf.mxu0
        %1599 = vmatprep.mubr.f32.mxu0 0.0
        %1600 = vmatmul.mubr.f32.gmra.mxu0 %v1522
        %v1601 = vpop.f32.mrf.mxu0
        %v1602 = vadd.f32 %v1505, %v1601
        %v1603 = vpop.f32.mrf.mxu0
        %1604 = vmatprep.mubr.f32.mxu0 0.0
        %1605 = vmatmul.mubr.f32.gmra.mxu0 %v1525
        %v1606 = vpop.f32.mrf.mxu0
        %v1607 = vadd.f32 %v1510, %v1606
        %v1608 = vpop.f32.mrf.mxu0
        %1609 = vmatprep.mubr.f32.mxu0 0.0
        %1610 = vmatmul.mubr.f32.gmra.mxu0 %v1528
        %v1611 = vpop.f32.mrf.mxu0
        %v1612 = vadd.f32 %v1515, %v1611
        %v1613 = vpop.f32.mrf.mxu0
        %1614 = vdwg.mxu0
        %s1615 = scalar_lea.vmem %s318, 16
        %v1616 = vld [vmem:[%s1615] sm:$0xff]
        %v1617 = vadd.f32 %v1414, %v1616
        %s1618 = scalar_lea.vmem %s1, 32
        %v1619 = vld [vmem:[%s1618] sm:$0xff]
        %v1620 = vld [vmem:[%s1618 + $0x8] sm:$0xf]
        %s1621 = scalar_lea.vmem %s2, 32
        %v1622 = vld [vmem:[%s1621] sm:$0xff]
        %v1623 = vld [vmem:[%s1621 + $0x8] sm:$0xf]
        %1625 = vset.pattern.permute.xlu0 0
        %1626 = vperm.xlu0 %1625, %v1622
        %v1627 = vpop.permute.xlu0 %1626
        %1630 = vset.pattern.permute.xlu0 0
        %1631 = vperm.xlu0 %1630, %v1623
        %v1632 = vpop.permute.xlu0 %1631
        %v1635 = vsel %vm334, %v1619, 0
        %v1638 = vsel %vm334, %v1620, 0
        %1640 = vmatprep.subr.mxu0 0.0
        %1641 = vmatpush1.msra.mxu0 0.0
        %1642 = vmatprep.subr.mxu0 0.0
        %1643 = vmatpush1.msra.mxu0 0.0
        %1644 = vmatprep.subr.mxu0 0.0
        %1645 = vmatpush1.msra.mxu0 0.0
        %1646 = vmatprep.subr.mxu0 0.0
        %1647 = vmatpush1.msra.mxu0 0.0
        %1648 = vmatprep.subr.mxu0 0.0
        %1649 = vmatpush1.msra.mxu0 0.0
        %1650 = vmatprep.subr.mxu0 0.0
        %1651 = vmatpush1.msra.mxu0 0.0
        %1652 = vmatprep.subr.mxu0 0.0
        %1653 = vmatpush1.msra.mxu0 0.0
        %1654 = vmatprep.subr.mxu0 0.0
        %1655 = vmatpush1.msra.mxu0 0.0
        %1656 = vmatprep.subr.mxu0 0.0
        %1657 = vmatpush1.msra.mxu0 0.0
        %1658 = vmatprep.subr.mxu0 0.0
        %1659 = vmatpush1.msra.mxu0 0.0
        %1660 = vmatprep.subr.mxu0 0.0
        %1661 = vmatpush1.msra.mxu0 0.0
        %1662 = vmatprep.subr.mxu0 0.0
        %1663 = vmatpush1.msra.mxu0 0.0
        %1664 = vmatprep.subr.mxu0 0.0
        %1665 = vmatpush1.msra.mxu0 0.0
        %1666 = vmatprep.subr.mxu0 0.0
        %1667 = vmatpush1.msra.mxu0 0.0
        %1668 = vmatprep.subr.mxu0 0.0
        %1669 = vmatpush1.msra.mxu0 0.0
        %1670 = vmatprep.subr.mxu0 0.0
        %1671 = vmatpush1.msra.mxu0 %v1617
        %1672 = vmatprep.subr.mxu0 0.0
        %1673 = vmatpush2.msra.mxu0 0.0
        %1674 = vmatprep.subr.mxu0 0.0
        %1675 = vmatpush2.msra.mxu0 0.0
        %1676 = vmatprep.subr.mxu0 0.0
        %1677 = vmatpush2.msra.mxu0 0.0
        %1678 = vmatprep.subr.mxu0 0.0
        %1679 = vmatpush2.msra.mxu0 0.0
        %1680 = vmatprep.subr.mxu0 0.0
        %1681 = vmatpush2.msra.mxu0 0.0
        %1682 = vmatprep.subr.mxu0 0.0
        %1683 = vmatpush2.msra.mxu0 0.0
        %1684 = vmatprep.subr.mxu0 0.0
        %1685 = vmatpush2.msra.mxu0 0.0
        %1686 = vmatprep.subr.mxu0 0.0
        %1687 = vmatpush2.msra.mxu0 0.0
        %1688 = vmatprep.subr.mxu0 0.0
        %1689 = vmatpush2.msra.mxu0 0.0
        %1690 = vmatprep.subr.mxu0 0.0
        %1691 = vmatpush2.msra.mxu0 0.0
        %1692 = vmatprep.subr.mxu0 0.0
        %1693 = vmatpush2.msra.mxu0 0.0
        %1694 = vmatprep.subr.mxu0 0.0
        %1695 = vmatpush2.msra.mxu0 0.0
        %1696 = vmatprep.subr.mxu0 0.0
        %1697 = vmatpush2.msra.mxu0 0.0
        %1698 = vmatprep.subr.mxu0 0.0
        %1699 = vmatpush2.msra.mxu0 0.0
        %1700 = vmatprep.subr.mxu0 0.0
        %1701 = vmatpush2.msra.mxu0 0.0
        %1702 = vmatprep.subr.mxu0 0.0
        %1703 = vmatpush2.msra.mxu0 0.0
        %1704 = vmatprep.mubr.f32.mxu0 0.0
        %1705 = vmatmul.mubr.f32.gmra.mxu0 %v1635
        %v1706 = vpop.f32.mrf.mxu0
        %v1707 = vadd.f32 %v1627, %v1706
        %v1708 = vpop.f32.mrf.mxu0
        %1709 = vmatprep.mubr.f32.mxu0 0.0
        %1710 = vmatmul.mubr.f32.gmra.mxu0 %v1638
        %v1711 = vpop.f32.mrf.mxu0
        %v1712 = vadd.f32 %v1632, %v1711
        %v1713 = vpop.f32.mrf.mxu0
        %1714 = vdwg.mxu0
        %s1715 = scalar_lea.vmem %s3, 20
        %v1716 = vld [vmem:[%s1715] sm:$0x3]
        %v1717 = vld [vmem:[%s1715 + $0x2] sm:$0x3]
        %v1718 = vld [vmem:[%s1715 + $0x4] sm:$0x3]
        %v1719 = vld [vmem:[%s1715 + $0x6] sm:$0x3]
        %v1720 = vld [vmem:[%s1715 + $0x8] sm:$0x3]
        %s1721 = scalar_lea.vmem %s4, 4
        %v1722 = vld [vmem:[%s1721] sm:$0x3]
        %1724 = vset.pattern.permute.xlu0 0
        %1725 = vperm.xlu0 %1724, %v1722
        %v1726 = vpop.permute.xlu0 %1725
        %1728 = vrot.lane.b32.xlu0 %v1707, 2
        %v1729 = vpop.permute.xlu0 %1728
        %v1730 = vmul.f32 %v1729, %v1716
        %v1731 = vadd.f32 %v1726, %v1730
        %1732 = vrot.lane.b32.xlu0 %v1707, 1
        %v1733 = vpop.permute.xlu0 %1732
        %v1734 = vmul.f32 %v1733, %v1717
        %v1735 = vadd.f32 %v1731, %v1734
        %v1736 = vmul.f32 %v1707, %v1718
        %v1737 = vadd.f32 %v1735, %v1736
        %1738 = vrot.lane.b32.xlu0 %v1707, 127
        %v1739 = vpop.permute.xlu0 %1738
        %v1740 = vmul.f32 %v1739, %v1719
        %v1741 = vadd.f32 %v1737, %v1740
        %1742 = vrot.lane.b32.xlu0 %v1707, 126
        %v1743 = vpop.permute.xlu0 %1742
        %v1744 = vmul.f32 %v1743, %v1720
        %v1745 = vadd.f32 %v1741, %v1744
        %s1746 = scalar_lea.vmem [#allocation2], 256
        %v1747 = vld [vmem:[%s1746] sm:$0xff]
        %v1748 = vld [vmem:[%s1746 + $0x8] sm:$0xff]
        %v1749 = vld [vmem:[%s1746 + $0x10] sm:$0xff]
        %v1750 = vld [vmem:[%s1746 + $0x18] sm:$0xff]
        %v1751 = vld [vmem:[%s1746 + $0x20] sm:$0xff]
        %v1752 = vld [vmem:[%s1746 + $0x28] sm:$0xff]
        %v1753 = vld [vmem:[%s1746 + $0x30] sm:$0xff]
        %v1754 = vld [vmem:[%s1746 + $0x38] sm:$0xff]
        %v1755 = vld [vmem:[%s1746 + $0x40] sm:$0xff]
        %v1756 = vld [vmem:[%s1746 + $0x48] sm:$0xff]
        %v1757 = vld [vmem:[%s1746 + $0x50] sm:$0xff]
        %v1758 = vld [vmem:[%s1746 + $0x58] sm:$0xff]
        %v1759 = vld [vmem:[%s1746 + $0x60] sm:$0xff]
        %v1760 = vld [vmem:[%s1746 + $0x68] sm:$0xff]
        %v1761 = vld [vmem:[%s1746 + $0x70] sm:$0xff]
        %v1762 = vld [vmem:[%s1746 + $0x78] sm:$0xff]
        %v1764 = vrot.slane %v1707, 2
        %1766 = vxpose.xlu0.b32.start [1/16] %v1764, 128
        %1767 = vxpose.xlu0.b32.cont [2/16] 0.0, 128
        %1768 = vxpose.xlu0.b32.cont [3/16] 0.0, 128
        %1769 = vxpose.xlu0.b32.cont [4/16] 0.0, 128
        %1770 = vxpose.xlu0.b32.cont [5/16] 0.0, 128
        %1771 = vxpose.xlu0.b32.cont [6/16] 0.0, 128
        %1772 = vxpose.xlu0.b32.cont [7/16] 0.0, 128
        %1773 = vxpose.xlu0.b32.cont [8/16] 0.0, 128
        %1774 = vxpose.xlu0.b32.cont [9/16] 0.0, 128
        %1775 = vxpose.xlu0.b32.cont [10/16] 0.0, 128
        %1776 = vxpose.xlu0.b32.cont [11/16] 0.0, 128
        %1777 = vxpose.xlu0.b32.cont [12/16] 0.0, 128
        %1778 = vxpose.xlu0.b32.cont [13/16] 0.0, 128
        %1779 = vxpose.xlu0.b32.cont [14/16] 0.0, 128
        %1780 = vxpose.xlu0.b32.cont [15/16] 0.0, 128
        %1781 = vxpose.xlu0.b32.end [16/16] 0.0, 128
        %v1782 = vpop.trf.xlu0
        %v1783 = vpop.trf.xlu0
        %v1784 = vpop.trf.xlu0
        %v1785 = vpop.trf.xlu0
        %v1786 = vpop.trf.xlu0
        %v1787 = vpop.trf.xlu0
        %v1788 = vpop.trf.xlu0
        %v1789 = vpop.trf.xlu0
        %v1790 = vpop.trf.xlu0
        %v1791 = vpop.trf.xlu0
        %v1792 = vpop.trf.xlu0
        %v1793 = vpop.trf.xlu0
        %v1794 = vpop.trf.xlu0
        %v1795 = vpop.trf.xlu0
        %v1796 = vpop.trf.xlu0
        %v1797 = vpop.trf.xlu0
        %v1799 = vsel %vm496, %v1782, 0
        %v1802 = vsel %vm496, %v1783, 0
        %v1805 = vsel %vm496, %v1784, 0
        %v1808 = vsel %vm496, %v1785, 0
        %v1811 = vsel %vm496, %v1786, 0
        %v1814 = vsel %vm496, %v1787, 0
        %v1817 = vsel %vm496, %v1788, 0
        %v1820 = vsel %vm496, %v1789, 0
        %v1823 = vsel %vm496, %v1790, 0
        %v1826 = vsel %vm496, %v1791, 0
        %v1829 = vsel %vm496, %v1792, 0
        %v1832 = vsel %vm496, %v1793, 0
        %v1835 = vsel %vm496, %v1794, 0
        %v1838 = vsel %vm496, %v1795, 0
        %v1841 = vsel %vm496, %v1796, 0
        %v1844 = vsel %vm496, %v1797, 0
        %v1847 = vsel %vm545, %v1745, 0
        %1849 = vmatprep.subr.mxu0 0.0
        %1850 = vmatpush1.msra.mxu0 0.0
        %1851 = vmatprep.subr.mxu0 0.0
        %1852 = vmatpush1.msra.mxu0 0.0
        %1853 = vmatprep.subr.mxu0 0.0
        %1854 = vmatpush1.msra.mxu0 0.0
        %1855 = vmatprep.subr.mxu0 0.0
        %1856 = vmatpush1.msra.mxu0 0.0
        %1857 = vmatprep.subr.mxu0 0.0
        %1858 = vmatpush1.msra.mxu0 0.0
        %1859 = vmatprep.subr.mxu0 0.0
        %1860 = vmatpush1.msra.mxu0 0.0
        %1861 = vmatprep.subr.mxu0 0.0
        %1862 = vmatpush1.msra.mxu0 0.0
        %1863 = vmatprep.subr.mxu0 0.0
        %1864 = vmatpush1.msra.mxu0 0.0
        %1865 = vmatprep.subr.mxu0 0.0
        %1866 = vmatpush1.msra.mxu0 0.0
        %1867 = vmatprep.subr.mxu0 0.0
        %1868 = vmatpush1.msra.mxu0 0.0
        %1869 = vmatprep.subr.mxu0 0.0
        %1870 = vmatpush1.msra.mxu0 0.0
        %1871 = vmatprep.subr.mxu0 0.0
        %1872 = vmatpush1.msra.mxu0 0.0
        %1873 = vmatprep.subr.mxu0 0.0
        %1874 = vmatpush1.msra.mxu0 0.0
        %1875 = vmatprep.subr.mxu0 0.0
        %1876 = vmatpush1.msra.mxu0 0.0
        %1877 = vmatprep.subr.mxu0 0.0
        %1878 = vmatpush1.msra.mxu0 0.0
        %1879 = vmatprep.subr.mxu0 0.0
        %1880 = vmatpush1.msra.mxu0 %v1847
        %1881 = vmatprep.subr.mxu0 0.0
        %1882 = vmatpush2.msra.mxu0 0.0
        %1883 = vmatprep.subr.mxu0 0.0
        %1884 = vmatpush2.msra.mxu0 0.0
        %1885 = vmatprep.subr.mxu0 0.0
        %1886 = vmatpush2.msra.mxu0 0.0
        %1887 = vmatprep.subr.mxu0 0.0
        %1888 = vmatpush2.msra.mxu0 0.0
        %1889 = vmatprep.subr.mxu0 0.0
        %1890 = vmatpush2.msra.mxu0 0.0
        %1891 = vmatprep.subr.mxu0 0.0
        %1892 = vmatpush2.msra.mxu0 0.0
        %1893 = vmatprep.subr.mxu0 0.0
        %1894 = vmatpush2.msra.mxu0 0.0
        %1895 = vmatprep.subr.mxu0 0.0
        %1896 = vmatpush2.msra.mxu0 0.0
        %1897 = vmatprep.subr.mxu0 0.0
        %1898 = vmatpush2.msra.mxu0 0.0
        %1899 = vmatprep.subr.mxu0 0.0
        %1900 = vmatpush2.msra.mxu0 0.0
        %1901 = vmatprep.subr.mxu0 0.0
        %1902 = vmatpush2.msra.mxu0 0.0
        %1903 = vmatprep.subr.mxu0 0.0
        %1904 = vmatpush2.msra.mxu0 0.0
        %1905 = vmatprep.subr.mxu0 0.0
        %1906 = vmatpush2.msra.mxu0 0.0
        %1907 = vmatprep.subr.mxu0 0.0
        %1908 = vmatpush2.msra.mxu0 0.0
        %1909 = vmatprep.subr.mxu0 0.0
        %1910 = vmatpush2.msra.mxu0 0.0
        %1911 = vmatprep.subr.mxu0 0.0
        %1912 = vmatpush2.msra.mxu0 0.0
        %1913 = vmatprep.mubr.f32.mxu0 0.0
        %1914 = vmatmul.mubr.f32.gmra.mxu0 %v1799
        %v1915 = vpop.f32.mrf.mxu0
        %v1916 = vadd.f32 %v1747, %v1915
        %v1917 = vpop.f32.mrf.mxu0
        %1918 = vmatprep.mubr.f32.mxu0 0.0
        %1919 = vmatmul.mubr.f32.gmra.mxu0 %v1802
        %v1920 = vpop.f32.mrf.mxu0
        %v1921 = vadd.f32 %v1748, %v1920
        %v1922 = vpop.f32.mrf.mxu0
        %1923 = vmatprep.mubr.f32.mxu0 0.0
        %1924 = vmatmul.mubr.f32.gmra.mxu0 %v1805
        %v1925 = vpop.f32.mrf.mxu0
        %v1926 = vadd.f32 %v1749, %v1925
        %v1927 = vpop.f32.mrf.mxu0
        %1928 = vmatprep.mubr.f32.mxu0 0.0
        %1929 = vmatmul.mubr.f32.gmra.mxu0 %v1808
        %v1930 = vpop.f32.mrf.mxu0
        %v1931 = vadd.f32 %v1750, %v1930
        %v1932 = vpop.f32.mrf.mxu0
        %1933 = vmatprep.mubr.f32.mxu0 0.0
        %1934 = vmatmul.mubr.f32.gmra.mxu0 %v1811
        %v1935 = vpop.f32.mrf.mxu0
        %v1936 = vadd.f32 %v1751, %v1935
        %v1937 = vpop.f32.mrf.mxu0
        %1938 = vmatprep.mubr.f32.mxu0 0.0
        %1939 = vmatmul.mubr.f32.gmra.mxu0 %v1814
        %v1940 = vpop.f32.mrf.mxu0
        %v1941 = vadd.f32 %v1752, %v1940
        %v1942 = vpop.f32.mrf.mxu0
        %1943 = vmatprep.mubr.f32.mxu0 0.0
        %1944 = vmatmul.mubr.f32.gmra.mxu0 %v1817
        %v1945 = vpop.f32.mrf.mxu0
        %v1946 = vadd.f32 %v1753, %v1945
        %v1947 = vpop.f32.mrf.mxu0
        %1948 = vmatprep.mubr.f32.mxu0 0.0
        %1949 = vmatmul.mubr.f32.gmra.mxu0 %v1820
        %v1950 = vpop.f32.mrf.mxu0
        %v1951 = vadd.f32 %v1754, %v1950
        %v1952 = vpop.f32.mrf.mxu0
        %1953 = vmatprep.mubr.f32.mxu0 0.0
        %1954 = vmatmul.mubr.f32.gmra.mxu0 %v1823
        %v1955 = vpop.f32.mrf.mxu0
        %v1956 = vadd.f32 %v1755, %v1955
        %v1957 = vpop.f32.mrf.mxu0
        %1958 = vmatprep.mubr.f32.mxu0 0.0
        %1959 = vmatmul.mubr.f32.gmra.mxu0 %v1826
        %v1960 = vpop.f32.mrf.mxu0
        %v1961 = vadd.f32 %v1756, %v1960
        %v1962 = vpop.f32.mrf.mxu0
        %1963 = vmatprep.mubr.f32.mxu0 0.0
        %1964 = vmatmul.mubr.f32.gmra.mxu0 %v1829
        %v1965 = vpop.f32.mrf.mxu0
        %v1966 = vadd.f32 %v1757, %v1965
        %v1967 = vpop.f32.mrf.mxu0
        %1968 = vmatprep.mubr.f32.mxu0 0.0
        %1969 = vmatmul.mubr.f32.gmra.mxu0 %v1832
        %v1970 = vpop.f32.mrf.mxu0
        %v1971 = vadd.f32 %v1758, %v1970
        %v1972 = vpop.f32.mrf.mxu0
        %1973 = vmatprep.mubr.f32.mxu0 0.0
        %1974 = vmatmul.mubr.f32.gmra.mxu0 %v1835
        %v1975 = vpop.f32.mrf.mxu0
        %v1976 = vadd.f32 %v1759, %v1975
        %v1977 = vpop.f32.mrf.mxu0
        %1978 = vmatprep.mubr.f32.mxu0 0.0
        %1979 = vmatmul.mubr.f32.gmra.mxu0 %v1838
        %v1980 = vpop.f32.mrf.mxu0
        %v1981 = vadd.f32 %v1760, %v1980
        %v1982 = vpop.f32.mrf.mxu0
        %1983 = vmatprep.mubr.f32.mxu0 0.0
        %1984 = vmatmul.mubr.f32.gmra.mxu0 %v1841
        %v1985 = vpop.f32.mrf.mxu0
        %v1986 = vadd.f32 %v1761, %v1985
        %v1987 = vpop.f32.mrf.mxu0
        %1988 = vmatprep.mubr.f32.mxu0 0.0
        %1989 = vmatmul.mubr.f32.gmra.mxu0 %v1844
        %v1990 = vpop.f32.mrf.mxu0
        %v1991 = vadd.f32 %v1762, %v1990
        %v1992 = vpop.f32.mrf.mxu0
        %1993 = vdwg.mxu0
        %v1994 = vmax.f32 %v1916, %v1936
        %v1995 = vmax.f32 %v1921, %v1941
        %v1996 = vmax.f32 %v1926, %v1946
        %v1997 = vmax.f32 %v1931, %v1951
        %v1998 = vmax.f32 %v1994, %v1956
        %v1999 = vmax.f32 %v1995, %v1961
        %v2000 = vmax.f32 %v1996, %v1966
        %v2001 = vmax.f32 %v1997, %v1971
        %v2002 = vmax.f32 %v1998, %v1976
        %v2003 = vmax.f32 %v1999, %v1981
        %v2004 = vmax.f32 %v2000, %v1986
        %v2005 = vmax.f32 %v2001, %v1991
        %v2006 = vmax.f32 %v2002, %v2003
        %v2007 = vmax.f32 %v2004, %v2005
        %v2008 = vmax.f32 %v2006, %v2007
        %v2009 = vrot.slane %v2008, 4
        %v2010 = vmax.f32 %v2008, %v2009
        %v2011 = vrot.slane %v2010, 2
        %v2012 = vmax.f32 %v2010, %v2011
        %v2013 = vrot.slane %v2012, 1
        %v2014 = vmax.f32 %v2012, %v2013
        %v2015 = vsub.f32 %v1916, %v2014
        %v2016 = vsub.f32 %v1921, %v2014
        %v2017 = vsub.f32 %v1926, %v2014
        %v2018 = vsub.f32 %v1931, %v2014
        %v2019 = vsub.f32 %v1936, %v2014
        %v2020 = vsub.f32 %v1941, %v2014
        %v2021 = vsub.f32 %v1946, %v2014
        %v2022 = vsub.f32 %v1951, %v2014
        %v2023 = vsub.f32 %v1956, %v2014
        %v2024 = vsub.f32 %v1961, %v2014
        %v2025 = vsub.f32 %v1966, %v2014
        %v2026 = vsub.f32 %v1971, %v2014
        %v2027 = vsub.f32 %v1976, %v2014
        %v2028 = vsub.f32 %v1981, %v2014
        %v2029 = vsub.f32 %v1986, %v2014
        %v2030 = vsub.f32 %v1991, %v2014
        %v2031 = vmul.f32 %v2015, 1.442695
        %v2032 = vpow.pop %v2031
        %v2033 = vmul.f32 %v2016, 1.442695
        %v2034 = vpow.pop %v2033
        %v2035 = vmul.f32 %v2017, 1.442695
        %v2036 = vpow.pop %v2035
        %v2037 = vmul.f32 %v2018, 1.442695
        %v2038 = vpow.pop %v2037
        %v2039 = vmul.f32 %v2019, 1.442695
        %v2040 = vpow.pop %v2039
        %v2041 = vmul.f32 %v2020, 1.442695
        %v2042 = vpow.pop %v2041
        %v2043 = vmul.f32 %v2021, 1.442695
        %v2044 = vpow.pop %v2043
        %v2045 = vmul.f32 %v2022, 1.442695
        %v2046 = vpow.pop %v2045
        %v2047 = vmul.f32 %v2023, 1.442695
        %v2048 = vpow.pop %v2047
        %v2049 = vmul.f32 %v2024, 1.442695
        %v2050 = vpow.pop %v2049
        %v2051 = vmul.f32 %v2025, 1.442695
        %v2052 = vpow.pop %v2051
        %v2053 = vmul.f32 %v2026, 1.442695
        %v2054 = vpow.pop %v2053
        %v2055 = vmul.f32 %v2027, 1.442695
        %v2056 = vpow.pop %v2055
        %v2057 = vmul.f32 %v2028, 1.442695
        %v2058 = vpow.pop %v2057
        %v2059 = vmul.f32 %v2029, 1.442695
        %v2060 = vpow.pop %v2059
        %v2061 = vmul.f32 %v2030, 1.442695
        %v2062 = vpow.pop %v2061
        %v2063 = vadd.f32 %v2032, %v2034
        %v2064 = vadd.f32 %v2063, %v2036
        %v2065 = vadd.f32 %v2064, %v2038
        %v2066 = vadd.f32 %v2065, %v2040
        %v2067 = vadd.f32 %v2066, %v2042
        %v2068 = vadd.f32 %v2067, %v2044
        %v2069 = vadd.f32 %v2068, %v2046
        %v2070 = vadd.f32 %v2069, %v2048
        %v2071 = vadd.f32 %v2070, %v2050
        %v2072 = vadd.f32 %v2071, %v2052
        %v2073 = vadd.f32 %v2072, %v2054
        %v2074 = vadd.f32 %v2073, %v2056
        %v2075 = vadd.f32 %v2074, %v2058
        %v2076 = vadd.f32 %v2075, %v2060
        %v2077 = vadd.f32 %v2076, %v2062
        %v2078 = vrot.slane %v2077, 4
        %v2079 = vadd.f32 %v2077, %v2078
        %v2080 = vrot.slane %v2079, 2
        %v2081 = vadd.f32 %v2079, %v2080
        %v2082 = vrot.slane %v2081, 1
        %v2083 = vadd.f32 %v2081, %v2082
        %v2085 = vrot.slane %v1707, 4
        %v2086 = vrot.slane %v1712, 4
        %v2087 = vsel %vm785, %v2085, %v2086
        %2089 = vmatprep.subr.mxu0 0.0
        %2090 = vmatpush1.msra.mxu0 %v2062
        %2091 = vmatprep.subr.mxu0 0.0
        %2092 = vmatpush1.msra.mxu0 %v2060
        %2093 = vmatprep.subr.mxu0 0.0
        %2094 = vmatpush1.msra.mxu0 %v2058
        %2095 = vmatprep.subr.mxu0 0.0
        %2096 = vmatpush1.msra.mxu0 %v2056
        %2097 = vmatprep.subr.mxu0 0.0
        %2098 = vmatpush1.msra.mxu0 %v2054
        %2099 = vmatprep.subr.mxu0 0.0
        %2100 = vmatpush1.msra.mxu0 %v2052
        %2101 = vmatprep.subr.mxu0 0.0
        %2102 = vmatpush1.msra.mxu0 %v2050
        %2103 = vmatprep.subr.mxu0 0.0
        %2104 = vmatpush1.msra.mxu0 %v2048
        %2105 = vmatprep.subr.mxu0 0.0
        %2106 = vmatpush1.msra.mxu0 %v2046
        %2107 = vmatprep.subr.mxu0 0.0
        %2108 = vmatpush1.msra.mxu0 %v2044
        %2109 = vmatprep.subr.mxu0 0.0
        %2110 = vmatpush1.msra.mxu0 %v2042
        %2111 = vmatprep.subr.mxu0 0.0
        %2112 = vmatpush1.msra.mxu0 %v2040
        %2113 = vmatprep.subr.mxu0 0.0
        %2114 = vmatpush1.msra.mxu0 %v2038
        %2115 = vmatprep.subr.mxu0 0.0
        %2116 = vmatpush1.msra.mxu0 %v2036
        %2117 = vmatprep.subr.mxu0 0.0
        %2118 = vmatpush1.msra.mxu0 %v2034
        %2119 = vmatprep.subr.mxu0 0.0
        %2120 = vmatpush1.msra.mxu0 %v2032
        %2121 = vmatprep.subr.mxu0 0.0
        %2122 = vmatpush2.msra.mxu0 0.0
        %2123 = vmatprep.subr.mxu0 0.0
        %2124 = vmatpush2.msra.mxu0 0.0
        %2125 = vmatprep.subr.mxu0 0.0
        %2126 = vmatpush2.msra.mxu0 0.0
        %2127 = vmatprep.subr.mxu0 0.0
        %2128 = vmatpush2.msra.mxu0 0.0
        %2129 = vmatprep.subr.mxu0 0.0
        %2130 = vmatpush2.msra.mxu0 0.0
        %2131 = vmatprep.subr.mxu0 0.0
        %2132 = vmatpush2.msra.mxu0 0.0
        %2133 = vmatprep.subr.mxu0 0.0
        %2134 = vmatpush2.msra.mxu0 0.0
        %2135 = vmatprep.subr.mxu0 0.0
        %2136 = vmatpush2.msra.mxu0 0.0
        %2137 = vmatprep.subr.mxu0 0.0
        %2138 = vmatpush2.msra.mxu0 0.0
        %2139 = vmatprep.subr.mxu0 0.0
        %2140 = vmatpush2.msra.mxu0 0.0
        %2141 = vmatprep.subr.mxu0 0.0
        %2142 = vmatpush2.msra.mxu0 0.0
        %2143 = vmatprep.subr.mxu0 0.0
        %2144 = vmatpush2.msra.mxu0 0.0
        %2145 = vmatprep.subr.mxu0 0.0
        %2146 = vmatpush2.msra.mxu0 0.0
        %2147 = vmatprep.subr.mxu0 0.0
        %2148 = vmatpush2.msra.mxu0 0.0
        %2149 = vmatprep.subr.mxu0 0.0
        %2150 = vmatpush2.msra.mxu0 0.0
        %2151 = vmatprep.subr.mxu0 0.0
        %2152 = vmatpush2.msra.mxu0 0.0
        %2153 = vmatprep.mubr.f32.mxu0 0.0
        %2154 = vmatmul.mubr.f32.gmra.mxu0 %v2087
        %v2155 = vpop.f32.mrf.mxu0
        %v2156 = vadd.f32 0.0, %v2155
        %v2157 = vpop.f32.mrf.mxu0
        %2158 = vdwg.mxu0
        %v2159 = vrcp.pop %v2083
        %v2160 = vmul.f32 1.0, %v2159
        %v2161 = vmul.f32 %v2156, %v2160
        %s2162 = scalar_lea.vmem %s6, 64
        %v2163 = vld [vmem:[%s2162] sm:$0xff]
        %v2164 = vld [vmem:[%s2162 + $0x8] sm:$0xff]
        %v2165 = vld [vmem:[%s2162 + $0x10] sm:$0xff]
        %v2166 = vld [vmem:[%s2162 + $0x18] sm:$0xff]
        %v2167 = vmax.f32 %v2161, 0.0
        %v2169 = vsel %vm334, %v2163, 0
        %v2172 = vsel %vm334, %v2164, 0
        %v2175 = vsel %vm334, %v2165, 0
        %v2178 = vsel %vm334, %v2166, 0
        %2180 = vmatprep.subr.mxu0 0.0
        %2181 = vmatpush1.msra.mxu0 0.0
        %2182 = vmatprep.subr.mxu0 0.0
        %2183 = vmatpush1.msra.mxu0 0.0
        %2184 = vmatprep.subr.mxu0 0.0
        %2185 = vmatpush1.msra.mxu0 0.0
        %2186 = vmatprep.subr.mxu0 0.0
        %2187 = vmatpush1.msra.mxu0 0.0
        %2188 = vmatprep.subr.mxu0 0.0
        %2189 = vmatpush1.msra.mxu0 0.0
        %2190 = vmatprep.subr.mxu0 0.0
        %2191 = vmatpush1.msra.mxu0 0.0
        %2192 = vmatprep.subr.mxu0 0.0
        %2193 = vmatpush1.msra.mxu0 0.0
        %2194 = vmatprep.subr.mxu0 0.0
        %2195 = vmatpush1.msra.mxu0 0.0
        %2196 = vmatprep.subr.mxu0 0.0
        %2197 = vmatpush1.msra.mxu0 0.0
        %2198 = vmatprep.subr.mxu0 0.0
        %2199 = vmatpush1.msra.mxu0 0.0
        %2200 = vmatprep.subr.mxu0 0.0
        %2201 = vmatpush1.msra.mxu0 0.0
        %2202 = vmatprep.subr.mxu0 0.0
        %2203 = vmatpush1.msra.mxu0 0.0
        %2204 = vmatprep.subr.mxu0 0.0
        %2205 = vmatpush1.msra.mxu0 0.0
        %2206 = vmatprep.subr.mxu0 0.0
        %2207 = vmatpush1.msra.mxu0 0.0
        %2208 = vmatprep.subr.mxu0 0.0
        %2209 = vmatpush1.msra.mxu0 0.0
        %2210 = vmatprep.subr.mxu0 0.0
        %2211 = vmatpush1.msra.mxu0 %v2167
        %2212 = vmatprep.subr.mxu0 0.0
        %2213 = vmatpush2.msra.mxu0 0.0
        %2214 = vmatprep.subr.mxu0 0.0
        %2215 = vmatpush2.msra.mxu0 0.0
        %2216 = vmatprep.subr.mxu0 0.0
        %2217 = vmatpush2.msra.mxu0 0.0
        %2218 = vmatprep.subr.mxu0 0.0
        %2219 = vmatpush2.msra.mxu0 0.0
        %2220 = vmatprep.subr.mxu0 0.0
        %2221 = vmatpush2.msra.mxu0 0.0
        %2222 = vmatprep.subr.mxu0 0.0
        %2223 = vmatpush2.msra.mxu0 0.0
        %2224 = vmatprep.subr.mxu0 0.0
        %2225 = vmatpush2.msra.mxu0 0.0
        %2226 = vmatprep.subr.mxu0 0.0
        %2227 = vmatpush2.msra.mxu0 0.0
        %2228 = vmatprep.subr.mxu0 0.0
        %2229 = vmatpush2.msra.mxu0 0.0
        %2230 = vmatprep.subr.mxu0 0.0
        %2231 = vmatpush2.msra.mxu0 0.0
        %2232 = vmatprep.subr.mxu0 0.0
        %2233 = vmatpush2.msra.mxu0 0.0
        %2234 = vmatprep.subr.mxu0 0.0
        %2235 = vmatpush2.msra.mxu0 0.0
        %2236 = vmatprep.subr.mxu0 0.0
        %2237 = vmatpush2.msra.mxu0 0.0
        %2238 = vmatprep.subr.mxu0 0.0
        %2239 = vmatpush2.msra.mxu0 0.0
        %2240 = vmatprep.subr.mxu0 0.0
        %2241 = vmatpush2.msra.mxu0 0.0
        %2242 = vmatprep.subr.mxu0 0.0
        %2243 = vmatpush2.msra.mxu0 0.0
        %2244 = vmatprep.mubr.f32.mxu0 0.0
        %2245 = vmatmul.mubr.f32.gmra.mxu0 %v2169
        %v2246 = vpop.f32.mrf.mxu0
        %v2247 = vadd.f32 0.0, %v2246
        %v2248 = vpop.f32.mrf.mxu0
        %2249 = vmatprep.mubr.f32.mxu0 0.0
        %2250 = vmatmul.mubr.f32.gmra.mxu0 %v2172
        %v2251 = vpop.f32.mrf.mxu0
        %v2252 = vadd.f32 0.0, %v2251
        %v2253 = vpop.f32.mrf.mxu0
        %2254 = vmatprep.mubr.f32.mxu0 0.0
        %2255 = vmatmul.mubr.f32.gmra.mxu0 %v2175
        %v2256 = vpop.f32.mrf.mxu0
        %v2257 = vadd.f32 0.0, %v2256
        %v2258 = vpop.f32.mrf.mxu0
        %2259 = vmatprep.mubr.f32.mxu0 0.0
        %2260 = vmatmul.mubr.f32.gmra.mxu0 %v2178
        %v2261 = vpop.f32.mrf.mxu0
        %v2262 = vadd.f32 0.0, %v2261
        %v2263 = vpop.f32.mrf.mxu0
        %2264 = vdwg.mxu0
        %v2265 = vadd.f32 %v1597, %v2247
        %v2266 = vadd.f32 %v1602, %v2252
        %v2267 = vadd.f32 %v1607, %v2257
        %v2268 = vadd.f32 %v1612, %v2262
        %s2269 = scalar_lea.vmem %s318, 24
        %v2270 = vld [vmem:[%s2269] sm:$0xff]
        %v2271 = vadd.f32 %v2161, %v2270
        %s2272 = scalar_lea.vmem %s1, 48
        %v2273 = vld [vmem:[%s2272] sm:$0xff]
        %v2274 = vld [vmem:[%s2272 + $0x8] sm:$0xf]
        %s2275 = scalar_lea.vmem %s2, 48
        %v2276 = vld [vmem:[%s2275] sm:$0xff]
        %v2277 = vld [vmem:[%s2275 + $0x8] sm:$0xf]
        %2279 = vset.pattern.permute.xlu0 0
        %2280 = vperm.xlu0 %2279, %v2276
        %v2281 = vpop.permute.xlu0 %2280
        %2284 = vset.pattern.permute.xlu0 0
        %2285 = vperm.xlu0 %2284, %v2277
        %v2286 = vpop.permute.xlu0 %2285
        %v2289 = vsel %vm334, %v2273, 0
        %v2292 = vsel %vm334, %v2274, 0
        %2294 = vmatprep.subr.mxu0 0.0
        %2295 = vmatpush1.msra.mxu0 0.0
        %2296 = vmatprep.subr.mxu0 0.0
        %2297 = vmatpush1.msra.mxu0 0.0
        %2298 = vmatprep.subr.mxu0 0.0
        %2299 = vmatpush1.msra.mxu0 0.0
        %2300 = vmatprep.subr.mxu0 0.0
        %2301 = vmatpush1.msra.mxu0 0.0
        %2302 = vmatprep.subr.mxu0 0.0
        %2303 = vmatpush1.msra.mxu0 0.0
        %2304 = vmatprep.subr.mxu0 0.0
        %2305 = vmatpush1.msra.mxu0 0.0
        %2306 = vmatprep.subr.mxu0 0.0
        %2307 = vmatpush1.msra.mxu0 0.0
        %2308 = vmatprep.subr.mxu0 0.0
        %2309 = vmatpush1.msra.mxu0 0.0
        %2310 = vmatprep.subr.mxu0 0.0
        %2311 = vmatpush1.msra.mxu0 0.0
        %2312 = vmatprep.subr.mxu0 0.0
        %2313 = vmatpush1.msra.mxu0 0.0
        %2314 = vmatprep.subr.mxu0 0.0
        %2315 = vmatpush1.msra.mxu0 0.0
        %2316 = vmatprep.subr.mxu0 0.0
        %2317 = vmatpush1.msra.mxu0 0.0
        %2318 = vmatprep.subr.mxu0 0.0
        %2319 = vmatpush1.msra.mxu0 0.0
        %2320 = vmatprep.subr.mxu0 0.0
        %2321 = vmatpush1.msra.mxu0 0.0
        %2322 = vmatprep.subr.mxu0 0.0
        %2323 = vmatpush1.msra.mxu0 0.0
        %2324 = vmatprep.subr.mxu0 0.0
        %2325 = vmatpush1.msra.mxu0 %v2271
        %2326 = vmatprep.subr.mxu0 0.0
        %2327 = vmatpush2.msra.mxu0 0.0
        %2328 = vmatprep.subr.mxu0 0.0
        %2329 = vmatpush2.msra.mxu0 0.0
        %2330 = vmatprep.subr.mxu0 0.0
        %2331 = vmatpush2.msra.mxu0 0.0
        %2332 = vmatprep.subr.mxu0 0.0
        %2333 = vmatpush2.msra.mxu0 0.0
        %2334 = vmatprep.subr.mxu0 0.0
        %2335 = vmatpush2.msra.mxu0 0.0
        %2336 = vmatprep.subr.mxu0 0.0
        %2337 = vmatpush2.msra.mxu0 0.0
        %2338 = vmatprep.subr.mxu0 0.0
        %2339 = vmatpush2.msra.mxu0 0.0
        %2340 = vmatprep.subr.mxu0 0.0
        %2341 = vmatpush2.msra.mxu0 0.0
        %2342 = vmatprep.subr.mxu0 0.0
        %2343 = vmatpush2.msra.mxu0 0.0
        %2344 = vmatprep.subr.mxu0 0.0
        %2345 = vmatpush2.msra.mxu0 0.0
        %2346 = vmatprep.subr.mxu0 0.0
        %2347 = vmatpush2.msra.mxu0 0.0
        %2348 = vmatprep.subr.mxu0 0.0
        %2349 = vmatpush2.msra.mxu0 0.0
        %2350 = vmatprep.subr.mxu0 0.0
        %2351 = vmatpush2.msra.mxu0 0.0
        %2352 = vmatprep.subr.mxu0 0.0
        %2353 = vmatpush2.msra.mxu0 0.0
        %2354 = vmatprep.subr.mxu0 0.0
        %2355 = vmatpush2.msra.mxu0 0.0
        %2356 = vmatprep.subr.mxu0 0.0
        %2357 = vmatpush2.msra.mxu0 0.0
        %2358 = vmatprep.mubr.f32.mxu0 0.0
        %2359 = vmatmul.mubr.f32.gmra.mxu0 %v2289
        %v2360 = vpop.f32.mrf.mxu0
        %v2361 = vadd.f32 %v2281, %v2360
        %v2362 = vpop.f32.mrf.mxu0
        %2363 = vmatprep.mubr.f32.mxu0 0.0
        %2364 = vmatmul.mubr.f32.gmra.mxu0 %v2292
        %v2365 = vpop.f32.mrf.mxu0
        %v2366 = vadd.f32 %v2286, %v2365
        %v2367 = vpop.f32.mrf.mxu0
        %2368 = vdwg.mxu0
        %s2369 = scalar_lea.vmem %s3, 30
        %v2370 = vld [vmem:[%s2369] sm:$0x3]
        %v2371 = vld [vmem:[%s2369 + $0x2] sm:$0x3]
        %v2372 = vld [vmem:[%s2369 + $0x4] sm:$0x3]
        %v2373 = vld [vmem:[%s2369 + $0x6] sm:$0x3]
        %v2374 = vld [vmem:[%s2369 + $0x8] sm:$0x3]
        %s2375 = scalar_lea.vmem %s4, 6
        %v2376 = vld [vmem:[%s2375] sm:$0x3]
        %2378 = vset.pattern.permute.xlu0 0
        %2379 = vperm.xlu0 %2378, %v2376
        %v2380 = vpop.permute.xlu0 %2379
        %2382 = vrot.lane.b32.xlu0 %v2361, 2
        %v2383 = vpop.permute.xlu0 %2382
        %v2384 = vmul.f32 %v2383, %v2370
        %v2385 = vadd.f32 %v2380, %v2384
        %2386 = vrot.lane.b32.xlu0 %v2361, 1
        %v2387 = vpop.permute.xlu0 %2386
        %v2388 = vmul.f32 %v2387, %v2371
        %v2389 = vadd.f32 %v2385, %v2388
        %v2390 = vmul.f32 %v2361, %v2372
        %v2391 = vadd.f32 %v2389, %v2390
        %2392 = vrot.lane.b32.xlu0 %v2361, 127
        %v2393 = vpop.permute.xlu0 %2392
        %v2394 = vmul.f32 %v2393, %v2373
        %v2395 = vadd.f32 %v2391, %v2394
        %2396 = vrot.lane.b32.xlu0 %v2361, 126
        %v2397 = vpop.permute.xlu0 %2396
        %v2398 = vmul.f32 %v2397, %v2374
        %v2399 = vadd.f32 %v2395, %v2398
        %s2400 = scalar_lea.vmem [#allocation2], 384
        %v2401 = vld [vmem:[%s2400] sm:$0xff]
        %v2402 = vld [vmem:[%s2400 + $0x8] sm:$0xff]
        %v2403 = vld [vmem:[%s2400 + $0x10] sm:$0xff]
        %v2404 = vld [vmem:[%s2400 + $0x18] sm:$0xff]
        %v2405 = vld [vmem:[%s2400 + $0x20] sm:$0xff]
        %v2406 = vld [vmem:[%s2400 + $0x28] sm:$0xff]
        %v2407 = vld [vmem:[%s2400 + $0x30] sm:$0xff]
        %v2408 = vld [vmem:[%s2400 + $0x38] sm:$0xff]
        %v2409 = vld [vmem:[%s2400 + $0x40] sm:$0xff]
        %v2410 = vld [vmem:[%s2400 + $0x48] sm:$0xff]
        %v2411 = vld [vmem:[%s2400 + $0x50] sm:$0xff]
        %v2412 = vld [vmem:[%s2400 + $0x58] sm:$0xff]
        %v2413 = vld [vmem:[%s2400 + $0x60] sm:$0xff]
        %v2414 = vld [vmem:[%s2400 + $0x68] sm:$0xff]
        %v2415 = vld [vmem:[%s2400 + $0x70] sm:$0xff]
        %v2416 = vld [vmem:[%s2400 + $0x78] sm:$0xff]
        %v2418 = vrot.slane %v2361, 2
        %2420 = vxpose.xlu0.b32.start [1/16] %v2418, 128
        %2421 = vxpose.xlu0.b32.cont [2/16] 0.0, 128
        %2422 = vxpose.xlu0.b32.cont [3/16] 0.0, 128
        %2423 = vxpose.xlu0.b32.cont [4/16] 0.0, 128
        %2424 = vxpose.xlu0.b32.cont [5/16] 0.0, 128
        %2425 = vxpose.xlu0.b32.cont [6/16] 0.0, 128
        %2426 = vxpose.xlu0.b32.cont [7/16] 0.0, 128
        %2427 = vxpose.xlu0.b32.cont [8/16] 0.0, 128
        %2428 = vxpose.xlu0.b32.cont [9/16] 0.0, 128
        %2429 = vxpose.xlu0.b32.cont [10/16] 0.0, 128
        %2430 = vxpose.xlu0.b32.cont [11/16] 0.0, 128
        %2431 = vxpose.xlu0.b32.cont [12/16] 0.0, 128
        %2432 = vxpose.xlu0.b32.cont [13/16] 0.0, 128
        %2433 = vxpose.xlu0.b32.cont [14/16] 0.0, 128
        %2434 = vxpose.xlu0.b32.cont [15/16] 0.0, 128
        %2435 = vxpose.xlu0.b32.end [16/16] 0.0, 128
        %v2436 = vpop.trf.xlu0
        %v2437 = vpop.trf.xlu0
        %v2438 = vpop.trf.xlu0
        %v2439 = vpop.trf.xlu0
        %v2440 = vpop.trf.xlu0
        %v2441 = vpop.trf.xlu0
        %v2442 = vpop.trf.xlu0
        %v2443 = vpop.trf.xlu0
        %v2444 = vpop.trf.xlu0
        %v2445 = vpop.trf.xlu0
        %v2446 = vpop.trf.xlu0
        %v2447 = vpop.trf.xlu0
        %v2448 = vpop.trf.xlu0
        %v2449 = vpop.trf.xlu0
        %v2450 = vpop.trf.xlu0
        %v2451 = vpop.trf.xlu0
        %v2453 = vsel %vm496, %v2436, 0
        %v2456 = vsel %vm496, %v2437, 0
        %v2459 = vsel %vm496, %v2438, 0
        %v2462 = vsel %vm496, %v2439, 0
        %v2465 = vsel %vm496, %v2440, 0
        %v2468 = vsel %vm496, %v2441, 0
        %v2471 = vsel %vm496, %v2442, 0
        %v2474 = vsel %vm496, %v2443, 0
        %v2477 = vsel %vm496, %v2444, 0
        %v2480 = vsel %vm496, %v2445, 0
        %v2483 = vsel %vm496, %v2446, 0
        %v2486 = vsel %vm496, %v2447, 0
        %v2489 = vsel %vm496, %v2448, 0
        %v2492 = vsel %vm496, %v2449, 0
        %v2495 = vsel %vm496, %v2450, 0
        %v2498 = vsel %vm496, %v2451, 0
        %v2501 = vsel %vm545, %v2399, 0
        %2503 = vmatprep.subr.mxu0 0.0
        %2504 = vmatpush1.msra.mxu0 0.0
        %2505 = vmatprep.subr.mxu0 0.0
        %2506 = vmatpush1.msra.mxu0 0.0
        %2507 = vmatprep.subr.mxu0 0.0
        %2508 = vmatpush1.msra.mxu0 0.0
        %2509 = vmatprep.subr.mxu0 0.0
        %2510 = vmatpush1.msra.mxu0 0.0
        %2511 = vmatprep.subr.mxu0 0.0
        %2512 = vmatpush1.msra.mxu0 0.0
        %2513 = vmatprep.subr.mxu0 0.0
        %2514 = vmatpush1.msra.mxu0 0.0
        %2515 = vmatprep.subr.mxu0 0.0
        %2516 = vmatpush1.msra.mxu0 0.0
        %2517 = vmatprep.subr.mxu0 0.0
        %2518 = vmatpush1.msra.mxu0 0.0
        %2519 = vmatprep.subr.mxu0 0.0
        %2520 = vmatpush1.msra.mxu0 0.0
        %2521 = vmatprep.subr.mxu0 0.0
        %2522 = vmatpush1.msra.mxu0 0.0
        %2523 = vmatprep.subr.mxu0 0.0
        %2524 = vmatpush1.msra.mxu0 0.0
        %2525 = vmatprep.subr.mxu0 0.0
        %2526 = vmatpush1.msra.mxu0 0.0
        %2527 = vmatprep.subr.mxu0 0.0
        %2528 = vmatpush1.msra.mxu0 0.0
        %2529 = vmatprep.subr.mxu0 0.0
        %2530 = vmatpush1.msra.mxu0 0.0
        %2531 = vmatprep.subr.mxu0 0.0
        %2532 = vmatpush1.msra.mxu0 0.0
        %2533 = vmatprep.subr.mxu0 0.0
        %2534 = vmatpush1.msra.mxu0 %v2501
        %2535 = vmatprep.subr.mxu0 0.0
        %2536 = vmatpush2.msra.mxu0 0.0
        %2537 = vmatprep.subr.mxu0 0.0
        %2538 = vmatpush2.msra.mxu0 0.0
        %2539 = vmatprep.subr.mxu0 0.0
        %2540 = vmatpush2.msra.mxu0 0.0
        %2541 = vmatprep.subr.mxu0 0.0
        %2542 = vmatpush2.msra.mxu0 0.0
        %2543 = vmatprep.subr.mxu0 0.0
        %2544 = vmatpush2.msra.mxu0 0.0
        %2545 = vmatprep.subr.mxu0 0.0
        %2546 = vmatpush2.msra.mxu0 0.0
        %2547 = vmatprep.subr.mxu0 0.0
        %2548 = vmatpush2.msra.mxu0 0.0
        %2549 = vmatprep.subr.mxu0 0.0
        %2550 = vmatpush2.msra.mxu0 0.0
        %2551 = vmatprep.subr.mxu0 0.0
        %2552 = vmatpush2.msra.mxu0 0.0
        %2553 = vmatprep.subr.mxu0 0.0
        %2554 = vmatpush2.msra.mxu0 0.0
        %2555 = vmatprep.subr.mxu0 0.0
        %2556 = vmatpush2.msra.mxu0 0.0
        %2557 = vmatprep.subr.mxu0 0.0
        %2558 = vmatpush2.msra.mxu0 0.0
        %2559 = vmatprep.subr.mxu0 0.0
        %2560 = vmatpush2.msra.mxu0 0.0
        %2561 = vmatprep.subr.mxu0 0.0
        %2562 = vmatpush2.msra.mxu0 0.0
        %2563 = vmatprep.subr.mxu0 0.0
        %2564 = vmatpush2.msra.mxu0 0.0
        %2565 = vmatprep.subr.mxu0 0.0
        %2566 = vmatpush2.msra.mxu0 0.0
        %2567 = vmatprep.mubr.f32.mxu0 0.0
        %2568 = vmatmul.mubr.f32.gmra.mxu0 %v2453
        %v2569 = vpop.f32.mrf.mxu0
        %v2570 = vadd.f32 %v2401, %v2569
        %v2571 = vpop.f32.mrf.mxu0
        %2572 = vmatprep.mubr.f32.mxu0 0.0
        %2573 = vmatmul.mubr.f32.gmra.mxu0 %v2456
        %v2574 = vpop.f32.mrf.mxu0
        %v2575 = vadd.f32 %v2402, %v2574
        %v2576 = vpop.f32.mrf.mxu0
        %2577 = vmatprep.mubr.f32.mxu0 0.0
        %2578 = vmatmul.mubr.f32.gmra.mxu0 %v2459
        %v2579 = vpop.f32.mrf.mxu0
        %v2580 = vadd.f32 %v2403, %v2579
        %v2581 = vpop.f32.mrf.mxu0
        %2582 = vmatprep.mubr.f32.mxu0 0.0
        %2583 = vmatmul.mubr.f32.gmra.mxu0 %v2462
        %v2584 = vpop.f32.mrf.mxu0
        %v2585 = vadd.f32 %v2404, %v2584
        %v2586 = vpop.f32.mrf.mxu0
        %2587 = vmatprep.mubr.f32.mxu0 0.0
        %2588 = vmatmul.mubr.f32.gmra.mxu0 %v2465
        %v2589 = vpop.f32.mrf.mxu0
        %v2590 = vadd.f32 %v2405, %v2589
        %v2591 = vpop.f32.mrf.mxu0
        %2592 = vmatprep.mubr.f32.mxu0 0.0
        %2593 = vmatmul.mubr.f32.gmra.mxu0 %v2468
        %v2594 = vpop.f32.mrf.mxu0
        %v2595 = vadd.f32 %v2406, %v2594
        %v2596 = vpop.f32.mrf.mxu0
        %2597 = vmatprep.mubr.f32.mxu0 0.0
        %2598 = vmatmul.mubr.f32.gmra.mxu0 %v2471
        %v2599 = vpop.f32.mrf.mxu0
        %v2600 = vadd.f32 %v2407, %v2599
        %v2601 = vpop.f32.mrf.mxu0
        %2602 = vmatprep.mubr.f32.mxu0 0.0
        %2603 = vmatmul.mubr.f32.gmra.mxu0 %v2474
        %v2604 = vpop.f32.mrf.mxu0
        %v2605 = vadd.f32 %v2408, %v2604
        %v2606 = vpop.f32.mrf.mxu0
        %2607 = vmatprep.mubr.f32.mxu0 0.0
        %2608 = vmatmul.mubr.f32.gmra.mxu0 %v2477
        %v2609 = vpop.f32.mrf.mxu0
        %v2610 = vadd.f32 %v2409, %v2609
        %v2611 = vpop.f32.mrf.mxu0
        %2612 = vmatprep.mubr.f32.mxu0 0.0
        %2613 = vmatmul.mubr.f32.gmra.mxu0 %v2480
        %v2614 = vpop.f32.mrf.mxu0
        %v2615 = vadd.f32 %v2410, %v2614
        %v2616 = vpop.f32.mrf.mxu0
        %2617 = vmatprep.mubr.f32.mxu0 0.0
        %2618 = vmatmul.mubr.f32.gmra.mxu0 %v2483
        %v2619 = vpop.f32.mrf.mxu0
        %v2620 = vadd.f32 %v2411, %v2619
        %v2621 = vpop.f32.mrf.mxu0
        %2622 = vmatprep.mubr.f32.mxu0 0.0
        %2623 = vmatmul.mubr.f32.gmra.mxu0 %v2486
        %v2624 = vpop.f32.mrf.mxu0
        %v2625 = vadd.f32 %v2412, %v2624
        %v2626 = vpop.f32.mrf.mxu0
        %2627 = vmatprep.mubr.f32.mxu0 0.0
        %2628 = vmatmul.mubr.f32.gmra.mxu0 %v2489
        %v2629 = vpop.f32.mrf.mxu0
        %v2630 = vadd.f32 %v2413, %v2629
        %v2631 = vpop.f32.mrf.mxu0
        %2632 = vmatprep.mubr.f32.mxu0 0.0
        %2633 = vmatmul.mubr.f32.gmra.mxu0 %v2492
        %v2634 = vpop.f32.mrf.mxu0
        %v2635 = vadd.f32 %v2414, %v2634
        %v2636 = vpop.f32.mrf.mxu0
        %2637 = vmatprep.mubr.f32.mxu0 0.0
        %2638 = vmatmul.mubr.f32.gmra.mxu0 %v2495
        %v2639 = vpop.f32.mrf.mxu0
        %v2640 = vadd.f32 %v2415, %v2639
        %v2641 = vpop.f32.mrf.mxu0
        %2642 = vmatprep.mubr.f32.mxu0 0.0
        %2643 = vmatmul.mubr.f32.gmra.mxu0 %v2498
        %v2644 = vpop.f32.mrf.mxu0
        %v2645 = vadd.f32 %v2416, %v2644
        %v2646 = vpop.f32.mrf.mxu0
        %2647 = vdwg.mxu0
        %v2648 = vmax.f32 %v2570, %v2590
        %v2649 = vmax.f32 %v2575, %v2595
        %v2650 = vmax.f32 %v2580, %v2600
        %v2651 = vmax.f32 %v2585, %v2605
        %v2652 = vmax.f32 %v2648, %v2610
        %v2653 = vmax.f32 %v2649, %v2615
        %v2654 = vmax.f32 %v2650, %v2620
        %v2655 = vmax.f32 %v2651, %v2625
        %v2656 = vmax.f32 %v2652, %v2630
        %v2657 = vmax.f32 %v2653, %v2635
        %v2658 = vmax.f32 %v2654, %v2640
        %v2659 = vmax.f32 %v2655, %v2645
        %v2660 = vmax.f32 %v2656, %v2657
        %v2661 = vmax.f32 %v2658, %v2659
        %v2662 = vmax.f32 %v2660, %v2661
        %v2663 = vrot.slane %v2662, 4
        %v2664 = vmax.f32 %v2662, %v2663
        %v2665 = vrot.slane %v2664, 2
        %v2666 = vmax.f32 %v2664, %v2665
        %v2667 = vrot.slane %v2666, 1
        %v2668 = vmax.f32 %v2666, %v2667
        %v2669 = vsub.f32 %v2570, %v2668
        %v2670 = vsub.f32 %v2575, %v2668
        %v2671 = vsub.f32 %v2580, %v2668
        %v2672 = vsub.f32 %v2585, %v2668
        %v2673 = vsub.f32 %v2590, %v2668
        %v2674 = vsub.f32 %v2595, %v2668
        %v2675 = vsub.f32 %v2600, %v2668
        %v2676 = vsub.f32 %v2605, %v2668
        %v2677 = vsub.f32 %v2610, %v2668
        %v2678 = vsub.f32 %v2615, %v2668
        %v2679 = vsub.f32 %v2620, %v2668
        %v2680 = vsub.f32 %v2625, %v2668
        %v2681 = vsub.f32 %v2630, %v2668
        %v2682 = vsub.f32 %v2635, %v2668
        %v2683 = vsub.f32 %v2640, %v2668
        %v2684 = vsub.f32 %v2645, %v2668
        %v2685 = vmul.f32 %v2669, 1.442695
        %v2686 = vpow.pop %v2685
        %v2687 = vmul.f32 %v2670, 1.442695
        %v2688 = vpow.pop %v2687
        %v2689 = vmul.f32 %v2671, 1.442695
        %v2690 = vpow.pop %v2689
        %v2691 = vmul.f32 %v2672, 1.442695
        %v2692 = vpow.pop %v2691
        %v2693 = vmul.f32 %v2673, 1.442695
        %v2694 = vpow.pop %v2693
        %v2695 = vmul.f32 %v2674, 1.442695
        %v2696 = vpow.pop %v2695
        %v2697 = vmul.f32 %v2675, 1.442695
        %v2698 = vpow.pop %v2697
        %v2699 = vmul.f32 %v2676, 1.442695
        %v2700 = vpow.pop %v2699
        %v2701 = vmul.f32 %v2677, 1.442695
        %v2702 = vpow.pop %v2701
        %v2703 = vmul.f32 %v2678, 1.442695
        %v2704 = vpow.pop %v2703
        %v2705 = vmul.f32 %v2679, 1.442695
        %v2706 = vpow.pop %v2705
        %v2707 = vmul.f32 %v2680, 1.442695
        %v2708 = vpow.pop %v2707
        %v2709 = vmul.f32 %v2681, 1.442695
        %v2710 = vpow.pop %v2709
        %v2711 = vmul.f32 %v2682, 1.442695
        %v2712 = vpow.pop %v2711
        %v2713 = vmul.f32 %v2683, 1.442695
        %v2714 = vpow.pop %v2713
        %v2715 = vmul.f32 %v2684, 1.442695
        %v2716 = vpow.pop %v2715
        %v2717 = vadd.f32 %v2686, %v2688
        %v2718 = vadd.f32 %v2717, %v2690
        %v2719 = vadd.f32 %v2718, %v2692
        %v2720 = vadd.f32 %v2719, %v2694
        %v2721 = vadd.f32 %v2720, %v2696
        %v2722 = vadd.f32 %v2721, %v2698
        %v2723 = vadd.f32 %v2722, %v2700
        %v2724 = vadd.f32 %v2723, %v2702
        %v2725 = vadd.f32 %v2724, %v2704
        %v2726 = vadd.f32 %v2725, %v2706
        %v2727 = vadd.f32 %v2726, %v2708
        %v2728 = vadd.f32 %v2727, %v2710
        %v2729 = vadd.f32 %v2728, %v2712
        %v2730 = vadd.f32 %v2729, %v2714
        %v2731 = vadd.f32 %v2730, %v2716
        %v2732 = vrot.slane %v2731, 4
        %v2733 = vadd.f32 %v2731, %v2732
        %v2734 = vrot.slane %v2733, 2
        %v2735 = vadd.f32 %v2733, %v2734
        %v2736 = vrot.slane %v2735, 1
        %v2737 = vadd.f32 %v2735, %v2736
        %v2739 = vrot.slane %v2361, 4
        %v2740 = vrot.slane %v2366, 4
        %v2741 = vsel %vm785, %v2739, %v2740
        %2743 = vmatprep.subr.mxu0 0.0
        %2744 = vmatpush1.msra.mxu0 %v2716
        %2745 = vmatprep.subr.mxu0 0.0
        %2746 = vmatpush1.msra.mxu0 %v2714
        %2747 = vmatprep.subr.mxu0 0.0
        %2748 = vmatpush1.msra.mxu0 %v2712
        %2749 = vmatprep.subr.mxu0 0.0
        %2750 = vmatpush1.msra.mxu0 %v2710
        %2751 = vmatprep.subr.mxu0 0.0
        %2752 = vmatpush1.msra.mxu0 %v2708
        %2753 = vmatprep.subr.mxu0 0.0
        %2754 = vmatpush1.msra.mxu0 %v2706
        %2755 = vmatprep.subr.mxu0 0.0
        %2756 = vmatpush1.msra.mxu0 %v2704
        %2757 = vmatprep.subr.mxu0 0.0
        %2758 = vmatpush1.msra.mxu0 %v2702
        %2759 = vmatprep.subr.mxu0 0.0
        %2760 = vmatpush1.msra.mxu0 %v2700
        %2761 = vmatprep.subr.mxu0 0.0
        %2762 = vmatpush1.msra.mxu0 %v2698
        %2763 = vmatprep.subr.mxu0 0.0
        %2764 = vmatpush1.msra.mxu0 %v2696
        %2765 = vmatprep.subr.mxu0 0.0
        %2766 = vmatpush1.msra.mxu0 %v2694
        %2767 = vmatprep.subr.mxu0 0.0
        %2768 = vmatpush1.msra.mxu0 %v2692
        %2769 = vmatprep.subr.mxu0 0.0
        %2770 = vmatpush1.msra.mxu0 %v2690
        %2771 = vmatprep.subr.mxu0 0.0
        %2772 = vmatpush1.msra.mxu0 %v2688
        %2773 = vmatprep.subr.mxu0 0.0
        %2774 = vmatpush1.msra.mxu0 %v2686
        %2775 = vmatprep.subr.mxu0 0.0
        %2776 = vmatpush2.msra.mxu0 0.0
        %2777 = vmatprep.subr.mxu0 0.0
        %2778 = vmatpush2.msra.mxu0 0.0
        %2779 = vmatprep.subr.mxu0 0.0
        %2780 = vmatpush2.msra.mxu0 0.0
        %2781 = vmatprep.subr.mxu0 0.0
        %2782 = vmatpush2.msra.mxu0 0.0
        %2783 = vmatprep.subr.mxu0 0.0
        %2784 = vmatpush2.msra.mxu0 0.0
        %2785 = vmatprep.subr.mxu0 0.0
        %2786 = vmatpush2.msra.mxu0 0.0
        %2787 = vmatprep.subr.mxu0 0.0
        %2788 = vmatpush2.msra.mxu0 0.0
        %2789 = vmatprep.subr.mxu0 0.0
        %2790 = vmatpush2.msra.mxu0 0.0
        %2791 = vmatprep.subr.mxu0 0.0
        %2792 = vmatpush2.msra.mxu0 0.0
        %2793 = vmatprep.subr.mxu0 0.0
        %2794 = vmatpush2.msra.mxu0 0.0
        %2795 = vmatprep.subr.mxu0 0.0
        %2796 = vmatpush2.msra.mxu0 0.0
        %2797 = vmatprep.subr.mxu0 0.0
        %2798 = vmatpush2.msra.mxu0 0.0
        %2799 = vmatprep.subr.mxu0 0.0
        %2800 = vmatpush2.msra.mxu0 0.0
        %2801 = vmatprep.subr.mxu0 0.0
        %2802 = vmatpush2.msra.mxu0 0.0
        %2803 = vmatprep.subr.mxu0 0.0
        %2804 = vmatpush2.msra.mxu0 0.0
        %2805 = vmatprep.subr.mxu0 0.0
        %2806 = vmatpush2.msra.mxu0 0.0
        %2807 = vmatprep.mubr.f32.mxu0 0.0
        %2808 = vmatmul.mubr.f32.gmra.mxu0 %v2741
        %v2809 = vpop.f32.mrf.mxu0
        %v2810 = vadd.f32 0.0, %v2809
        %v2811 = vpop.f32.mrf.mxu0
        %2812 = vdwg.mxu0
        %v2813 = vrcp.pop %v2737
        %v2814 = vmul.f32 1.0, %v2813
        %v2815 = vmul.f32 %v2810, %v2814
        %s2816 = scalar_lea.vmem %s6, 96
        %v2817 = vld [vmem:[%s2816] sm:$0xff]
        %v2818 = vld [vmem:[%s2816 + $0x8] sm:$0xff]
        %v2819 = vld [vmem:[%s2816 + $0x10] sm:$0xff]
        %v2820 = vld [vmem:[%s2816 + $0x18] sm:$0xff]
        %v2821 = vmax.f32 %v2815, 0.0
        %v2823 = vsel %vm334, %v2817, 0
        %v2826 = vsel %vm334, %v2818, 0
        %v2829 = vsel %vm334, %v2819, 0
        %v2832 = vsel %vm334, %v2820, 0
        %2834 = vmatprep.subr.mxu0 0.0
        %2835 = vmatpush1.msra.mxu0 0.0
        %2836 = vmatprep.subr.mxu0 0.0
        %2837 = vmatpush1.msra.mxu0 0.0
        %2838 = vmatprep.subr.mxu0 0.0
        %2839 = vmatpush1.msra.mxu0 0.0
        %2840 = vmatprep.subr.mxu0 0.0
        %2841 = vmatpush1.msra.mxu0 0.0
        %2842 = vmatprep.subr.mxu0 0.0
        %2843 = vmatpush1.msra.mxu0 0.0
        %2844 = vmatprep.subr.mxu0 0.0
        %2845 = vmatpush1.msra.mxu0 0.0
        %2846 = vmatprep.subr.mxu0 0.0
        %2847 = vmatpush1.msra.mxu0 0.0
        %2848 = vmatprep.subr.mxu0 0.0
        %2849 = vmatpush1.msra.mxu0 0.0
        %2850 = vmatprep.subr.mxu0 0.0
        %2851 = vmatpush1.msra.mxu0 0.0
        %2852 = vmatprep.subr.mxu0 0.0
        %2853 = vmatpush1.msra.mxu0 0.0
        %2854 = vmatprep.subr.mxu0 0.0
        %2855 = vmatpush1.msra.mxu0 0.0
        %2856 = vmatprep.subr.mxu0 0.0
        %2857 = vmatpush1.msra.mxu0 0.0
        %2858 = vmatprep.subr.mxu0 0.0
        %2859 = vmatpush1.msra.mxu0 0.0
        %2860 = vmatprep.subr.mxu0 0.0
        %2861 = vmatpush1.msra.mxu0 0.0
        %2862 = vmatprep.subr.mxu0 0.0
        %2863 = vmatpush1.msra.mxu0 0.0
        %2864 = vmatprep.subr.mxu0 0.0
        %2865 = vmatpush1.msra.mxu0 %v2821
        %2866 = vmatprep.subr.mxu0 0.0
        %2867 = vmatpush2.msra.mxu0 0.0
        %2868 = vmatprep.subr.mxu0 0.0
        %2869 = vmatpush2.msra.mxu0 0.0
        %2870 = vmatprep.subr.mxu0 0.0
        %2871 = vmatpush2.msra.mxu0 0.0
        %2872 = vmatprep.subr.mxu0 0.0
        %2873 = vmatpush2.msra.mxu0 0.0
        %2874 = vmatprep.subr.mxu0 0.0
        %2875 = vmatpush2.msra.mxu0 0.0
        %2876 = vmatprep.subr.mxu0 0.0
        %2877 = vmatpush2.msra.mxu0 0.0
        %2878 = vmatprep.subr.mxu0 0.0
        %2879 = vmatpush2.msra.mxu0 0.0
        %2880 = vmatprep.subr.mxu0 0.0
        %2881 = vmatpush2.msra.mxu0 0.0
        %2882 = vmatprep.subr.mxu0 0.0
        %2883 = vmatpush2.msra.mxu0 0.0
        %2884 = vmatprep.subr.mxu0 0.0
        %2885 = vmatpush2.msra.mxu0 0.0
        %2886 = vmatprep.subr.mxu0 0.0
        %2887 = vmatpush2.msra.mxu0 0.0
        %2888 = vmatprep.subr.mxu0 0.0
        %2889 = vmatpush2.msra.mxu0 0.0
        %2890 = vmatprep.subr.mxu0 0.0
        %2891 = vmatpush2.msra.mxu0 0.0
        %2892 = vmatprep.subr.mxu0 0.0
        %2893 = vmatpush2.msra.mxu0 0.0
        %2894 = vmatprep.subr.mxu0 0.0
        %2895 = vmatpush2.msra.mxu0 0.0
        %2896 = vmatprep.subr.mxu0 0.0
        %2897 = vmatpush2.msra.mxu0 0.0
        %2898 = vmatprep.mubr.f32.mxu0 0.0
        %2899 = vmatmul.mubr.f32.gmra.mxu0 %v2823
        %v2900 = vpop.f32.mrf.mxu0
        %v2901 = vadd.f32 0.0, %v2900
        %v2902 = vpop.f32.mrf.mxu0
        %2903 = vmatprep.mubr.f32.mxu0 0.0
        %2904 = vmatmul.mubr.f32.gmra.mxu0 %v2826
        %v2905 = vpop.f32.mrf.mxu0
        %v2906 = vadd.f32 0.0, %v2905
        %v2907 = vpop.f32.mrf.mxu0
        %2908 = vmatprep.mubr.f32.mxu0 0.0
        %2909 = vmatmul.mubr.f32.gmra.mxu0 %v2829
        %v2910 = vpop.f32.mrf.mxu0
        %v2911 = vadd.f32 0.0, %v2910
        %v2912 = vpop.f32.mrf.mxu0
        %2913 = vmatprep.mubr.f32.mxu0 0.0
        %2914 = vmatmul.mubr.f32.gmra.mxu0 %v2832
        %v2915 = vpop.f32.mrf.mxu0
        %v2916 = vadd.f32 0.0, %v2915
        %v2917 = vpop.f32.mrf.mxu0
        %2918 = vdwg.mxu0
        %v2919 = vadd.f32 %v2265, %v2901
        %v2920 = vadd.f32 %v2266, %v2906
        %v2921 = vadd.f32 %v2267, %v2911
        %v2922 = vadd.f32 %v2268, %v2916
        %v2923 = vld [vmem:[%s7] sm:$0xff]
        %v2924 = vld [vmem:[%s7 + $0x8] sm:$0xff]
        %v2925 = vld [vmem:[%s7 + $0x10] sm:$0xff]
        %v2926 = vld [vmem:[%s7 + $0x18] sm:$0xff]
        %2928 = vset.pattern.permute.xlu0 0
        %2929 = vperm.xlu0 %2928, %v2923
        %v2930 = vpop.permute.xlu0 %2929
        %2933 = vset.pattern.permute.xlu0 0
        %2934 = vperm.xlu0 %2933, %v2924
        %v2935 = vpop.permute.xlu0 %2934
        %2938 = vset.pattern.permute.xlu0 0
        %2939 = vperm.xlu0 %2938, %v2925
        %v2940 = vpop.permute.xlu0 %2939
        %2943 = vset.pattern.permute.xlu0 0
        %2944 = vperm.xlu0 %2943, %v2926
        %v2945 = vpop.permute.xlu0 %2944
        %v2947 = vadd.f32 %v2919, %v2930
        %v2948 = vadd.f32 %v2920, %v2935
        %v2949 = vadd.f32 %v2921, %v2940
        %v2950 = vadd.f32 %v2922, %v2945
        %2951 = vst [vmem:[%s313] sm:$0xff] %v2947
        %2952 = vst [vmem:[%s313 + $0x8] sm:$0xff] %v2948
        %2953 = vst [vmem:[%s313 + $0x10] sm:$0xff] %v2949
        %2954 = vst [vmem:[%s313 + $0x18] sm:$0xff] %v2950
        %s2955 = sand.u32 %s204, 1
        %s2956 = scalar_lea.sflag [#allocation4], %s2955
        %s2957 = sand.u32 %s204, 1
        %s2958 = smul.addr %s2957, 32
        %s2959 = scalar_lea.vmem [#allocation5], %s2958
        // Predicated region
        $region57: #{tpu_custom_call.1} parent=51 // pred_check
          %p2960 = pneg %p214
        $region58: #{tpu_custom_call.1} parent=51 // pred_check_branch
          %2962 = sbr.rel (%p2960) target = $region60
        $region59: #{tpu_custom_call.1} parent=51 // pred_region
          %s2964 = ssub.s32 512, 512
          %2965 = vsyncadd %s2956, %s2964
          %s2966 = smul.addr %s23, 4
          %s2967 = smul.addr %s2966, 128
          %s2968 = scalar_lea.hbm %s8, %s2967
          %s2969 = sshll.u32 %s2959, 4
          %s2970 = int_to_ptr.vmem [resolvable:$true] %s2969
          %2975 = dma.vmem_to_hbm [thread:$0]  %s2970, 512, %s2968, %s2956, 128, 128, 8
        $region60: #{tpu_custom_call.1} parent=51 // pred_fallthru
          _
      $region52: #{tpu_custom_call.1} parent=5 // pred_fallthru
        _
      %p2976 = scmp.le.s32.totalorder 2, %s18
      // Predicated region
      $region61: #{tpu_custom_call.1} parent=5 // pred_check
        %p2977 = pneg %p2976
      $region62: #{tpu_custom_call.1} parent=5 // pred_check_branch
        %2979 = sbr.rel (%p2977) target = $region64
      $region63: #{tpu_custom_call.1} parent=5 // pred_region
        %s2980 = ssub.s32 %s18, 2
        // Predicated region
        $region65: #{tpu_custom_call.1} parent=63 // pred_check
          %p2981 = pneg %p220
        $region66: #{tpu_custom_call.1} parent=63 // pred_check_branch
          %2983 = sbr.rel (%p2981) target = $region68
        $region67: #{tpu_custom_call.1} parent=63 // pred_region
          %s2984 = sand.u32 %s205, 1
          %s2985 = scalar_lea.sflag [#allocation4], %s2984
          %s2986 = sand.u32 %s205, 1
          %s2987 = smul.addr %s2986, 32
          %s2988 = scalar_lea.vmem [#allocation5], %s2987
          %2989 = dma.done %s2985, 512
        $region68: #{tpu_custom_call.1} parent=63 // pred_fallthru
          _
      $region64: #{tpu_custom_call.1} parent=5 // pred_fallthru
        _
    $region6: #{tpu_custom_call.1} parent=1 // loop_footer
      %s22 = sadd.s32 1, %s18
    $region7: #{tpu_custom_call.1} parent=1 // loop_footer_branch
      %17 = sbr.rel target = $region3
    $region8: #{tpu_custom_call.1} parent=1 // loop_exit
      _
    %2990 = vsyncpa [#allocation3], 1
    %s2991 = scalar_lea.sflag [#allocation3], 1
    %2992 = vsyncpa %s2991, 1
    %2993 = vsyncpa [#allocation4], 1
    %s2994 = scalar_lea.sflag [#allocation4], 1
    %2995 = vsyncpa %s2994, 1

</llo_original>
